<compile_context>
chip_gen: v7x
topology: tpu7x:2x2x1
jax: 0.10.0
libtpu: 0.0.40
codegen_flags: <defaults>
</compile_context>

<pallas_src>
import functools

import jax
import jax.numpy as jnp
from jax.experimental import pallas as pl
from jax.experimental.pallas import tpu as pltpu


# ----------------------------------------------------------------------------- kernel


def _ms_tcn_kernel(num_layers, num_stages,
                   x_ref, m_ref,
                   w_in1_ref, b_in1_ref, wd1_ref, bd1_ref, w11_ref, b11_ref,
                   wo1_ref, bo1_ref,
                   w_inr_ref, b_inr_ref, wdr_ref, bdr_ref, w1r_ref, b1r_ref,
                   wor_ref, bor_ref,
                   out_ref):
    L, S = num_layers, num_stages
    x = x_ref[0]                      # (dim, T)
    mask = m_ref[0]                   # (1, T)
    T = x.shape[1]
    F = w_in1_ref.shape[0]
    C = wo1_ref.shape[0]

    # Hoisted time iota + per-dilation boundary masks, shared by every stage/layer
    # (JAX does not CSE broadcast_in_dim, so build them exactly once).
    t_idx = jax.lax.broadcasted_iota(jnp.int32, (F, T), 1)
    shift_masks = []
    for i in range(L):
        d = 2 ** i
        shift_masks.append((d, t_idx >= d, t_idx < (T - d)))

    # Hoisted (C, T) mask used for conv_out masking and the inter-stage softmax input.
    mask_c = jnp.broadcast_to(mask, (C, T))

    def shift_fwd(y, d, m):           # y'[:, t] = y[:, t - d], zero padded at the boundary
        return jnp.where(m, pltpu.roll(y, shift=d % T, axis=1), 0.0)

    def shift_bwd(y, d, m):           # y'[:, t] = y[:, t + d], zero padded at the boundary
        return jnp.where(m, pltpu.roll(y, shift=(-d) % T, axis=1), 0.0)

    def run_stage(inp, w_in, b_in, wd, bd, w1, b1, w_out, b_out):
        # conv_1x1 (Cin -> F)
        f = jnp.dot(w_in, inp, preferred_element_type=jnp.float32) + b_in       # (F, T)
        for i in range(L):
            d, m_f, m_b = shift_masks[i]
            # Dilated k=3 conv: all three taps in ONE stacked (3F, F) @ (F, T) matmul;
            # the shift is applied AFTER the matmul on the F-row slabs (sublane-aligned
            # static slices), so no shifted copies of f are materialized for the MXU.
            y = jnp.dot(wd(i), f, preferred_element_type=jnp.float32)           # (3F, T)
            a = (shift_fwd(y[0:F], d, m_f)
                 + y[F:2 * F]
                 + shift_bwd(y[2 * F:3 * F], d, m_b)
                 + bd(i))
            a = jnp.maximum(a, 0.0)                                              # ReLU
            g = jnp.dot(w1(i), a, preferred_element_type=jnp.float32) + b1(i)
            # TODO(synk): nn.Dropout() is identity in eval mode; training-mode dropout
            #             (p=0.5, RNG-matched to torch) is not reproduced here.
            f = f + g
        out = jnp.dot(w_out, f, preferred_element_type=jnp.float32) + b_out      # (C, T)
        return out * mask_c

    # Stage 1 (dim -> num_classes).
    out = run_stage(
        x, w_in1_ref[...], b_in1_ref[...],
        lambda i: wd1_ref[i], lambda i: bd1_ref[i],
        lambda i: w11_ref[i], lambda i: b11_ref[i],
        wo1_ref[...], bo1_ref[...])
    out_ref[0, 0] = out

    # Refinement stages (num_classes -> num_classes) on softmax(out, channels) * mask.
    for s in range(S - 1):
        mx = jnp.max(out, axis=0, keepdims=True)
        ex = jnp.exp(out - mx)
        p = (ex / jnp.sum(ex, axis=0, keepdims=True)) * mask_c
        out = run_stage(
            p, w_inr_ref[s], b_inr_ref[s],
            lambda i, s=s: wdr_ref[s * L + i],
            lambda i, s=s: bdr_ref[s * L + i],
            lambda i, s=s: w1r_ref[s * L + i],
            lambda i, s=s: b1r_ref[s * L + i],
            wor_ref[s], bor_ref[s])
        out_ref[s + 1, 0] = out


# ----------------------------------------------------------------------------- wrapper


def _rep_spec(shape):
    n = len(shape)
    return pl.BlockSpec(shape, lambda b, n=n: (0,) * n)


_WEIGHT_NAMES = ("w_in1", "b_in1", "wd1", "bd1", "w11", "b11", "wo1", "bo1",
                 "w_inr", "b_inr", "wdr", "bdr", "w1r", "b1r", "wor", "bor")


def ms_tcn_forward(params, x, mask, num_layers, num_stages):
    """x: (B, dim, T), mask: (B, Cm, T) in PyTorch NCT layout.
    Returns (num_stages, B, num_classes, T) float32 (matches MS_TCN.forward)."""
    kp = params["kernel"]
    B, dim, T = x.shape
    C = kp["wo1"].shape[0]
    S = num_stages

    mask0 = mask[:, 0:1, :].astype(jnp.float32)          # (B, 1, T) -- mask[:, 0:1, :]
    weights = [kp[n] for n in _WEIGHT_NAMES]

    kernel = functools.partial(_ms_tcn_kernel, num_layers, num_stages)
    return pl.pallas_call(
        kernel,
        out_shape=jax.ShapeDtypeStruct((S, B, C, T), jnp.float32),
        grid=(B,),
        in_specs=[
            pl.BlockSpec((1, dim, T), lambda b: (b, 0, 0)),      # x (NCT)
            pl.BlockSpec((1, 1, T), lambda b: (b, 0, 0)),        # mask[:, 0:1, :]
        ] + [_rep_spec(w.shape) for w in weights],               # weights, DMA'd once
        out_specs=pl.BlockSpec((S, 1, C, T), lambda b: (0, b, 0, 0)),
        compiler_params=pltpu.CompilerParams(
            dimension_semantics=("parallel",)),                  # batch across TCs (v7x)
    )(x, mask0, *weights)


# ----------------------------------------------------------------------------- params


def init_params(key, num_stages, num_layers, num_f_maps, dim, num_classes):
    S, L, F, C = num_stages, num_layers, num_f_maps, num_classes
    R = max(S - 1, 1)                 # refinement-stage count (dummy 1 if S == 1)
    ks = jax.random.split(key, 16)
    r = lambda k, shape: 0.1 * jax.random.normal(k, shape, dtype=jnp.float32)

    # PyTorch-layout parameters: Conv1d weight (Cout, Cin, K), bias (Cout,).
    stage1 = dict(
        w_in=r(ks[0], (F, dim, 1)), b_in=r(ks[1], (F,)),
        wd=r(ks[2], (L, F, F, 3)), bd=r(ks[3], (L, F)),
        w1=r(ks[4], (L, F, F, 1)), b1=r(ks[5], (L, F)),
        w_out=r(ks[6], (C, F, 1)), b_out=r(ks[7], (C,)),
    )
    rest = dict(
        w_in=r(ks[8], (R, F, C, 1)), b_in=r(ks[9], (R, F)),
        wd=r(ks[10], (R, L, F, F, 3)), bd=r(ks[11], (R, L, F)),
        w1=r(ks[12], (R, L, F, F, 1)), b1=r(ks[13], (R, L, F)),
        w_out=r(ks[14], (R, C, F, 1)), b_out=r(ks[15], (R, C)),
    )

    # Kernel-layout parameters: (Cout, Cin) matmul operands, biases as (Cout, 1) columns.
    # Dilated-conv weights are tap-stacked: layer i gets ONE (3F, F) matrix whose row
    # slabs [0:F], [F:2F], [2F:3F] are the k=0/1/2 taps (one MXU matmul per layer).
    # Refinement (stage, layer) dims are flattened so every ref stays rank <= 4.
    kernel_p = dict(
        w_in1=stage1["w_in"][:, :, 0],                                  # (F, dim)
        b_in1=stage1["b_in"][:, None],                                  # (F, 1)
        wd1=jnp.transpose(stage1["wd"], (0, 3, 1, 2)).reshape(L, 3 * F, F),
        bd1=stage1["bd"][:, :, None],                                   # (L, F, 1)
        w11=stage1["w1"][:, :, :, 0],                                   # (L, F, F)
        b11=stage1["b1"][:, :, None],                                   # (L, F, 1)
        wo1=stage1["w_out"][:, :, 0],                                   # (C, F)
        bo1=stage1["b_out"][:, None],                                   # (C, 1)
        w_inr=rest["w_in"][:, :, :, 0],                                 # (R, F, C)
        b_inr=rest["b_in"][:, :, None],                                 # (R, F, 1)
        wdr=jnp.transpose(rest["wd"], (0, 1, 4, 2, 3)).reshape(R * L, 3 * F, F),
        bdr=rest["bd"].reshape(R * L, F)[:, :, None],                   # (R*L, F, 1)
        w1r=rest["w1"][:, :, :, :, 0].reshape(R * L, F, F),             # (R*L, F, F)
        b1r=rest["b1"].reshape(R * L, F)[:, :, None],                   # (R*L, F, 1)
        wor=rest["w_out"][:, :, :, 0],                                  # (R, C, F)
        bor=rest["b_out"][:, :, None],                                  # (R, C, 1)
    )
    return dict(torch=dict(stage1=stage1, rest=rest), kernel=kernel_p)


# ----------------------------------------------------------------------------- reference


def _conv1d_ref(x, w, b, dilation=1, padding=0):
    # x: (B, Cin, T), w: (Cout, Cin, K) -- PyTorch cross-correlation semantics.
    y = jax.lax.conv_general_dilated(
        x, w, window_strides=(1,), padding=[(padding, padding)],
        rhs_dilation=(dilation,), dimension_numbers=("NCH", "OIH", "NCH"),
        precision=jax.lax.Precision.HIGHEST)
    return y + b[None, :, None]


def reference_forward(params, x, mask, num_layers, num_stages):
    p = params["torch"]
    mask0 = mask[:, 0:1, :]

    def ss_tcn(inp, w_in, b_in, wd, bd, w1, b1, w_out, b_out):
        f = _conv1d_ref(inp, w_in, b_in)
        for i in range(num_layers):
            d = 2 ** i
            a = jax.nn.relu(_conv1d_ref(f, wd[i], bd[i], dilation=d, padding=d))
            g = _conv1d_ref(a, w1[i], b1[i])
            f = f + g                              # dropout is identity in eval mode
        return _conv1d_ref(f, w_out, b_out) * mask0

    s1 = p["stage1"]
    out = ss_tcn(x, s1["w_in"], s1["b_in"], s1["wd"], s1["bd"],
                 s1["w1"], s1["b1"], s1["w_out"], s1["b_out"])
    outs = [out]
    rp = p["rest"]
    for s in range(num_stages - 1):
        inp = jax.nn.softmax(out, axis=1) * mask0
        out = ss_tcn(inp, rp["w_in"][s], rp["b_in"][s], rp["wd"][s], rp["bd"][s],
                     rp["w1"][s], rp["b1"][s], rp["w_out"][s], rp["b_out"][s])
        outs.append(out)
    return jnp.stack(outs, axis=0)


# ----------------------------------------------------------------------------- main


if __name__ == "__main__":
    num_stages = 3
    num_layers = 3
    num_f_maps = 16
    dim = 8
    num_classes = 6
    B, T = 2, 128

    key = jax.random.PRNGKey(0)
    kparam, kx = jax.random.split(key, 2)
    params = init_params(kparam, num_stages, num_layers, num_f_maps, dim, num_classes)

    x = jax.random.normal(kx, (B, dim, T), dtype=jnp.float32)
    lengths = jnp.array([T, T - 19], dtype=jnp.int32)
    valid = (jnp.arange(T, dtype=jnp.int32)[None, :] < lengths[:, None]).astype(jnp.float32)
    mask = jnp.broadcast_to(valid[:, None, :], (B, num_classes, T))      # (B, C, T)

    out = ms_tcn_forward(params, x, mask, num_layers, num_stages)
    jax.block_until_ready(out)

    ref = reference_forward(params, x, mask, num_layers, num_stages)
    assert out.shape == ref.shape == (num_stages, B, num_classes, T), (out.shape, ref.shape)
    max_err = float(jnp.max(jnp.abs(out - ref)))
    assert jnp.allclose(out, ref, atol=1e-4, rtol=1e-4), max_err

    print("KERNEL_OK")
</pallas_src>

<mosaic_0001>
module attributes {stable_mosaic.version = 11 : i64} {
  func.func @_ms_tcn_kernel(%arg0: i32, %arg1: memref<1x8x128xf32, #tpu.memory_space<vmem>>, %arg2: memref<1x1x128xf32, #tpu.memory_space<vmem>>, %arg3: memref<16x8xf32, #tpu.memory_space<vmem>>, %arg4: memref<16x1xf32, #tpu.memory_space<vmem>>, %arg5: memref<3x48x16xf32, #tpu.memory_space<vmem>>, %arg6: memref<3x16x1xf32, #tpu.memory_space<vmem>>, %arg7: memref<3x16x16xf32, #tpu.memory_space<vmem>>, %arg8: memref<3x16x1xf32, #tpu.memory_space<vmem>>, %arg9: memref<6x16xf32, #tpu.memory_space<vmem>>, %arg10: memref<6x1xf32, #tpu.memory_space<vmem>>, %arg11: memref<2x16x6xf32, #tpu.memory_space<vmem>>, %arg12: memref<2x16x1xf32, #tpu.memory_space<vmem>>, %arg13: memref<6x48x16xf32, #tpu.memory_space<vmem>>, %arg14: memref<6x16x1xf32, #tpu.memory_space<vmem>>, %arg15: memref<6x16x16xf32, #tpu.memory_space<vmem>>, %arg16: memref<6x16x1xf32, #tpu.memory_space<vmem>>, %arg17: memref<2x6x16xf32, #tpu.memory_space<vmem>>, %arg18: memref<2x6x1xf32, #tpu.memory_space<vmem>>, %arg19: memref<3x1x6x128xf32, #tpu.memory_space<vmem>>) attributes {dimension_semantics = [#tpu.dimension_semantics<parallel>], iteration_bounds = array<i64: 2>, scalar_prefetch = 0 : i64, scratch_operands = 0 : i64, tpu.core_type = #tpu.core_type<tc>, window_params = [{transform_indices = @transform_0, window_bounds = array<i64: 1, 8, 128>}, {transform_indices = @transform_1, window_bounds = array<i64: 1, 1, 128>}, {pipeline_mode = #tpu.pipeline_mode<synchronous>, transform_indices = @transform_2, window_bounds = array<i64: 16, 8>}, {pipeline_mode = #tpu.pipeline_mode<synchronous>, transform_indices = @transform_3, window_bounds = array<i64: 16, 1>}, {pipeline_mode = #tpu.pipeline_mode<synchronous>, transform_indices = @transform_4, window_bounds = array<i64: 3, 48, 16>}, {pipeline_mode = #tpu.pipeline_mode<synchronous>, transform_indices = @transform_5, window_bounds = array<i64: 3, 16, 1>}, {pipeline_mode = #tpu.pipeline_mode<synchronous>, transform_indices = @transform_6, window_bounds = array<i64: 3, 16, 16>}, {pipeline_mode = #tpu.pipeline_mode<synchronous>, transform_indices = @transform_7, window_bounds = array<i64: 3, 16, 1>}, {pipeline_mode = #tpu.pipeline_mode<synchronous>, transform_indices = @transform_8, window_bounds = array<i64: 6, 16>}, {pipeline_mode = #tpu.pipeline_mode<synchronous>, transform_indices = @transform_9, window_bounds = array<i64: 6, 1>}, {pipeline_mode = #tpu.pipeline_mode<synchronous>, transform_indices = @transform_10, window_bounds = array<i64: 2, 16, 6>}, {pipeline_mode = #tpu.pipeline_mode<synchronous>, transform_indices = @transform_11, window_bounds = array<i64: 2, 16, 1>}, {pipeline_mode = #tpu.pipeline_mode<synchronous>, transform_indices = @transform_12, window_bounds = array<i64: 6, 48, 16>}, {pipeline_mode = #tpu.pipeline_mode<synchronous>, transform_indices = @transform_13, window_bounds = array<i64: 6, 16, 1>}, {pipeline_mode = #tpu.pipeline_mode<synchronous>, transform_indices = @transform_14, window_bounds = array<i64: 6, 16, 16>}, {pipeline_mode = #tpu.pipeline_mode<synchronous>, transform_indices = @transform_15, window_bounds = array<i64: 6, 16, 1>}, {pipeline_mode = #tpu.pipeline_mode<synchronous>, transform_indices = @transform_16, window_bounds = array<i64: 2, 6, 16>}, {pipeline_mode = #tpu.pipeline_mode<synchronous>, transform_indices = @transform_17, window_bounds = array<i64: 2, 6, 1>}, {transform_indices = @transform_18, window_bounds = array<i64: 3, 1, 6, 128>}]} {
    %c0 = arith.constant 0 : index
    %c0_0 = arith.constant 0 : index
    %c0_1 = arith.constant 0 : index
    %0 = vector.load %arg1[%c0, %c0_0, %c0_1] : memref<1x8x128xf32, #tpu.memory_space<vmem>>, vector<1x8x128xf32>
    %1 = vector.shape_cast %0 : vector<1x8x128xf32> to vector<8x128xf32>
    %c0_2 = arith.constant 0 : index
    %c0_3 = arith.constant 0 : index
    %c0_4 = arith.constant 0 : index
    %2 = vector.load %arg2[%c0_2, %c0_3, %c0_4] : memref<1x1x128xf32, #tpu.memory_space<vmem>>, vector<1x1x128xf32>
    %3 = vector.shape_cast %2 : vector<1x1x128xf32> to vector<1x128xf32>
    %4 = tpu.iota {dimensions = array<i32: 1>} : vector<16x128xi32>
    %c1_i32 = arith.constant 1 : i32
    %5 = vector.broadcast %c1_i32 : i32 to vector<16x128xi32>
    %6 = arith.cmpi sge, %4, %5 : vector<16x128xi32>
    %c127_i32 = arith.constant 127 : i32
    %7 = vector.broadcast %c127_i32 : i32 to vector<16x128xi32>
    %8 = arith.cmpi slt, %4, %7 : vector<16x128xi32>
    %c2_i32 = arith.constant 2 : i32
    %9 = vector.broadcast %c2_i32 : i32 to vector<16x128xi32>
    %10 = arith.cmpi sge, %4, %9 : vector<16x128xi32>
    %c126_i32 = arith.constant 126 : i32
    %11 = vector.broadcast %c126_i32 : i32 to vector<16x128xi32>
    %12 = arith.cmpi slt, %4, %11 : vector<16x128xi32>
    %c4_i32 = arith.constant 4 : i32
    %13 = vector.broadcast %c4_i32 : i32 to vector<16x128xi32>
    %14 = arith.cmpi sge, %4, %13 : vector<16x128xi32>
    %c124_i32 = arith.constant 124 : i32
    %15 = vector.broadcast %c124_i32 : i32 to vector<16x128xi32>
    %16 = arith.cmpi slt, %4, %15 : vector<16x128xi32>
    %17 = vector.shape_cast %3 : vector<1x128xf32> to vector<1x128xf32>
    %18 = vector.broadcast %17 : vector<1x128xf32> to vector<6x128xf32>
    %c0_5 = arith.constant 0 : index
    %c0_6 = arith.constant 0 : index
    %19 = vector.load %arg3[%c0_5, %c0_6] : memref<16x8xf32, #tpu.memory_space<vmem>>, vector<16x8xf32>
    %c0_7 = arith.constant 0 : index
    %c0_8 = arith.constant 0 : index
    %20 = vector.load %arg4[%c0_7, %c0_8] : memref<16x1xf32, #tpu.memory_space<vmem>>, vector<16x1xf32>
    %c0_9 = arith.constant 0 : index
    %c0_10 = arith.constant 0 : index
    %21 = vector.load %arg9[%c0_9, %c0_10] : memref<6x16xf32, #tpu.memory_space<vmem>>, vector<6x16xf32>
    %c0_11 = arith.constant 0 : index
    %c0_12 = arith.constant 0 : index
    %22 = vector.load %arg10[%c0_11, %c0_12] : memref<6x1xf32, #tpu.memory_space<vmem>>, vector<6x1xf32>
    %cst = arith.constant dense<0.000000e+00> : vector<16x128xf32>
    %23 = tpu.matmul %19, %1, %cst {dimension_numbers = #tpu.dot_dimension_numbers<[1], [0], [0], [1], [0, 0, 1, 1], [], []>} : vector<16x8xf32>, vector<8x128xf32>, vector<16x128xf32> -> vector<16x128xf32>
    %24 = vector.broadcast %20 : vector<16x1xf32> to vector<16x128xf32>
    %25 = arith.addf %23, %24 : vector<16x128xf32>
    %c0_13 = arith.constant 0 : index
    %c0_14 = arith.constant 0 : index
    %c0_15 = arith.constant 0 : index
    %26 = vector.load %arg5[%c0_13, %c0_14, %c0_15] : memref<3x48x16xf32, #tpu.memory_space<vmem>>, vector<1x48x16xf32>
    %27 = vector.shape_cast %26 : vector<1x48x16xf32> to vector<48x16xf32>
    %cst_16 = arith.constant dense<0.000000e+00> : vector<48x128xf32>
    %28 = tpu.matmul %27, %25, %cst_16 {dimension_numbers = #tpu.dot_dimension_numbers<[1], [0], [0], [1], [0, 0, 1, 1], [], []>} : vector<48x16xf32>, vector<16x128xf32>, vector<48x128xf32> -> vector<48x128xf32>
    %29 = vector.extract_strided_slice %28 {offsets = [0, 0], sizes = [16, 128], strides = [1, 1]} : vector<48x128xf32> to vector<16x128xf32>
    %c1_i32_17 = arith.constant 1 : i32
    %30 = tpu.dynamic_rotate %29 by %c1_i32_17 dim 1 : vector<16x128xf32>, i32 -> vector<16x128xf32>
    %cst_18 = arith.constant 0.000000e+00 : f32
    %31 = vector.broadcast %cst_18 : f32 to vector<16x128xf32>
    %32 = arith.select %6, %30, %31 : vector<16x128xi1>, vector<16x128xf32>
    %33 = vector.extract_strided_slice %28 {offsets = [16, 0], sizes = [16, 128], strides = [1, 1]} : vector<48x128xf32> to vector<16x128xf32>
    %34 = arith.addf %32, %33 : vector<16x128xf32>
    %35 = vector.extract_strided_slice %28 {offsets = [32, 0], sizes = [16, 128], strides = [1, 1]} : vector<48x128xf32> to vector<16x128xf32>
    %c127_i32_19 = arith.constant 127 : i32
    %36 = tpu.dynamic_rotate %35 by %c127_i32_19 dim 1 : vector<16x128xf32>, i32 -> vector<16x128xf32>
    %cst_20 = arith.constant 0.000000e+00 : f32
    %37 = vector.broadcast %cst_20 : f32 to vector<16x128xf32>
    %38 = arith.select %8, %36, %37 : vector<16x128xi1>, vector<16x128xf32>
    %39 = arith.addf %34, %38 : vector<16x128xf32>
    %c0_21 = arith.constant 0 : index
    %c0_22 = arith.constant 0 : index
    %c0_23 = arith.constant 0 : index
    %40 = vector.load %arg6[%c0_21, %c0_22, %c0_23] : memref<3x16x1xf32, #tpu.memory_space<vmem>>, vector<1x16x1xf32>
    %41 = vector.shape_cast %40 : vector<1x16x1xf32> to vector<16x1xf32>
    %42 = vector.broadcast %41 : vector<16x1xf32> to vector<16x128xf32>
    %43 = arith.addf %39, %42 : vector<16x128xf32>
    %cst_24 = arith.constant 0.000000e+00 : f32
    %44 = vector.broadcast %cst_24 : f32 to vector<16x128xf32>
    %45 = arith.maximumf %43, %44 : vector<16x128xf32>
    %c0_25 = arith.constant 0 : index
    %c0_26 = arith.constant 0 : index
    %c0_27 = arith.constant 0 : index
    %46 = vector.load %arg7[%c0_25, %c0_26, %c0_27] : memref<3x16x16xf32, #tpu.memory_space<vmem>>, vector<1x16x16xf32>
    %47 = vector.shape_cast %46 : vector<1x16x16xf32> to vector<16x16xf32>
    %cst_28 = arith.constant dense<0.000000e+00> : vector<16x128xf32>
    %48 = tpu.matmul %47, %45, %cst_28 {dimension_numbers = #tpu.dot_dimension_numbers<[1], [0], [0], [1], [0, 0, 1, 1], [], []>} : vector<16x16xf32>, vector<16x128xf32>, vector<16x128xf32> -> vector<16x128xf32>
    %c0_29 = arith.constant 0 : index
    %c0_30 = arith.constant 0 : index
    %c0_31 = arith.constant 0 : index
    %49 = vector.load %arg8[%c0_29, %c0_30, %c0_31] : memref<3x16x1xf32, #tpu.memory_space<vmem>>, vector<1x16x1xf32>
    %50 = vector.shape_cast %49 : vector<1x16x1xf32> to vector<16x1xf32>
    %51 = vector.broadcast %50 : vector<16x1xf32> to vector<16x128xf32>
    %52 = arith.addf %48, %51 : vector<16x128xf32>
    %53 = arith.addf %25, %52 : vector<16x128xf32>
    %c1 = arith.constant 1 : index
    %c0_32 = arith.constant 0 : index
    %c0_33 = arith.constant 0 : index
    %54 = vector.load %arg5[%c1, %c0_32, %c0_33] : memref<3x48x16xf32, #tpu.memory_space<vmem>>, vector<1x48x16xf32>
    %55 = vector.shape_cast %54 : vector<1x48x16xf32> to vector<48x16xf32>
    %cst_34 = arith.constant dense<0.000000e+00> : vector<48x128xf32>
    %56 = tpu.matmul %55, %53, %cst_34 {dimension_numbers = #tpu.dot_dimension_numbers<[1], [0], [0], [1], [0, 0, 1, 1], [], []>} : vector<48x16xf32>, vector<16x128xf32>, vector<48x128xf32> -> vector<48x128xf32>
    %57 = vector.extract_strided_slice %56 {offsets = [0, 0], sizes = [16, 128], strides = [1, 1]} : vector<48x128xf32> to vector<16x128xf32>
    %c2_i32_35 = arith.constant 2 : i32
    %58 = tpu.dynamic_rotate %57 by %c2_i32_35 dim 1 : vector<16x128xf32>, i32 -> vector<16x128xf32>
    %cst_36 = arith.constant 0.000000e+00 : f32
    %59 = vector.broadcast %cst_36 : f32 to vector<16x128xf32>
    %60 = arith.select %10, %58, %59 : vector<16x128xi1>, vector<16x128xf32>
    %61 = vector.extract_strided_slice %56 {offsets = [16, 0], sizes = [16, 128], strides = [1, 1]} : vector<48x128xf32> to vector<16x128xf32>
    %62 = arith.addf %60, %61 : vector<16x128xf32>
    %63 = vector.extract_strided_slice %56 {offsets = [32, 0], sizes = [16, 128], strides = [1, 1]} : vector<48x128xf32> to vector<16x128xf32>
    %c126_i32_37 = arith.constant 126 : i32
    %64 = tpu.dynamic_rotate %63 by %c126_i32_37 dim 1 : vector<16x128xf32>, i32 -> vector<16x128xf32>
    %cst_38 = arith.constant 0.000000e+00 : f32
    %65 = vector.broadcast %cst_38 : f32 to vector<16x128xf32>
    %66 = arith.select %12, %64, %65 : vector<16x128xi1>, vector<16x128xf32>
    %67 = arith.addf %62, %66 : vector<16x128xf32>
    %c1_39 = arith.constant 1 : index
    %c0_40 = arith.constant 0 : index
    %c0_41 = arith.constant 0 : index
    %68 = vector.load %arg6[%c1_39, %c0_40, %c0_41] : memref<3x16x1xf32, #tpu.memory_space<vmem>>, vector<1x16x1xf32>
    %69 = vector.shape_cast %68 : vector<1x16x1xf32> to vector<16x1xf32>
    %70 = vector.broadcast %69 : vector<16x1xf32> to vector<16x128xf32>
    %71 = arith.addf %67, %70 : vector<16x128xf32>
    %cst_42 = arith.constant 0.000000e+00 : f32
    %72 = vector.broadcast %cst_42 : f32 to vector<16x128xf32>
    %73 = arith.maximumf %71, %72 : vector<16x128xf32>
    %c1_43 = arith.constant 1 : index
    %c0_44 = arith.constant 0 : index
    %c0_45 = arith.constant 0 : index
    %74 = vector.load %arg7[%c1_43, %c0_44, %c0_45] : memref<3x16x16xf32, #tpu.memory_space<vmem>>, vector<1x16x16xf32>
    %75 = vector.shape_cast %74 : vector<1x16x16xf32> to vector<16x16xf32>
    %cst_46 = arith.constant dense<0.000000e+00> : vector<16x128xf32>
    %76 = tpu.matmul %75, %73, %cst_46 {dimension_numbers = #tpu.dot_dimension_numbers<[1], [0], [0], [1], [0, 0, 1, 1], [], []>} : vector<16x16xf32>, vector<16x128xf32>, vector<16x128xf32> -> vector<16x128xf32>
    %c1_47 = arith.constant 1 : index
    %c0_48 = arith.constant 0 : index
    %c0_49 = arith.constant 0 : index
    %77 = vector.load %arg8[%c1_47, %c0_48, %c0_49] : memref<3x16x1xf32, #tpu.memory_space<vmem>>, vector<1x16x1xf32>
    %78 = vector.shape_cast %77 : vector<1x16x1xf32> to vector<16x1xf32>
    %79 = vector.broadcast %78 : vector<16x1xf32> to vector<16x128xf32>
    %80 = arith.addf %76, %79 : vector<16x128xf32>
    %81 = arith.addf %53, %80 : vector<16x128xf32>
    %c2 = arith.constant 2 : index
    %c0_50 = arith.constant 0 : index
    %c0_51 = arith.constant 0 : index
    %82 = vector.load %arg5[%c2, %c0_50, %c0_51] : memref<3x48x16xf32, #tpu.memory_space<vmem>>, vector<1x48x16xf32>
    %83 = vector.shape_cast %82 : vector<1x48x16xf32> to vector<48x16xf32>
    %cst_52 = arith.constant dense<0.000000e+00> : vector<48x128xf32>
    %84 = tpu.matmul %83, %81, %cst_52 {dimension_numbers = #tpu.dot_dimension_numbers<[1], [0], [0], [1], [0, 0, 1, 1], [], []>} : vector<48x16xf32>, vector<16x128xf32>, vector<48x128xf32> -> vector<48x128xf32>
    %85 = vector.extract_strided_slice %84 {offsets = [0, 0], sizes = [16, 128], strides = [1, 1]} : vector<48x128xf32> to vector<16x128xf32>
    %c4_i32_53 = arith.constant 4 : i32
    %86 = tpu.dynamic_rotate %85 by %c4_i32_53 dim 1 : vector<16x128xf32>, i32 -> vector<16x128xf32>
    %cst_54 = arith.constant 0.000000e+00 : f32
    %87 = vector.broadcast %cst_54 : f32 to vector<16x128xf32>
    %88 = arith.select %14, %86, %87 : vector<16x128xi1>, vector<16x128xf32>
    %89 = vector.extract_strided_slice %84 {offsets = [16, 0], sizes = [16, 128], strides = [1, 1]} : vector<48x128xf32> to vector<16x128xf32>
    %90 = arith.addf %88, %89 : vector<16x128xf32>
    %91 = vector.extract_strided_slice %84 {offsets = [32, 0], sizes = [16, 128], strides = [1, 1]} : vector<48x128xf32> to vector<16x128xf32>
    %c124_i32_55 = arith.constant 124 : i32
    %92 = tpu.dynamic_rotate %91 by %c124_i32_55 dim 1 : vector<16x128xf32>, i32 -> vector<16x128xf32>
    %cst_56 = arith.constant 0.000000e+00 : f32
    %93 = vector.broadcast %cst_56 : f32 to vector<16x128xf32>
    %94 = arith.select %16, %92, %93 : vector<16x128xi1>, vector<16x128xf32>
    %95 = arith.addf %90, %94 : vector<16x128xf32>
    %c2_57 = arith.constant 2 : index
    %c0_58 = arith.constant 0 : index
    %c0_59 = arith.constant 0 : index
    %96 = vector.load %arg6[%c2_57, %c0_58, %c0_59] : memref<3x16x1xf32, #tpu.memory_space<vmem>>, vector<1x16x1xf32>
    %97 = vector.shape_cast %96 : vector<1x16x1xf32> to vector<16x1xf32>
    %98 = vector.broadcast %97 : vector<16x1xf32> to vector<16x128xf32>
    %99 = arith.addf %95, %98 : vector<16x128xf32>
    %cst_60 = arith.constant 0.000000e+00 : f32
    %100 = vector.broadcast %cst_60 : f32 to vector<16x128xf32>
    %101 = arith.maximumf %99, %100 : vector<16x128xf32>
    %c2_61 = arith.constant 2 : index
    %c0_62 = arith.constant 0 : index
    %c0_63 = arith.constant 0 : index
    %102 = vector.load %arg7[%c2_61, %c0_62, %c0_63] : memref<3x16x16xf32, #tpu.memory_space<vmem>>, vector<1x16x16xf32>
    %103 = vector.shape_cast %102 : vector<1x16x16xf32> to vector<16x16xf32>
    %cst_64 = arith.constant dense<0.000000e+00> : vector<16x128xf32>
    %104 = tpu.matmul %103, %101, %cst_64 {dimension_numbers = #tpu.dot_dimension_numbers<[1], [0], [0], [1], [0, 0, 1, 1], [], []>} : vector<16x16xf32>, vector<16x128xf32>, vector<16x128xf32> -> vector<16x128xf32>
    %c2_65 = arith.constant 2 : index
    %c0_66 = arith.constant 0 : index
    %c0_67 = arith.constant 0 : index
    %105 = vector.load %arg8[%c2_65, %c0_66, %c0_67] : memref<3x16x1xf32, #tpu.memory_space<vmem>>, vector<1x16x1xf32>
    %106 = vector.shape_cast %105 : vector<1x16x1xf32> to vector<16x1xf32>
    %107 = vector.broadcast %106 : vector<16x1xf32> to vector<16x128xf32>
    %108 = arith.addf %104, %107 : vector<16x128xf32>
    %109 = arith.addf %81, %108 : vector<16x128xf32>
    %cst_68 = arith.constant dense<0.000000e+00> : vector<6x128xf32>
    %110 = tpu.matmul %21, %109, %cst_68 {dimension_numbers = #tpu.dot_dimension_numbers<[1], [0], [0], [1], [0, 0, 1, 1], [], []>} : vector<6x16xf32>, vector<16x128xf32>, vector<6x128xf32> -> vector<6x128xf32>
    %111 = vector.broadcast %22 : vector<6x1xf32> to vector<6x128xf32>
    %112 = arith.addf %110, %111 : vector<6x128xf32>
    %113 = arith.mulf %112, %18 : vector<6x128xf32>
    %c0_69 = arith.constant 0 : index
    %c0_70 = arith.constant 0 : index
    %c0_71 = arith.constant 0 : index
    %c0_72 = arith.constant 0 : index
    %114 = vector.load %arg19[%c0_69, %c0_70, %c0_71, %c0_72] : memref<3x1x6x128xf32, #tpu.memory_space<vmem>>, vector<1x1x6x128xf32>
    %115 = vector.shape_cast %114 : vector<1x1x6x128xf32> to vector<6x128xf32>
    %116 = vector.shape_cast %113 : vector<6x128xf32> to vector<1x1x6x128xf32>
    tpu.vector_store %arg19[%c0_69, %c0_70, %c0_71, %c0_72], %116 {strides = array<i32>} : memref<3x1x6x128xf32, #tpu.memory_space<vmem>>, vector<1x1x6x128xf32>,
    %cst_73 = arith.constant dense<0xFF800000> : vector<128xf32>
    %117 = vector.multi_reduction <maximumf>, %113, %cst_73 [0] : vector<6x128xf32> to vector<128xf32>
    %118 = vector.shape_cast %117 : vector<128xf32> to vector<1x128xf32>
    %119 = vector.broadcast %118 : vector<1x128xf32> to vector<6x128xf32>
    %120 = arith.subf %113, %119 : vector<6x128xf32>
    %121 = math.exp %120 : vector<6x128xf32>
    %cst_74 = arith.constant dense<0.000000e+00> : vector<128xf32>
    %122 = vector.multi_reduction <add>, %121, %cst_74 [0] : vector<6x128xf32> to vector<128xf32>
    %123 = vector.shape_cast %122 : vector<128xf32> to vector<1x128xf32>
    %124 = vector.broadcast %123 : vector<1x128xf32> to vector<6x128xf32>
    %125 = arith.divf %121, %124 : vector<6x128xf32>
    %126 = arith.mulf %125, %18 : vector<6x128xf32>
    %c0_75 = arith.constant 0 : index
    %c0_76 = arith.constant 0 : index
    %c0_77 = arith.constant 0 : index
    %127 = vector.load %arg11[%c0_75, %c0_76, %c0_77] : memref<2x16x6xf32, #tpu.memory_space<vmem>>, vector<1x16x6xf32>
    %128 = vector.shape_cast %127 : vector<1x16x6xf32> to vector<16x6xf32>
    %c0_78 = arith.constant 0 : index
    %c0_79 = arith.constant 0 : index
    %c0_80 = arith.constant 0 : index
    %129 = vector.load %arg12[%c0_78, %c0_79, %c0_80] : memref<2x16x1xf32, #tpu.memory_space<vmem>>, vector<1x16x1xf32>
    %130 = vector.shape_cast %129 : vector<1x16x1xf32> to vector<16x1xf32>
    %c0_81 = arith.constant 0 : index
    %c0_82 = arith.constant 0 : index
    %c0_83 = arith.constant 0 : index
    %131 = vector.load %arg17[%c0_81, %c0_82, %c0_83] : memref<2x6x16xf32, #tpu.memory_space<vmem>>, vector<1x6x16xf32>
    %132 = vector.shape_cast %131 : vector<1x6x16xf32> to vector<6x16xf32>
    %c0_84 = arith.constant 0 : index
    %c0_85 = arith.constant 0 : index
    %c0_86 = arith.constant 0 : index
    %133 = vector.load %arg18[%c0_84, %c0_85, %c0_86] : memref<2x6x1xf32, #tpu.memory_space<vmem>>, vector<1x6x1xf32>
    %134 = vector.shape_cast %133 : vector<1x6x1xf32> to vector<6x1xf32>
    %cst_87 = arith.constant dense<0.000000e+00> : vector<16x128xf32>
    %135 = tpu.matmul %128, %126, %cst_87 {dimension_numbers = #tpu.dot_dimension_numbers<[1], [0], [0], [1], [0, 0, 1, 1], [], []>} : vector<16x6xf32>, vector<6x128xf32>, vector<16x128xf32> -> vector<16x128xf32>
    %136 = vector.broadcast %130 : vector<16x1xf32> to vector<16x128xf32>
    %137 = arith.addf %135, %136 : vector<16x128xf32>
    %c0_88 = arith.constant 0 : index
    %c0_89 = arith.constant 0 : index
    %c0_90 = arith.constant 0 : index
    %138 = vector.load %arg13[%c0_88, %c0_89, %c0_90] : memref<6x48x16xf32, #tpu.memory_space<vmem>>, vector<1x48x16xf32>
    %139 = vector.shape_cast %138 : vector<1x48x16xf32> to vector<48x16xf32>
    %cst_91 = arith.constant dense<0.000000e+00> : vector<48x128xf32>
    %140 = tpu.matmul %139, %137, %cst_91 {dimension_numbers = #tpu.dot_dimension_numbers<[1], [0], [0], [1], [0, 0, 1, 1], [], []>} : vector<48x16xf32>, vector<16x128xf32>, vector<48x128xf32> -> vector<48x128xf32>
    %141 = vector.extract_strided_slice %140 {offsets = [0, 0], sizes = [16, 128], strides = [1, 1]} : vector<48x128xf32> to vector<16x128xf32>
    %c1_i32_92 = arith.constant 1 : i32
    %142 = tpu.dynamic_rotate %141 by %c1_i32_92 dim 1 : vector<16x128xf32>, i32 -> vector<16x128xf32>
    %cst_93 = arith.constant 0.000000e+00 : f32
    %143 = vector.broadcast %cst_93 : f32 to vector<16x128xf32>
    %144 = arith.select %6, %142, %143 : vector<16x128xi1>, vector<16x128xf32>
    %145 = vector.extract_strided_slice %140 {offsets = [16, 0], sizes = [16, 128], strides = [1, 1]} : vector<48x128xf32> to vector<16x128xf32>
    %146 = arith.addf %144, %145 : vector<16x128xf32>
    %147 = vector.extract_strided_slice %140 {offsets = [32, 0], sizes = [16, 128], strides = [1, 1]} : vector<48x128xf32> to vector<16x128xf32>
    %c127_i32_94 = arith.constant 127 : i32
    %148 = tpu.dynamic_rotate %147 by %c127_i32_94 dim 1 : vector<16x128xf32>, i32 -> vector<16x128xf32>
    %cst_95 = arith.constant 0.000000e+00 : f32
    %149 = vector.broadcast %cst_95 : f32 to vector<16x128xf32>
    %150 = arith.select %8, %148, %149 : vector<16x128xi1>, vector<16x128xf32>
    %151 = arith.addf %146, %150 : vector<16x128xf32>
    %c0_96 = arith.constant 0 : index
    %c0_97 = arith.constant 0 : index
    %c0_98 = arith.constant 0 : index
    %152 = vector.load %arg14[%c0_96, %c0_97, %c0_98] : memref<6x16x1xf32, #tpu.memory_space<vmem>>, vector<1x16x1xf32>
    %153 = vector.shape_cast %152 : vector<1x16x1xf32> to vector<16x1xf32>
    %154 = vector.broadcast %153 : vector<16x1xf32> to vector<16x128xf32>
    %155 = arith.addf %151, %154 : vector<16x128xf32>
    %cst_99 = arith.constant 0.000000e+00 : f32
    %156 = vector.broadcast %cst_99 : f32 to vector<16x128xf32>
    %157 = arith.maximumf %155, %156 : vector<16x128xf32>
    %c0_100 = arith.constant 0 : index
    %c0_101 = arith.constant 0 : index
    %c0_102 = arith.constant 0 : index
    %158 = vector.load %arg15[%c0_100, %c0_101, %c0_102] : memref<6x16x16xf32, #tpu.memory_space<vmem>>, vector<1x16x16xf32>
    %159 = vector.shape_cast %158 : vector<1x16x16xf32> to vector<16x16xf32>
    %cst_103 = arith.constant dense<0.000000e+00> : vector<16x128xf32>
    %160 = tpu.matmul %159, %157, %cst_103 {dimension_numbers = #tpu.dot_dimension_numbers<[1], [0], [0], [1], [0, 0, 1, 1], [], []>} : vector<16x16xf32>, vector<16x128xf32>, vector<16x128xf32> -> vector<16x128xf32>
    %c0_104 = arith.constant 0 : index
    %c0_105 = arith.constant 0 : index
    %c0_106 = arith.constant 0 : index
    %161 = vector.load %arg16[%c0_104, %c0_105, %c0_106] : memref<6x16x1xf32, #tpu.memory_space<vmem>>, vector<1x16x1xf32>
    %162 = vector.shape_cast %161 : vector<1x16x1xf32> to vector<16x1xf32>
    %163 = vector.broadcast %162 : vector<16x1xf32> to vector<16x128xf32>
    %164 = arith.addf %160, %163 : vector<16x128xf32>
    %165 = arith.addf %137, %164 : vector<16x128xf32>
    %c1_107 = arith.constant 1 : index
    %c0_108 = arith.constant 0 : index
    %c0_109 = arith.constant 0 : index
    %166 = vector.load %arg13[%c1_107, %c0_108, %c0_109] : memref<6x48x16xf32, #tpu.memory_space<vmem>>, vector<1x48x16xf32>
    %167 = vector.shape_cast %166 : vector<1x48x16xf32> to vector<48x16xf32>
    %cst_110 = arith.constant dense<0.000000e+00> : vector<48x128xf32>
    %168 = tpu.matmul %167, %165, %cst_110 {dimension_numbers = #tpu.dot_dimension_numbers<[1], [0], [0], [1], [0, 0, 1, 1], [], []>} : vector<48x16xf32>, vector<16x128xf32>, vector<48x128xf32> -> vector<48x128xf32>
    %169 = vector.extract_strided_slice %168 {offsets = [0, 0], sizes = [16, 128], strides = [1, 1]} : vector<48x128xf32> to vector<16x128xf32>
    %c2_i32_111 = arith.constant 2 : i32
    %170 = tpu.dynamic_rotate %169 by %c2_i32_111 dim 1 : vector<16x128xf32>, i32 -> vector<16x128xf32>
    %cst_112 = arith.constant 0.000000e+00 : f32
    %171 = vector.broadcast %cst_112 : f32 to vector<16x128xf32>
    %172 = arith.select %10, %170, %171 : vector<16x128xi1>, vector<16x128xf32>
    %173 = vector.extract_strided_slice %168 {offsets = [16, 0], sizes = [16, 128], strides = [1, 1]} : vector<48x128xf32> to vector<16x128xf32>
    %174 = arith.addf %172, %173 : vector<16x128xf32>
    %175 = vector.extract_strided_slice %168 {offsets = [32, 0], sizes = [16, 128], strides = [1, 1]} : vector<48x128xf32> to vector<16x128xf32>
    %c126_i32_113 = arith.constant 126 : i32
    %176 = tpu.dynamic_rotate %175 by %c126_i32_113 dim 1 : vector<16x128xf32>, i32 -> vector<16x128xf32>
    %cst_114 = arith.constant 0.000000e+00 : f32
    %177 = vector.broadcast %cst_114 : f32 to vector<16x128xf32>
    %178 = arith.select %12, %176, %177 : vector<16x128xi1>, vector<16x128xf32>
    %179 = arith.addf %174, %178 : vector<16x128xf32>
    %c1_115 = arith.constant 1 : index
    %c0_116 = arith.constant 0 : index
    %c0_117 = arith.constant 0 : index
    %180 = vector.load %arg14[%c1_115, %c0_116, %c0_117] : memref<6x16x1xf32, #tpu.memory_space<vmem>>, vector<1x16x1xf32>
    %181 = vector.shape_cast %180 : vector<1x16x1xf32> to vector<16x1xf32>
    %182 = vector.broadcast %181 : vector<16x1xf32> to vector<16x128xf32>
    %183 = arith.addf %179, %182 : vector<16x128xf32>
    %cst_118 = arith.constant 0.000000e+00 : f32
    %184 = vector.broadcast %cst_118 : f32 to vector<16x128xf32>
    %185 = arith.maximumf %183, %184 : vector<16x128xf32>
    %c1_119 = arith.constant 1 : index
    %c0_120 = arith.constant 0 : index
    %c0_121 = arith.constant 0 : index
    %186 = vector.load %arg15[%c1_119, %c0_120, %c0_121] : memref<6x16x16xf32, #tpu.memory_space<vmem>>, vector<1x16x16xf32>
    %187 = vector.shape_cast %186 : vector<1x16x16xf32> to vector<16x16xf32>
    %cst_122 = arith.constant dense<0.000000e+00> : vector<16x128xf32>
    %188 = tpu.matmul %187, %185, %cst_122 {dimension_numbers = #tpu.dot_dimension_numbers<[1], [0], [0], [1], [0, 0, 1, 1], [], []>} : vector<16x16xf32>, vector<16x128xf32>, vector<16x128xf32> -> vector<16x128xf32>
    %c1_123 = arith.constant 1 : index
    %c0_124 = arith.constant 0 : index
    %c0_125 = arith.constant 0 : index
    %189 = vector.load %arg16[%c1_123, %c0_124, %c0_125] : memref<6x16x1xf32, #tpu.memory_space<vmem>>, vector<1x16x1xf32>
    %190 = vector.shape_cast %189 : vector<1x16x1xf32> to vector<16x1xf32>
    %191 = vector.broadcast %190 : vector<16x1xf32> to vector<16x128xf32>
    %192 = arith.addf %188, %191 : vector<16x128xf32>
    %193 = arith.addf %165, %192 : vector<16x128xf32>
    %c2_126 = arith.constant 2 : index
    %c0_127 = arith.constant 0 : index
    %c0_128 = arith.constant 0 : index
    %194 = vector.load %arg13[%c2_126, %c0_127, %c0_128] : memref<6x48x16xf32, #tpu.memory_space<vmem>>, vector<1x48x16xf32>
    %195 = vector.shape_cast %194 : vector<1x48x16xf32> to vector<48x16xf32>
    %cst_129 = arith.constant dense<0.000000e+00> : vector<48x128xf32>
    %196 = tpu.matmul %195, %193, %cst_129 {dimension_numbers = #tpu.dot_dimension_numbers<[1], [0], [0], [1], [0, 0, 1, 1], [], []>} : vector<48x16xf32>, vector<16x128xf32>, vector<48x128xf32> -> vector<48x128xf32>
    %197 = vector.extract_strided_slice %196 {offsets = [0, 0], sizes = [16, 128], strides = [1, 1]} : vector<48x128xf32> to vector<16x128xf32>
    %c4_i32_130 = arith.constant 4 : i32
    %198 = tpu.dynamic_rotate %197 by %c4_i32_130 dim 1 : vector<16x128xf32>, i32 -> vector<16x128xf32>
    %cst_131 = arith.constant 0.000000e+00 : f32
    %199 = vector.broadcast %cst_131 : f32 to vector<16x128xf32>
    %200 = arith.select %14, %198, %199 : vector<16x128xi1>, vector<16x128xf32>
    %201 = vector.extract_strided_slice %196 {offsets = [16, 0], sizes = [16, 128], strides = [1, 1]} : vector<48x128xf32> to vector<16x128xf32>
    %202 = arith.addf %200, %201 : vector<16x128xf32>
    %203 = vector.extract_strided_slice %196 {offsets = [32, 0], sizes = [16, 128], strides = [1, 1]} : vector<48x128xf32> to vector<16x128xf32>
    %c124_i32_132 = arith.constant 124 : i32
    %204 = tpu.dynamic_rotate %203 by %c124_i32_132 dim 1 : vector<16x128xf32>, i32 -> vector<16x128xf32>
    %cst_133 = arith.constant 0.000000e+00 : f32
    %205 = vector.broadcast %cst_133 : f32 to vector<16x128xf32>
    %206 = arith.select %16, %204, %205 : vector<16x128xi1>, vector<16x128xf32>
    %207 = arith.addf %202, %206 : vector<16x128xf32>
    %c2_134 = arith.constant 2 : index
    %c0_135 = arith.constant 0 : index
    %c0_136 = arith.constant 0 : index
    %208 = vector.load %arg14[%c2_134, %c0_135, %c0_136] : memref<6x16x1xf32, #tpu.memory_space<vmem>>, vector<1x16x1xf32>
    %209 = vector.shape_cast %208 : vector<1x16x1xf32> to vector<16x1xf32>
    %210 = vector.broadcast %209 : vector<16x1xf32> to vector<16x128xf32>
    %211 = arith.addf %207, %210 : vector<16x128xf32>
    %cst_137 = arith.constant 0.000000e+00 : f32
    %212 = vector.broadcast %cst_137 : f32 to vector<16x128xf32>
    %213 = arith.maximumf %211, %212 : vector<16x128xf32>
    %c2_138 = arith.constant 2 : index
    %c0_139 = arith.constant 0 : index
    %c0_140 = arith.constant 0 : index
    %214 = vector.load %arg15[%c2_138, %c0_139, %c0_140] : memref<6x16x16xf32, #tpu.memory_space<vmem>>, vector<1x16x16xf32>
    %215 = vector.shape_cast %214 : vector<1x16x16xf32> to vector<16x16xf32>
    %cst_141 = arith.constant dense<0.000000e+00> : vector<16x128xf32>
    %216 = tpu.matmul %215, %213, %cst_141 {dimension_numbers = #tpu.dot_dimension_numbers<[1], [0], [0], [1], [0, 0, 1, 1], [], []>} : vector<16x16xf32>, vector<16x128xf32>, vector<16x128xf32> -> vector<16x128xf32>
    %c2_142 = arith.constant 2 : index
    %c0_143 = arith.constant 0 : index
    %c0_144 = arith.constant 0 : index
    %217 = vector.load %arg16[%c2_142, %c0_143, %c0_144] : memref<6x16x1xf32, #tpu.memory_space<vmem>>, vector<1x16x1xf32>
    %218 = vector.shape_cast %217 : vector<1x16x1xf32> to vector<16x1xf32>
    %219 = vector.broadcast %218 : vector<16x1xf32> to vector<16x128xf32>
    %220 = arith.addf %216, %219 : vector<16x128xf32>
    %221 = arith.addf %193, %220 : vector<16x128xf32>
    %cst_145 = arith.constant dense<0.000000e+00> : vector<6x128xf32>
    %222 = tpu.matmul %132, %221, %cst_145 {dimension_numbers = #tpu.dot_dimension_numbers<[1], [0], [0], [1], [0, 0, 1, 1], [], []>} : vector<6x16xf32>, vector<16x128xf32>, vector<6x128xf32> -> vector<6x128xf32>
    %223 = vector.broadcast %134 : vector<6x1xf32> to vector<6x128xf32>
    %224 = arith.addf %222, %223 : vector<6x128xf32>
    %225 = arith.mulf %224, %18 : vector<6x128xf32>
    %c1_146 = arith.constant 1 : index
    %c0_147 = arith.constant 0 : index
    %c0_148 = arith.constant 0 : index
    %c0_149 = arith.constant 0 : index
    %226 = vector.load %arg19[%c1_146, %c0_147, %c0_148, %c0_149] : memref<3x1x6x128xf32, #tpu.memory_space<vmem>>, vector<1x1x6x128xf32>
    %227 = vector.shape_cast %226 : vector<1x1x6x128xf32> to vector<6x128xf32>
    %228 = vector.shape_cast %225 : vector<6x128xf32> to vector<1x1x6x128xf32>
    tpu.vector_store %arg19[%c1_146, %c0_147, %c0_148, %c0_149], %228 {strides = array<i32>} : memref<3x1x6x128xf32, #tpu.memory_space<vmem>>, vector<1x1x6x128xf32>,
    %cst_150 = arith.constant dense<0xFF800000> : vector<128xf32>
    %229 = vector.multi_reduction <maximumf>, %225, %cst_150 [0] : vector<6x128xf32> to vector<128xf32>
    %230 = vector.shape_cast %229 : vector<128xf32> to vector<1x128xf32>
    %231 = vector.broadcast %230 : vector<1x128xf32> to vector<6x128xf32>
    %232 = arith.subf %225, %231 : vector<6x128xf32>
    %233 = math.exp %232 : vector<6x128xf32>
    %cst_151 = arith.constant dense<0.000000e+00> : vector<128xf32>
    %234 = vector.multi_reduction <add>, %233, %cst_151 [0] : vector<6x128xf32> to vector<128xf32>
    %235 = vector.shape_cast %234 : vector<128xf32> to vector<1x128xf32>
    %236 = vector.broadcast %235 : vector<1x128xf32> to vector<6x128xf32>
    %237 = arith.divf %233, %236 : vector<6x128xf32>
    %238 = arith.mulf %237, %18 : vector<6x128xf32>
    %c1_152 = arith.constant 1 : index
    %c0_153 = arith.constant 0 : index
    %c0_154 = arith.constant 0 : index
    %239 = vector.load %arg11[%c1_152, %c0_153, %c0_154] : memref<2x16x6xf32, #tpu.memory_space<vmem>>, vector<1x16x6xf32>
    %240 = vector.shape_cast %239 : vector<1x16x6xf32> to vector<16x6xf32>
    %c1_155 = arith.constant 1 : index
    %c0_156 = arith.constant 0 : index
    %c0_157 = arith.constant 0 : index
    %241 = vector.load %arg12[%c1_155, %c0_156, %c0_157] : memref<2x16x1xf32, #tpu.memory_space<vmem>>, vector<1x16x1xf32>
    %242 = vector.shape_cast %241 : vector<1x16x1xf32> to vector<16x1xf32>
    %c1_158 = arith.constant 1 : index
    %c0_159 = arith.constant 0 : index
    %c0_160 = arith.constant 0 : index
    %243 = vector.load %arg17[%c1_158, %c0_159, %c0_160] : memref<2x6x16xf32, #tpu.memory_space<vmem>>, vector<1x6x16xf32>
    %244 = vector.shape_cast %243 : vector<1x6x16xf32> to vector<6x16xf32>
    %c1_161 = arith.constant 1 : index
    %c0_162 = arith.constant 0 : index
    %c0_163 = arith.constant 0 : index
    %245 = vector.load %arg18[%c1_161, %c0_162, %c0_163] : memref<2x6x1xf32, #tpu.memory_space<vmem>>, vector<1x6x1xf32>
    %246 = vector.shape_cast %245 : vector<1x6x1xf32> to vector<6x1xf32>
    %cst_164 = arith.constant dense<0.000000e+00> : vector<16x128xf32>
    %247 = tpu.matmul %240, %238, %cst_164 {dimension_numbers = #tpu.dot_dimension_numbers<[1], [0], [0], [1], [0, 0, 1, 1], [], []>} : vector<16x6xf32>, vector<6x128xf32>, vector<16x128xf32> -> vector<16x128xf32>
    %248 = vector.broadcast %242 : vector<16x1xf32> to vector<16x128xf32>
    %249 = arith.addf %247, %248 : vector<16x128xf32>
    %c3 = arith.constant 3 : index
    %c0_165 = arith.constant 0 : index
    %c0_166 = arith.constant 0 : index
    %250 = vector.load %arg13[%c3, %c0_165, %c0_166] : memref<6x48x16xf32, #tpu.memory_space<vmem>>, vector<1x48x16xf32>
    %251 = vector.shape_cast %250 : vector<1x48x16xf32> to vector<48x16xf32>
    %cst_167 = arith.constant dense<0.000000e+00> : vector<48x128xf32>
    %252 = tpu.matmul %251, %249, %cst_167 {dimension_numbers = #tpu.dot_dimension_numbers<[1], [0], [0], [1], [0, 0, 1, 1], [], []>} : vector<48x16xf32>, vector<16x128xf32>, vector<48x128xf32> -> vector<48x128xf32>
    %253 = vector.extract_strided_slice %252 {offsets = [0, 0], sizes = [16, 128], strides = [1, 1]} : vector<48x128xf32> to vector<16x128xf32>
    %c1_i32_168 = arith.constant 1 : i32
    %254 = tpu.dynamic_rotate %253 by %c1_i32_168 dim 1 : vector<16x128xf32>, i32 -> vector<16x128xf32>
    %cst_169 = arith.constant 0.000000e+00 : f32
    %255 = vector.broadcast %cst_169 : f32 to vector<16x128xf32>
    %256 = arith.select %6, %254, %255 : vector<16x128xi1>, vector<16x128xf32>
    %257 = vector.extract_strided_slice %252 {offsets = [16, 0], sizes = [16, 128], strides = [1, 1]} : vector<48x128xf32> to vector<16x128xf32>
    %258 = arith.addf %256, %257 : vector<16x128xf32>
    %259 = vector.extract_strided_slice %252 {offsets = [32, 0], sizes = [16, 128], strides = [1, 1]} : vector<48x128xf32> to vector<16x128xf32>
    %c127_i32_170 = arith.constant 127 : i32
    %260 = tpu.dynamic_rotate %259 by %c127_i32_170 dim 1 : vector<16x128xf32>, i32 -> vector<16x128xf32>
    %cst_171 = arith.constant 0.000000e+00 : f32
    %261 = vector.broadcast %cst_171 : f32 to vector<16x128xf32>
    %262 = arith.select %8, %260, %261 : vector<16x128xi1>, vector<16x128xf32>
    %263 = arith.addf %258, %262 : vector<16x128xf32>
    %c3_172 = arith.constant 3 : index
    %c0_173 = arith.constant 0 : index
    %c0_174 = arith.constant 0 : index
    %264 = vector.load %arg14[%c3_172, %c0_173, %c0_174] : memref<6x16x1xf32, #tpu.memory_space<vmem>>, vector<1x16x1xf32>
    %265 = vector.shape_cast %264 : vector<1x16x1xf32> to vector<16x1xf32>
    %266 = vector.broadcast %265 : vector<16x1xf32> to vector<16x128xf32>
    %267 = arith.addf %263, %266 : vector<16x128xf32>
    %cst_175 = arith.constant 0.000000e+00 : f32
    %268 = vector.broadcast %cst_175 : f32 to vector<16x128xf32>
    %269 = arith.maximumf %267, %268 : vector<16x128xf32>
    %c3_176 = arith.constant 3 : index
    %c0_177 = arith.constant 0 : index
    %c0_178 = arith.constant 0 : index
    %270 = vector.load %arg15[%c3_176, %c0_177, %c0_178] : memref<6x16x16xf32, #tpu.memory_space<vmem>>, vector<1x16x16xf32>
    %271 = vector.shape_cast %270 : vector<1x16x16xf32> to vector<16x16xf32>
    %cst_179 = arith.constant dense<0.000000e+00> : vector<16x128xf32>
    %272 = tpu.matmul %271, %269, %cst_179 {dimension_numbers = #tpu.dot_dimension_numbers<[1], [0], [0], [1], [0, 0, 1, 1], [], []>} : vector<16x16xf32>, vector<16x128xf32>, vector<16x128xf32> -> vector<16x128xf32>
    %c3_180 = arith.constant 3 : index
    %c0_181 = arith.constant 0 : index
    %c0_182 = arith.constant 0 : index
    %273 = vector.load %arg16[%c3_180, %c0_181, %c0_182] : memref<6x16x1xf32, #tpu.memory_space<vmem>>, vector<1x16x1xf32>
    %274 = vector.shape_cast %273 : vector<1x16x1xf32> to vector<16x1xf32>
    %275 = vector.broadcast %274 : vector<16x1xf32> to vector<16x128xf32>
    %276 = arith.addf %272, %275 : vector<16x128xf32>
    %277 = arith.addf %249, %276 : vector<16x128xf32>
    %c4 = arith.constant 4 : index
    %c0_183 = arith.constant 0 : index
    %c0_184 = arith.constant 0 : index
    %278 = vector.load %arg13[%c4, %c0_183, %c0_184] : memref<6x48x16xf32, #tpu.memory_space<vmem>>, vector<1x48x16xf32>
    %279 = vector.shape_cast %278 : vector<1x48x16xf32> to vector<48x16xf32>
    %cst_185 = arith.constant dense<0.000000e+00> : vector<48x128xf32>
    %280 = tpu.matmul %279, %277, %cst_185 {dimension_numbers = #tpu.dot_dimension_numbers<[1], [0], [0], [1], [0, 0, 1, 1], [], []>} : vector<48x16xf32>, vector<16x128xf32>, vector<48x128xf32> -> vector<48x128xf32>
    %281 = vector.extract_strided_slice %280 {offsets = [0, 0], sizes = [16, 128], strides = [1, 1]} : vector<48x128xf32> to vector<16x128xf32>
    %c2_i32_186 = arith.constant 2 : i32
    %282 = tpu.dynamic_rotate %281 by %c2_i32_186 dim 1 : vector<16x128xf32>, i32 -> vector<16x128xf32>
    %cst_187 = arith.constant 0.000000e+00 : f32
    %283 = vector.broadcast %cst_187 : f32 to vector<16x128xf32>
    %284 = arith.select %10, %282, %283 : vector<16x128xi1>, vector<16x128xf32>
    %285 = vector.extract_strided_slice %280 {offsets = [16, 0], sizes = [16, 128], strides = [1, 1]} : vector<48x128xf32> to vector<16x128xf32>
    %286 = arith.addf %284, %285 : vector<16x128xf32>
    %287 = vector.extract_strided_slice %280 {offsets = [32, 0], sizes = [16, 128], strides = [1, 1]} : vector<48x128xf32> to vector<16x128xf32>
    %c126_i32_188 = arith.constant 126 : i32
    %288 = tpu.dynamic_rotate %287 by %c126_i32_188 dim 1 : vector<16x128xf32>, i32 -> vector<16x128xf32>
    %cst_189 = arith.constant 0.000000e+00 : f32
    %289 = vector.broadcast %cst_189 : f32 to vector<16x128xf32>
    %290 = arith.select %12, %288, %289 : vector<16x128xi1>, vector<16x128xf32>
    %291 = arith.addf %286, %290 : vector<16x128xf32>
    %c4_190 = arith.constant 4 : index
    %c0_191 = arith.constant 0 : index
    %c0_192 = arith.constant 0 : index
    %292 = vector.load %arg14[%c4_190, %c0_191, %c0_192] : memref<6x16x1xf32, #tpu.memory_space<vmem>>, vector<1x16x1xf32>
    %293 = vector.shape_cast %292 : vector<1x16x1xf32> to vector<16x1xf32>
    %294 = vector.broadcast %293 : vector<16x1xf32> to vector<16x128xf32>
    %295 = arith.addf %291, %294 : vector<16x128xf32>
    %cst_193 = arith.constant 0.000000e+00 : f32
    %296 = vector.broadcast %cst_193 : f32 to vector<16x128xf32>
    %297 = arith.maximumf %295, %296 : vector<16x128xf32>
    %c4_194 = arith.constant 4 : index
    %c0_195 = arith.constant 0 : index
    %c0_196 = arith.constant 0 : index
    %298 = vector.load %arg15[%c4_194, %c0_195, %c0_196] : memref<6x16x16xf32, #tpu.memory_space<vmem>>, vector<1x16x16xf32>
    %299 = vector.shape_cast %298 : vector<1x16x16xf32> to vector<16x16xf32>
    %cst_197 = arith.constant dense<0.000000e+00> : vector<16x128xf32>
    %300 = tpu.matmul %299, %297, %cst_197 {dimension_numbers = #tpu.dot_dimension_numbers<[1], [0], [0], [1], [0, 0, 1, 1], [], []>} : vector<16x16xf32>, vector<16x128xf32>, vector<16x128xf32> -> vector<16x128xf32>
    %c4_198 = arith.constant 4 : index
    %c0_199 = arith.constant 0 : index
    %c0_200 = arith.constant 0 : index
    %301 = vector.load %arg16[%c4_198, %c0_199, %c0_200] : memref<6x16x1xf32, #tpu.memory_space<vmem>>, vector<1x16x1xf32>
    %302 = vector.shape_cast %301 : vector<1x16x1xf32> to vector<16x1xf32>
    %303 = vector.broadcast %302 : vector<16x1xf32> to vector<16x128xf32>
    %304 = arith.addf %300, %303 : vector<16x128xf32>
    %305 = arith.addf %277, %304 : vector<16x128xf32>
    %c5 = arith.constant 5 : index
    %c0_201 = arith.constant 0 : index
    %c0_202 = arith.constant 0 : index
    %306 = vector.load %arg13[%c5, %c0_201, %c0_202] : memref<6x48x16xf32, #tpu.memory_space<vmem>>, vector<1x48x16xf32>
    %307 = vector.shape_cast %306 : vector<1x48x16xf32> to vector<48x16xf32>
    %cst_203 = arith.constant dense<0.000000e+00> : vector<48x128xf32>
    %308 = tpu.matmul %307, %305, %cst_203 {dimension_numbers = #tpu.dot_dimension_numbers<[1], [0], [0], [1], [0, 0, 1, 1], [], []>} : vector<48x16xf32>, vector<16x128xf32>, vector<48x128xf32> -> vector<48x128xf32>
    %309 = vector.extract_strided_slice %308 {offsets = [0, 0], sizes = [16, 128], strides = [1, 1]} : vector<48x128xf32> to vector<16x128xf32>
    %c4_i32_204 = arith.constant 4 : i32
    %310 = tpu.dynamic_rotate %309 by %c4_i32_204 dim 1 : vector<16x128xf32>, i32 -> vector<16x128xf32>
    %cst_205 = arith.constant 0.000000e+00 : f32
    %311 = vector.broadcast %cst_205 : f32 to vector<16x128xf32>
    %312 = arith.select %14, %310, %311 : vector<16x128xi1>, vector<16x128xf32>
    %313 = vector.extract_strided_slice %308 {offsets = [16, 0], sizes = [16, 128], strides = [1, 1]} : vector<48x128xf32> to vector<16x128xf32>
    %314 = arith.addf %312, %313 : vector<16x128xf32>
    %315 = vector.extract_strided_slice %308 {offsets = [32, 0], sizes = [16, 128], strides = [1, 1]} : vector<48x128xf32> to vector<16x128xf32>
    %c124_i32_206 = arith.constant 124 : i32
    %316 = tpu.dynamic_rotate %315 by %c124_i32_206 dim 1 : vector<16x128xf32>, i32 -> vector<16x128xf32>
    %cst_207 = arith.constant 0.000000e+00 : f32
    %317 = vector.broadcast %cst_207 : f32 to vector<16x128xf32>
    %318 = arith.select %16, %316, %317 : vector<16x128xi1>, vector<16x128xf32>
    %319 = arith.addf %314, %318 : vector<16x128xf32>
    %c5_208 = arith.constant 5 : index
    %c0_209 = arith.constant 0 : index
    %c0_210 = arith.constant 0 : index
    %320 = vector.load %arg14[%c5_208, %c0_209, %c0_210] : memref<6x16x1xf32, #tpu.memory_space<vmem>>, vector<1x16x1xf32>
    %321 = vector.shape_cast %320 : vector<1x16x1xf32> to vector<16x1xf32>
    %322 = vector.broadcast %321 : vector<16x1xf32> to vector<16x128xf32>
    %323 = arith.addf %319, %322 : vector<16x128xf32>
    %cst_211 = arith.constant 0.000000e+00 : f32
    %324 = vector.broadcast %cst_211 : f32 to vector<16x128xf32>
    %325 = arith.maximumf %323, %324 : vector<16x128xf32>
    %c5_212 = arith.constant 5 : index
    %c0_213 = arith.constant 0 : index
    %c0_214 = arith.constant 0 : index
    %326 = vector.load %arg15[%c5_212, %c0_213, %c0_214] : memref<6x16x16xf32, #tpu.memory_space<vmem>>, vector<1x16x16xf32>
    %327 = vector.shape_cast %326 : vector<1x16x16xf32> to vector<16x16xf32>
    %cst_215 = arith.constant dense<0.000000e+00> : vector<16x128xf32>
    %328 = tpu.matmul %327, %325, %cst_215 {dimension_numbers = #tpu.dot_dimension_numbers<[1], [0], [0], [1], [0, 0, 1, 1], [], []>} : vector<16x16xf32>, vector<16x128xf32>, vector<16x128xf32> -> vector<16x128xf32>
    %c5_216 = arith.constant 5 : index
    %c0_217 = arith.constant 0 : index
    %c0_218 = arith.constant 0 : index
    %329 = vector.load %arg16[%c5_216, %c0_217, %c0_218] : memref<6x16x1xf32, #tpu.memory_space<vmem>>, vector<1x16x1xf32>
    %330 = vector.shape_cast %329 : vector<1x16x1xf32> to vector<16x1xf32>
    %331 = vector.broadcast %330 : vector<16x1xf32> to vector<16x128xf32>
    %332 = arith.addf %328, %331 : vector<16x128xf32>
    %333 = arith.addf %305, %332 : vector<16x128xf32>
    %cst_219 = arith.constant dense<0.000000e+00> : vector<6x128xf32>
    %334 = tpu.matmul %244, %333, %cst_219 {dimension_numbers = #tpu.dot_dimension_numbers<[1], [0], [0], [1], [0, 0, 1, 1], [], []>} : vector<6x16xf32>, vector<16x128xf32>, vector<6x128xf32> -> vector<6x128xf32>
    %335 = vector.broadcast %246 : vector<6x1xf32> to vector<6x128xf32>
    %336 = arith.addf %334, %335 : vector<6x128xf32>
    %337 = arith.mulf %336, %18 : vector<6x128xf32>
    %c2_220 = arith.constant 2 : index
    %c0_221 = arith.constant 0 : index
    %c0_222 = arith.constant 0 : index
    %c0_223 = arith.constant 0 : index
    %338 = vector.load %arg19[%c2_220, %c0_221, %c0_222, %c0_223] : memref<3x1x6x128xf32, #tpu.memory_space<vmem>>, vector<1x1x6x128xf32>
    %339 = vector.shape_cast %338 : vector<1x1x6x128xf32> to vector<6x128xf32>
    %340 = vector.shape_cast %337 : vector<6x128xf32> to vector<1x1x6x128xf32>
    tpu.vector_store %arg19[%c2_220, %c0_221, %c0_222, %c0_223], %340 {strides = array<i32>} : memref<3x1x6x128xf32, #tpu.memory_space<vmem>>, vector<1x1x6x128xf32>,
    return
  }
  func.func @transform_0(%arg0: i32) -> (i32, i32, i32) {
    %c0_i32 = arith.constant 0 : i32
    %c0_i32_0 = arith.constant 0 : i32
    %c0_i32_1 = arith.constant 0 : i32
    return %arg0, %c0_i32, %c0_i32_0 : i32, i32, i32
  }
  func.func @transform_1(%arg0: i32) -> (i32, i32, i32) {
    %c0_i32 = arith.constant 0 : i32
    %c0_i32_0 = arith.constant 0 : i32
    %c0_i32_1 = arith.constant 0 : i32
    return %arg0, %c0_i32, %c0_i32_0 : i32, i32, i32
  }
  func.func @transform_2(%arg0: i32) -> (i32, i32) {
    %c0_i32 = arith.constant 0 : i32
    %c0_i32_0 = arith.constant 0 : i32
    %c0_i32_1 = arith.constant 0 : i32
    return %c0_i32, %c0_i32_0 : i32, i32
  }
  func.func @transform_3(%arg0: i32) -> (i32, i32) {
    %c0_i32 = arith.constant 0 : i32
    %c0_i32_0 = arith.constant 0 : i32
    %c0_i32_1 = arith.constant 0 : i32
    return %c0_i32, %c0_i32_0 : i32, i32
  }
  func.func @transform_4(%arg0: i32) -> (i32, i32, i32) {
    %c0_i32 = arith.constant 0 : i32
    %c0_i32_0 = arith.constant 0 : i32
    %c0_i32_1 = arith.constant 0 : i32
    %c0_i32_2 = arith.constant 0 : i32
    return %c0_i32, %c0_i32_0, %c0_i32_1 : i32, i32, i32
  }
  func.func @transform_5(%arg0: i32) -> (i32, i32, i32) {
    %c0_i32 = arith.constant 0 : i32
    %c0_i32_0 = arith.constant 0 : i32
    %c0_i32_1 = arith.constant 0 : i32
    %c0_i32_2 = arith.constant 0 : i32
    return %c0_i32, %c0_i32_0, %c0_i32_1 : i32, i32, i32
  }
  func.func @transform_6(%arg0: i32) -> (i32, i32, i32) {
    %c0_i32 = arith.constant 0 : i32
    %c0_i32_0 = arith.constant 0 : i32
    %c0_i32_1 = arith.constant 0 : i32
    %c0_i32_2 = arith.constant 0 : i32
    return %c0_i32, %c0_i32_0, %c0_i32_1 : i32, i32, i32
  }
  func.func @transform_7(%arg0: i32) -> (i32, i32, i32) {
    %c0_i32 = arith.constant 0 : i32
    %c0_i32_0 = arith.constant 0 : i32
    %c0_i32_1 = arith.constant 0 : i32
    %c0_i32_2 = arith.constant 0 : i32
    return %c0_i32, %c0_i32_0, %c0_i32_1 : i32, i32, i32
  }
  func.func @transform_8(%arg0: i32) -> (i32, i32) {
    %c0_i32 = arith.constant 0 : i32
    %c0_i32_0 = arith.constant 0 : i32
    %c0_i32_1 = arith.constant 0 : i32
    return %c0_i32, %c0_i32_0 : i32, i32
  }
  func.func @transform_9(%arg0: i32) -> (i32, i32) {
    %c0_i32 = arith.constant 0 : i32
    %c0_i32_0 = arith.constant 0 : i32
    %c0_i32_1 = arith.constant 0 : i32
    return %c0_i32, %c0_i32_0 : i32, i32
  }
  func.func @transform_10(%arg0: i32) -> (i32, i32, i32) {
    %c0_i32 = arith.constant 0 : i32
    %c0_i32_0 = arith.constant 0 : i32
    %c0_i32_1 = arith.constant 0 : i32
    %c0_i32_2 = arith.constant 0 : i32
    return %c0_i32, %c0_i32_0, %c0_i32_1 : i32, i32, i32
  }
  func.func @transform_11(%arg0: i32) -> (i32, i32, i32) {
    %c0_i32 = arith.constant 0 : i32
    %c0_i32_0 = arith.constant 0 : i32
    %c0_i32_1 = arith.constant 0 : i32
    %c0_i32_2 = arith.constant 0 : i32
    return %c0_i32, %c0_i32_0, %c0_i32_1 : i32, i32, i32
  }
  func.func @transform_12(%arg0: i32) -> (i32, i32, i32) {
    %c0_i32 = arith.constant 0 : i32
    %c0_i32_0 = arith.constant 0 : i32
    %c0_i32_1 = arith.constant 0 : i32
    %c0_i32_2 = arith.constant 0 : i32
    return %c0_i32, %c0_i32_0, %c0_i32_1 : i32, i32, i32
  }
  func.func @transform_13(%arg0: i32) -> (i32, i32, i32) {
    %c0_i32 = arith.constant 0 : i32
    %c0_i32_0 = arith.constant 0 : i32
    %c0_i32_1 = arith.constant 0 : i32
    %c0_i32_2 = arith.constant 0 : i32
    return %c0_i32, %c0_i32_0, %c0_i32_1 : i32, i32, i32
  }
  func.func @transform_14(%arg0: i32) -> (i32, i32, i32) {
    %c0_i32 = arith.constant 0 : i32
    %c0_i32_0 = arith.constant 0 : i32
    %c0_i32_1 = arith.constant 0 : i32
    %c0_i32_2 = arith.constant 0 : i32
    return %c0_i32, %c0_i32_0, %c0_i32_1 : i32, i32, i32
  }
  func.func @transform_15(%arg0: i32) -> (i32, i32, i32) {
    %c0_i32 = arith.constant 0 : i32
    %c0_i32_0 = arith.constant 0 : i32
    %c0_i32_1 = arith.constant 0 : i32
    %c0_i32_2 = arith.constant 0 : i32
    return %c0_i32, %c0_i32_0, %c0_i32_1 : i32, i32, i32
  }
  func.func @transform_16(%arg0: i32) -> (i32, i32, i32) {
    %c0_i32 = arith.constant 0 : i32
    %c0_i32_0 = arith.constant 0 : i32
    %c0_i32_1 = arith.constant 0 : i32
    %c0_i32_2 = arith.constant 0 : i32
    return %c0_i32, %c0_i32_0, %c0_i32_1 : i32, i32, i32
  }
  func.func @transform_17(%arg0: i32) -> (i32, i32, i32) {
    %c0_i32 = arith.constant 0 : i32
    %c0_i32_0 = arith.constant 0 : i32
    %c0_i32_1 = arith.constant 0 : i32
    %c0_i32_2 = arith.constant 0 : i32
    return %c0_i32, %c0_i32_0, %c0_i32_1 : i32, i32, i32
  }
  func.func @transform_18(%arg0: i32) -> (i32, i32, i32, i32) {
    %c0_i32 = arith.constant 0 : i32
    %c0_i32_0 = arith.constant 0 : i32
    %c0_i32_1 = arith.constant 0 : i32
    %c0_i32_2 = arith.constant 0 : i32
    return %c0_i32, %arg0, %c0_i32_0, %c0_i32_1 : i32, i32, i32, i32
  }
}

</mosaic_0001>

<llo_original>
// kernel: tpu_custom_call.1
$region0: #{tpu_custom_call.1}
  #allocation0 [shape = 'u32[]', space=smem, size = 0x4, offset = 0x4, fixed_abs, tag = 'smem constant byte address 0x4 - core index']
  #allocation1 [shape = 'u32[144,128]{1,0:T(1,128)}', space=vmem, size = 0x12000, scoped, tag = 'internal scratch']
  %s0 = inlined_call_operand.vmem [shape: f32[2,8,128], index: 0, kind: input, shape index: {}]
  %s1 = inlined_call_operand.vmem [shape: f32[2,1,128], index: 1, kind: input, shape index: {}]
  %s2 = inlined_call_operand.vmem [shape: f32[16,8], index: 2, kind: input, shape index: {}]
  %s3 = inlined_call_operand.vmem [shape: f32[16,1], index: 3, kind: input, shape index: {}]
  %s4 = inlined_call_operand.vmem [shape: f32[3,48,16], index: 4, kind: input, shape index: {}]
  %s5 = inlined_call_operand.vmem [shape: f32[3,16,1], index: 5, kind: input, shape index: {}]
  %s6 = inlined_call_operand.vmem [shape: f32[3,16,16], index: 6, kind: input, shape index: {}]
  %s7 = inlined_call_operand.vmem [shape: f32[3,16,1], index: 7, kind: input, shape index: {}]
  %s8 = inlined_call_operand.vmem [shape: f32[6,16], index: 8, kind: input, shape index: {}]
  %s9 = inlined_call_operand.vmem [shape: f32[6,1], index: 9, kind: input, shape index: {}]
  %s10 = inlined_call_operand.vmem [shape: f32[2,16,6], index: 10, kind: input, shape index: {}]
  %s11 = inlined_call_operand.vmem [shape: f32[2,16,1], index: 11, kind: input, shape index: {}]
  %s12 = inlined_call_operand.vmem [shape: f32[6,48,16], index: 12, kind: input, shape index: {}]
  %s13 = inlined_call_operand.vmem [shape: f32[6,16,1], index: 13, kind: input, shape index: {}]
  %s14 = inlined_call_operand.vmem [shape: f32[6,16,16], index: 14, kind: input, shape index: {}]
  %s15 = inlined_call_operand.vmem [shape: f32[6,16,1], index: 15, kind: input, shape index: {}]
  %s16 = inlined_call_operand.vmem [shape: f32[2,6,16], index: 16, kind: input, shape index: {}]
  %s17 = inlined_call_operand.vmem [shape: f32[2,6,1], index: 17, kind: input, shape index: {}]
  %s18 = inlined_call_operand.vmem [shape: f32[3,2,6,128], index: 18, kind: output, shape index: {}]
  %s19 = sld [smem:[#allocation0]]
  $region139: #{tpu_custom_call.1} parent=0
    _
  %s21 = ssub.s32 1, %s19
  %s22 = scalar_select 0, %s21, %s19
  $region1: #{tpu_custom_call.1} parent=0
    #allocation2 [shape = 'u8[24576]{0}', space=vmem, size = 0x6000, scoped, tag = 'output window, operand 0']
    loop: start=0, step=1, limit=4
    $region2: #{tpu_custom_call.1} parent=1 // loop_pre_header
      _
    $region3: #{tpu_custom_call.1} parent=1 // loop_header
      %s24 = sphi 0, %s28
      %p25 = scmp.ge.s32.totalorder %s24, 4
      %s34 = sphi 0, %s36
      %s37 = sphi 0, %s34
      %s38 = sphi 0, %s37
      %s54 = sphi 0, %s38
      %s60 = sphi 0, %s62
      %s63 = sphi 0, %s60
      %s64 = sphi 0, %s63
      %s80 = sphi 0, %s64
      %s84 = sphi 0, %s84
      %s86 = sphi 0, %s84
      %s87 = sphi 0, %s86
      %s101 = sphi 0, %s87
      %s105 = sphi 0, %s105
      %s107 = sphi 0, %s105
      %s108 = sphi 0, %s107
      %s122 = sphi 0, %s108
      %s126 = sphi 0, %s126
      %s128 = sphi 0, %s126
      %s129 = sphi 0, %s128
      %s143 = sphi 0, %s129
      %s147 = sphi 0, %s147
      %s149 = sphi 0, %s147
      %s150 = sphi 0, %s149
      %s164 = sphi 0, %s150
      %s168 = sphi 0, %s168
      %s170 = sphi 0, %s168
      %s171 = sphi 0, %s170
      %s185 = sphi 0, %s171
      %s189 = sphi 0, %s189
      %s191 = sphi 0, %s189
      %s192 = sphi 0, %s191
      %s206 = sphi 0, %s192
      %s210 = sphi 0, %s210
      %s212 = sphi 0, %s210
      %s213 = sphi 0, %s212
      %s227 = sphi 0, %s213
      %s231 = sphi 0, %s231
      %s233 = sphi 0, %s231
      %s234 = sphi 0, %s233
      %s248 = sphi 0, %s234
      %s252 = sphi 0, %s252
      %s254 = sphi 0, %s252
      %s255 = sphi 0, %s254
      %s269 = sphi 0, %s255
      %s273 = sphi 0, %s273
      %s275 = sphi 0, %s273
      %s276 = sphi 0, %s275
      %s290 = sphi 0, %s276
      %s294 = sphi 0, %s294
      %s296 = sphi 0, %s294
      %s297 = sphi 0, %s296
      %s311 = sphi 0, %s297
      %s315 = sphi 0, %s315
      %s317 = sphi 0, %s315
      %s318 = sphi 0, %s317
      %s332 = sphi 0, %s318
      %s336 = sphi 0, %s336
      %s338 = sphi 0, %s336
      %s339 = sphi 0, %s338
      %s353 = sphi 0, %s339
      %s357 = sphi 0, %s357
      %s359 = sphi 0, %s357
      %s360 = sphi 0, %s359
      %s374 = sphi 0, %s360
      %s378 = sphi 0, %s378
      %s380 = sphi 0, %s378
      %s381 = sphi 0, %s380
      %s395 = sphi 0, %s381
      %s399 = sphi 0, %s399
      %s401 = sphi 0, %s399
      %s402 = sphi 0, %s401
      %s416 = sphi 0, %s402
      %s422 = sphi 0, %s424
      %s425 = sphi 0, %s422
      %s426 = sphi 0, %s425
      %s442 = sphi 0, %s426
    $region4: #{tpu_custom_call.1} parent=1 // loop_header_branch
      %27 = sbr.rel (%p25) target = $region8
    $region5: #{tpu_custom_call.1} parent=1 // loop_body
      %s29 = ssub.s32 %s24, 1
      %s30 = ssub.s32 %s24, 2
      %s31 = sadd.s32 %s24, 1
      %s32 = ssub.s32 %s24, %s31
      %p33 = scmp.eq.s32.totalorder %s32, 0
      %s35 = sadd.s32 %s34, 1
      %s36 = scalar_select %p33, %s34, %s35
      %p39 = pneg %p33
      %p40 = scmp.eq.s32.totalorder %s24, 1
      %p41 = por %p39, %p40
      %p42 = scmp.ne.s32.totalorder %s34, %s37
      %p43 = scmp.eq.s32.totalorder %s24, 0
      %p44 = por %p42, %p43
      %p45 = scmp.ne.s32.totalorder %s34, %s37
      %p46 = scmp.eq.s32.totalorder %s29, 1
      %p47 = por %p45, %p46
      %p48 = scmp.ne.s32.totalorder %s37, %s38
      %p49 = scmp.eq.s32.totalorder %s29, 0
      %p50 = por %p48, %p49
      %p51 = scmp.ne.s32.totalorder %s37, %s38
      %p52 = scmp.eq.s32.totalorder %s30, 1
      %p53 = por %p51, %p52
      %p55 = scmp.ne.s32.totalorder %s38, %s54
      %p56 = scmp.eq.s32.totalorder %s30, 0
      %p57 = por %p55, %p56
      %s58 = ssub.s32 %s24, %s31
      %p59 = scmp.eq.s32.totalorder %s58, 0
      %s61 = sadd.s32 %s60, 1
      %s62 = scalar_select %p59, %s60, %s61
      %p65 = pneg %p59
      %p66 = scmp.eq.s32.totalorder %s24, 1
      %p67 = por %p65, %p66
      %p68 = scmp.ne.s32.totalorder %s60, %s63
      %p69 = scmp.eq.s32.totalorder %s24, 0
      %p70 = por %p68, %p69
      %p71 = scmp.ne.s32.totalorder %s60, %s63
      %p72 = scmp.eq.s32.totalorder %s29, 1
      %p73 = por %p71, %p72
      %p74 = scmp.ne.s32.totalorder %s63, %s64
      %p75 = scmp.eq.s32.totalorder %s29, 0
      %p76 = por %p74, %p75
      %p77 = scmp.ne.s32.totalorder %s63, %s64
      %p78 = scmp.eq.s32.totalorder %s30, 1
      %p79 = por %p77, %p78
      %p81 = scmp.ne.s32.totalorder %s64, %s80
      %p82 = scmp.eq.s32.totalorder %s30, 0
      %p83 = por %p81, %p82
      %s85 = sadd.s32 %s84, 1
      %p88 = scmp.eq.s32.totalorder %s24, 1
      %p89 = scmp.ne.s32.totalorder %s84, %s86
      %p90 = scmp.eq.s32.totalorder %s24, 0
      %p91 = por %p89, %p90
      %p92 = scmp.ne.s32.totalorder %s84, %s86
      %p93 = scmp.eq.s32.totalorder %s29, 1
      %p94 = por %p92, %p93
      %p95 = scmp.ne.s32.totalorder %s86, %s87
      %p96 = scmp.eq.s32.totalorder %s29, 0
      %p97 = por %p95, %p96
      %p98 = scmp.ne.s32.totalorder %s86, %s87
      %p99 = scmp.eq.s32.totalorder %s30, 1
      %p100 = por %p98, %p99
      %p102 = scmp.ne.s32.totalorder %s87, %s101
      %p103 = scmp.eq.s32.totalorder %s30, 0
      %p104 = por %p102, %p103
      %s106 = sadd.s32 %s105, 1
      %p109 = scmp.eq.s32.totalorder %s24, 1
      %p110 = scmp.ne.s32.totalorder %s105, %s107
      %p111 = scmp.eq.s32.totalorder %s24, 0
      %p112 = por %p110, %p111
      %p113 = scmp.ne.s32.totalorder %s105, %s107
      %p114 = scmp.eq.s32.totalorder %s29, 1
      %p115 = por %p113, %p114
      %p116 = scmp.ne.s32.totalorder %s107, %s108
      %p117 = scmp.eq.s32.totalorder %s29, 0
      %p118 = por %p116, %p117
      %p119 = scmp.ne.s32.totalorder %s107, %s108
      %p120 = scmp.eq.s32.totalorder %s30, 1
      %p121 = por %p119, %p120
      %p123 = scmp.ne.s32.totalorder %s108, %s122
      %p124 = scmp.eq.s32.totalorder %s30, 0
      %p125 = por %p123, %p124
      %s127 = sadd.s32 %s126, 1
      %p130 = scmp.eq.s32.totalorder %s24, 1
      %p131 = scmp.ne.s32.totalorder %s126, %s128
      %p132 = scmp.eq.s32.totalorder %s24, 0
      %p133 = por %p131, %p132
      %p134 = scmp.ne.s32.totalorder %s126, %s128
      %p135 = scmp.eq.s32.totalorder %s29, 1
      %p136 = por %p134, %p135
      %p137 = scmp.ne.s32.totalorder %s128, %s129
      %p138 = scmp.eq.s32.totalorder %s29, 0
      %p139 = por %p137, %p138
      %p140 = scmp.ne.s32.totalorder %s128, %s129
      %p141 = scmp.eq.s32.totalorder %s30, 1
      %p142 = por %p140, %p141
      %p144 = scmp.ne.s32.totalorder %s129, %s143
      %p145 = scmp.eq.s32.totalorder %s30, 0
      %p146 = por %p144, %p145
      %s148 = sadd.s32 %s147, 1
      %p151 = scmp.eq.s32.totalorder %s24, 1
      %p152 = scmp.ne.s32.totalorder %s147, %s149
      %p153 = scmp.eq.s32.totalorder %s24, 0
      %p154 = por %p152, %p153
      %p155 = scmp.ne.s32.totalorder %s147, %s149
      %p156 = scmp.eq.s32.totalorder %s29, 1
      %p157 = por %p155, %p156
      %p158 = scmp.ne.s32.totalorder %s149, %s150
      %p159 = scmp.eq.s32.totalorder %s29, 0
      %p160 = por %p158, %p159
      %p161 = scmp.ne.s32.totalorder %s149, %s150
      %p162 = scmp.eq.s32.totalorder %s30, 1
      %p163 = por %p161, %p162
      %p165 = scmp.ne.s32.totalorder %s150, %s164
      %p166 = scmp.eq.s32.totalorder %s30, 0
      %p167 = por %p165, %p166
      %s169 = sadd.s32 %s168, 1
      %p172 = scmp.eq.s32.totalorder %s24, 1
      %p173 = scmp.ne.s32.totalorder %s168, %s170
      %p174 = scmp.eq.s32.totalorder %s24, 0
      %p175 = por %p173, %p174
      %p176 = scmp.ne.s32.totalorder %s168, %s170
      %p177 = scmp.eq.s32.totalorder %s29, 1
      %p178 = por %p176, %p177
      %p179 = scmp.ne.s32.totalorder %s170, %s171
      %p180 = scmp.eq.s32.totalorder %s29, 0
      %p181 = por %p179, %p180
      %p182 = scmp.ne.s32.totalorder %s170, %s171
      %p183 = scmp.eq.s32.totalorder %s30, 1
      %p184 = por %p182, %p183
      %p186 = scmp.ne.s32.totalorder %s171, %s185
      %p187 = scmp.eq.s32.totalorder %s30, 0
      %p188 = por %p186, %p187
      %s190 = sadd.s32 %s189, 1
      %p193 = scmp.eq.s32.totalorder %s24, 1
      %p194 = scmp.ne.s32.totalorder %s189, %s191
      %p195 = scmp.eq.s32.totalorder %s24, 0
      %p196 = por %p194, %p195
      %p197 = scmp.ne.s32.totalorder %s189, %s191
      %p198 = scmp.eq.s32.totalorder %s29, 1
      %p199 = por %p197, %p198
      %p200 = scmp.ne.s32.totalorder %s191, %s192
      %p201 = scmp.eq.s32.totalorder %s29, 0
      %p202 = por %p200, %p201
      %p203 = scmp.ne.s32.totalorder %s191, %s192
      %p204 = scmp.eq.s32.totalorder %s30, 1
      %p205 = por %p203, %p204
      %p207 = scmp.ne.s32.totalorder %s192, %s206
      %p208 = scmp.eq.s32.totalorder %s30, 0
      %p209 = por %p207, %p208
      %s211 = sadd.s32 %s210, 1
      %p214 = scmp.eq.s32.totalorder %s24, 1
      %p215 = scmp.ne.s32.totalorder %s210, %s212
      %p216 = scmp.eq.s32.totalorder %s24, 0
      %p217 = por %p215, %p216
      %p218 = scmp.ne.s32.totalorder %s210, %s212
      %p219 = scmp.eq.s32.totalorder %s29, 1
      %p220 = por %p218, %p219
      %p221 = scmp.ne.s32.totalorder %s212, %s213
      %p222 = scmp.eq.s32.totalorder %s29, 0
      %p223 = por %p221, %p222
      %p224 = scmp.ne.s32.totalorder %s212, %s213
      %p225 = scmp.eq.s32.totalorder %s30, 1
      %p226 = por %p224, %p225
      %p228 = scmp.ne.s32.totalorder %s213, %s227
      %p229 = scmp.eq.s32.totalorder %s30, 0
      %p230 = por %p228, %p229
      %s232 = sadd.s32 %s231, 1
      %p235 = scmp.eq.s32.totalorder %s24, 1
      %p236 = scmp.ne.s32.totalorder %s231, %s233
      %p237 = scmp.eq.s32.totalorder %s24, 0
      %p238 = por %p236, %p237
      %p239 = scmp.ne.s32.totalorder %s231, %s233
      %p240 = scmp.eq.s32.totalorder %s29, 1
      %p241 = por %p239, %p240
      %p242 = scmp.ne.s32.totalorder %s233, %s234
      %p243 = scmp.eq.s32.totalorder %s29, 0
      %p244 = por %p242, %p243
      %p245 = scmp.ne.s32.totalorder %s233, %s234
      %p246 = scmp.eq.s32.totalorder %s30, 1
      %p247 = por %p245, %p246
      %p249 = scmp.ne.s32.totalorder %s234, %s248
      %p250 = scmp.eq.s32.totalorder %s30, 0
      %p251 = por %p249, %p250
      %s253 = sadd.s32 %s252, 1
      %p256 = scmp.eq.s32.totalorder %s24, 1
      %p257 = scmp.ne.s32.totalorder %s252, %s254
      %p258 = scmp.eq.s32.totalorder %s24, 0
      %p259 = por %p257, %p258
      %p260 = scmp.ne.s32.totalorder %s252, %s254
      %p261 = scmp.eq.s32.totalorder %s29, 1
      %p262 = por %p260, %p261
      %p263 = scmp.ne.s32.totalorder %s254, %s255
      %p264 = scmp.eq.s32.totalorder %s29, 0
      %p265 = por %p263, %p264
      %p266 = scmp.ne.s32.totalorder %s254, %s255
      %p267 = scmp.eq.s32.totalorder %s30, 1
      %p268 = por %p266, %p267
      %p270 = scmp.ne.s32.totalorder %s255, %s269
      %p271 = scmp.eq.s32.totalorder %s30, 0
      %p272 = por %p270, %p271
      %s274 = sadd.s32 %s273, 1
      %p277 = scmp.eq.s32.totalorder %s24, 1
      %p278 = scmp.ne.s32.totalorder %s273, %s275
      %p279 = scmp.eq.s32.totalorder %s24, 0
      %p280 = por %p278, %p279
      %p281 = scmp.ne.s32.totalorder %s273, %s275
      %p282 = scmp.eq.s32.totalorder %s29, 1
      %p283 = por %p281, %p282
      %p284 = scmp.ne.s32.totalorder %s275, %s276
      %p285 = scmp.eq.s32.totalorder %s29, 0
      %p286 = por %p284, %p285
      %p287 = scmp.ne.s32.totalorder %s275, %s276
      %p288 = scmp.eq.s32.totalorder %s30, 1
      %p289 = por %p287, %p288
      %p291 = scmp.ne.s32.totalorder %s276, %s290
      %p292 = scmp.eq.s32.totalorder %s30, 0
      %p293 = por %p291, %p292
      %s295 = sadd.s32 %s294, 1
      %p298 = scmp.eq.s32.totalorder %s24, 1
      %p299 = scmp.ne.s32.totalorder %s294, %s296
      %p300 = scmp.eq.s32.totalorder %s24, 0
      %p301 = por %p299, %p300
      %p302 = scmp.ne.s32.totalorder %s294, %s296
      %p303 = scmp.eq.s32.totalorder %s29, 1
      %p304 = por %p302, %p303
      %p305 = scmp.ne.s32.totalorder %s296, %s297
      %p306 = scmp.eq.s32.totalorder %s29, 0
      %p307 = por %p305, %p306
      %p308 = scmp.ne.s32.totalorder %s296, %s297
      %p309 = scmp.eq.s32.totalorder %s30, 1
      %p310 = por %p308, %p309
      %p312 = scmp.ne.s32.totalorder %s297, %s311
      %p313 = scmp.eq.s32.totalorder %s30, 0
      %p314 = por %p312, %p313
      %s316 = sadd.s32 %s315, 1
      %p319 = scmp.eq.s32.totalorder %s24, 1
      %p320 = scmp.ne.s32.totalorder %s315, %s317
      %p321 = scmp.eq.s32.totalorder %s24, 0
      %p322 = por %p320, %p321
      %p323 = scmp.ne.s32.totalorder %s315, %s317
      %p324 = scmp.eq.s32.totalorder %s29, 1
      %p325 = por %p323, %p324
      %p326 = scmp.ne.s32.totalorder %s317, %s318
      %p327 = scmp.eq.s32.totalorder %s29, 0
      %p328 = por %p326, %p327
      %p329 = scmp.ne.s32.totalorder %s317, %s318
      %p330 = scmp.eq.s32.totalorder %s30, 1
      %p331 = por %p329, %p330
      %p333 = scmp.ne.s32.totalorder %s318, %s332
      %p334 = scmp.eq.s32.totalorder %s30, 0
      %p335 = por %p333, %p334
      %s337 = sadd.s32 %s336, 1
      %p340 = scmp.eq.s32.totalorder %s24, 1
      %p341 = scmp.ne.s32.totalorder %s336, %s338
      %p342 = scmp.eq.s32.totalorder %s24, 0
      %p343 = por %p341, %p342
      %p344 = scmp.ne.s32.totalorder %s336, %s338
      %p345 = scmp.eq.s32.totalorder %s29, 1
      %p346 = por %p344, %p345
      %p347 = scmp.ne.s32.totalorder %s338, %s339
      %p348 = scmp.eq.s32.totalorder %s29, 0
      %p349 = por %p347, %p348
      %p350 = scmp.ne.s32.totalorder %s338, %s339
      %p351 = scmp.eq.s32.totalorder %s30, 1
      %p352 = por %p350, %p351
      %p354 = scmp.ne.s32.totalorder %s339, %s353
      %p355 = scmp.eq.s32.totalorder %s30, 0
      %p356 = por %p354, %p355
      %s358 = sadd.s32 %s357, 1
      %p361 = scmp.eq.s32.totalorder %s24, 1
      %p362 = scmp.ne.s32.totalorder %s357, %s359
      %p363 = scmp.eq.s32.totalorder %s24, 0
      %p364 = por %p362, %p363
      %p365 = scmp.ne.s32.totalorder %s357, %s359
      %p366 = scmp.eq.s32.totalorder %s29, 1
      %p367 = por %p365, %p366
      %p368 = scmp.ne.s32.totalorder %s359, %s360
      %p369 = scmp.eq.s32.totalorder %s29, 0
      %p370 = por %p368, %p369
      %p371 = scmp.ne.s32.totalorder %s359, %s360
      %p372 = scmp.eq.s32.totalorder %s30, 1
      %p373 = por %p371, %p372
      %p375 = scmp.ne.s32.totalorder %s360, %s374
      %p376 = scmp.eq.s32.totalorder %s30, 0
      %p377 = por %p375, %p376
      %s379 = sadd.s32 %s378, 1
      %p382 = scmp.eq.s32.totalorder %s24, 1
      %p383 = scmp.ne.s32.totalorder %s378, %s380
      %p384 = scmp.eq.s32.totalorder %s24, 0
      %p385 = por %p383, %p384
      %p386 = scmp.ne.s32.totalorder %s378, %s380
      %p387 = scmp.eq.s32.totalorder %s29, 1
      %p388 = por %p386, %p387
      %p389 = scmp.ne.s32.totalorder %s380, %s381
      %p390 = scmp.eq.s32.totalorder %s29, 0
      %p391 = por %p389, %p390
      %p392 = scmp.ne.s32.totalorder %s380, %s381
      %p393 = scmp.eq.s32.totalorder %s30, 1
      %p394 = por %p392, %p393
      %p396 = scmp.ne.s32.totalorder %s381, %s395
      %p397 = scmp.eq.s32.totalorder %s30, 0
      %p398 = por %p396, %p397
      %s400 = sadd.s32 %s399, 1
      %p403 = scmp.eq.s32.totalorder %s24, 1
      %p404 = scmp.ne.s32.totalorder %s399, %s401
      %p405 = scmp.eq.s32.totalorder %s24, 0
      %p406 = por %p404, %p405
      %p407 = scmp.ne.s32.totalorder %s399, %s401
      %p408 = scmp.eq.s32.totalorder %s29, 1
      %p409 = por %p407, %p408
      %p410 = scmp.ne.s32.totalorder %s401, %s402
      %p411 = scmp.eq.s32.totalorder %s29, 0
      %p412 = por %p410, %p411
      %p413 = scmp.ne.s32.totalorder %s401, %s402
      %p414 = scmp.eq.s32.totalorder %s30, 1
      %p415 = por %p413, %p414
      %p417 = scmp.ne.s32.totalorder %s402, %s416
      %p418 = scmp.eq.s32.totalorder %s30, 0
      %p419 = por %p417, %p418
      %s420 = ssub.s32 %s24, %s31
      %p421 = scmp.eq.s32.totalorder %s420, 0
      %s423 = sadd.s32 %s422, 1
      %s424 = scalar_select %p421, %s422, %s423
      %p427 = pneg %p421
      %p428 = scmp.eq.s32.totalorder %s24, 1
      %p429 = por %p427, %p428
      %p430 = scmp.ne.s32.totalorder %s422, %s425
      %p431 = scmp.eq.s32.totalorder %s24, 0
      %p432 = por %p430, %p431
      %p433 = scmp.ne.s32.totalorder %s422, %s425
      %p434 = scmp.eq.s32.totalorder %s29, 1
      %p435 = por %p433, %p434
      %p436 = scmp.ne.s32.totalorder %s425, %s426
      %p437 = scmp.eq.s32.totalorder %s29, 0
      %p438 = por %p436, %p437
      %p439 = scmp.ne.s32.totalorder %s425, %s426
      %p440 = scmp.eq.s32.totalorder %s30, 1
      %p441 = por %p439, %p440
      %p443 = scmp.ne.s32.totalorder %s426, %s442
      %p444 = scmp.eq.s32.totalorder %s30, 0
      %p445 = por %p443, %p444
      %p446 = scmp.le.s32.totalorder 1, %s24
      %p447 = scmp.lt.s32.totalorder %s24, 3
      %p448 = pnand %p446, %p447
      %p449 = pneg %p448
      // Predicated region
      $region9: #{tpu_custom_call.1} parent=5 // pred_check
        _
      $region10: #{tpu_custom_call.1} parent=5 // pred_check_branch
        %451 = sbr.rel (%p448) target = $region12
      $region11: #{tpu_custom_call.1} parent=5 // pred_region
        %s452 = ssub.s32 %s24, 1
        // Predicated region
        $region13: #{tpu_custom_call.1} parent=11 // pred_check
          %p453 = pneg %p97
        $region14: #{tpu_custom_call.1} parent=11 // pred_check_branch
          %455 = sbr.rel (%p453) target = $region16
        $region15: #{tpu_custom_call.1} parent=11 // pred_region
          _
        $region16: #{tpu_custom_call.1} parent=11 // pred_fallthru
          _
        // Predicated region
        $region17: #{tpu_custom_call.1} parent=11 // pred_check
          %p456 = pneg %p118
        $region18: #{tpu_custom_call.1} parent=11 // pred_check_branch
          %458 = sbr.rel (%p456) target = $region20
        $region19: #{tpu_custom_call.1} parent=11 // pred_region
          _
        $region20: #{tpu_custom_call.1} parent=11 // pred_fallthru
          _
        // Predicated region
        $region21: #{tpu_custom_call.1} parent=11 // pred_check
          %p459 = pneg %p139
        $region22: #{tpu_custom_call.1} parent=11 // pred_check_branch
          %461 = sbr.rel (%p459) target = $region24
        $region23: #{tpu_custom_call.1} parent=11 // pred_region
          _
        $region24: #{tpu_custom_call.1} parent=11 // pred_fallthru
          _
        // Predicated region
        $region25: #{tpu_custom_call.1} parent=11 // pred_check
          %p462 = pneg %p160
        $region26: #{tpu_custom_call.1} parent=11 // pred_check_branch
          %464 = sbr.rel (%p462) target = $region28
        $region27: #{tpu_custom_call.1} parent=11 // pred_region
          _
        $region28: #{tpu_custom_call.1} parent=11 // pred_fallthru
          _
        // Predicated region
        $region29: #{tpu_custom_call.1} parent=11 // pred_check
          %p465 = pneg %p181
        $region30: #{tpu_custom_call.1} parent=11 // pred_check_branch
          %467 = sbr.rel (%p465) target = $region32
        $region31: #{tpu_custom_call.1} parent=11 // pred_region
          _
        $region32: #{tpu_custom_call.1} parent=11 // pred_fallthru
          _
        // Predicated region
        $region33: #{tpu_custom_call.1} parent=11 // pred_check
          %p468 = pneg %p202
        $region34: #{tpu_custom_call.1} parent=11 // pred_check_branch
          %470 = sbr.rel (%p468) target = $region36
        $region35: #{tpu_custom_call.1} parent=11 // pred_region
          _
        $region36: #{tpu_custom_call.1} parent=11 // pred_fallthru
          _
        // Predicated region
        $region37: #{tpu_custom_call.1} parent=11 // pred_check
          %p471 = pneg %p223
        $region38: #{tpu_custom_call.1} parent=11 // pred_check_branch
          %473 = sbr.rel (%p471) target = $region40
        $region39: #{tpu_custom_call.1} parent=11 // pred_region
          _
        $region40: #{tpu_custom_call.1} parent=11 // pred_fallthru
          _
        // Predicated region
        $region41: #{tpu_custom_call.1} parent=11 // pred_check
          %p474 = pneg %p244
        $region42: #{tpu_custom_call.1} parent=11 // pred_check_branch
          %476 = sbr.rel (%p474) target = $region44
        $region43: #{tpu_custom_call.1} parent=11 // pred_region
          _
        $region44: #{tpu_custom_call.1} parent=11 // pred_fallthru
          _
        // Predicated region
        $region45: #{tpu_custom_call.1} parent=11 // pred_check
          %p477 = pneg %p265
        $region46: #{tpu_custom_call.1} parent=11 // pred_check_branch
          %479 = sbr.rel (%p477) target = $region48
        $region47: #{tpu_custom_call.1} parent=11 // pred_region
          _
        $region48: #{tpu_custom_call.1} parent=11 // pred_fallthru
          _
        // Predicated region
        $region49: #{tpu_custom_call.1} parent=11 // pred_check
          %p480 = pneg %p286
        $region50: #{tpu_custom_call.1} parent=11 // pred_check_branch
          %482 = sbr.rel (%p480) target = $region52
        $region51: #{tpu_custom_call.1} parent=11 // pred_region
          _
        $region52: #{tpu_custom_call.1} parent=11 // pred_fallthru
          _
        // Predicated region
        $region53: #{tpu_custom_call.1} parent=11 // pred_check
          %p483 = pneg %p307
        $region54: #{tpu_custom_call.1} parent=11 // pred_check_branch
          %485 = sbr.rel (%p483) target = $region56
        $region55: #{tpu_custom_call.1} parent=11 // pred_region
          _
        $region56: #{tpu_custom_call.1} parent=11 // pred_fallthru
          _
        // Predicated region
        $region57: #{tpu_custom_call.1} parent=11 // pred_check
          %p486 = pneg %p328
        $region58: #{tpu_custom_call.1} parent=11 // pred_check_branch
          %488 = sbr.rel (%p486) target = $region60
        $region59: #{tpu_custom_call.1} parent=11 // pred_region
          _
        $region60: #{tpu_custom_call.1} parent=11 // pred_fallthru
          _
        // Predicated region
        $region61: #{tpu_custom_call.1} parent=11 // pred_check
          %p489 = pneg %p349
        $region62: #{tpu_custom_call.1} parent=11 // pred_check_branch
          %491 = sbr.rel (%p489) target = $region64
        $region63: #{tpu_custom_call.1} parent=11 // pred_region
          _
        $region64: #{tpu_custom_call.1} parent=11 // pred_fallthru
          _
        // Predicated region
        $region65: #{tpu_custom_call.1} parent=11 // pred_check
          %p492 = pneg %p370
        $region66: #{tpu_custom_call.1} parent=11 // pred_check_branch
          %494 = sbr.rel (%p492) target = $region68
        $region67: #{tpu_custom_call.1} parent=11 // pred_region
          _
        $region68: #{tpu_custom_call.1} parent=11 // pred_fallthru
          _
        // Predicated region
        $region69: #{tpu_custom_call.1} parent=11 // pred_check
          %p495 = pneg %p391
        $region70: #{tpu_custom_call.1} parent=11 // pred_check_branch
          %497 = sbr.rel (%p495) target = $region72
        $region71: #{tpu_custom_call.1} parent=11 // pred_region
          _
        $region72: #{tpu_custom_call.1} parent=11 // pred_fallthru
          _
        // Predicated region
        $region73: #{tpu_custom_call.1} parent=11 // pred_check
          %p498 = pneg %p412
        $region74: #{tpu_custom_call.1} parent=11 // pred_check_branch
          %500 = sbr.rel (%p498) target = $region76
        $region75: #{tpu_custom_call.1} parent=11 // pred_region
          _
        $region76: #{tpu_custom_call.1} parent=11 // pred_fallthru
          _
      $region12: #{tpu_custom_call.1} parent=5 // pred_fallthru
        _
      %p501 = scmp.lt.s32.totalorder %s24, 2
      // Predicated region
      $region77: #{tpu_custom_call.1} parent=5 // pred_check
        %p502 = pneg %p501
      $region78: #{tpu_custom_call.1} parent=5 // pred_check_branch
        %504 = sbr.rel (%p502) target = $region80
      $region79: #{tpu_custom_call.1} parent=5 // pred_region
        // Predicated region
        $region81: #{tpu_custom_call.1} parent=79 // pred_check
          %p505 = pneg %p44
        $region82: #{tpu_custom_call.1} parent=79 // pred_check_branch
          %507 = sbr.rel (%p505) target = $region84
        $region83: #{tpu_custom_call.1} parent=79 // pred_region
          %p508 = scmp.lt.s32.totalorder %s24, 1
          %s509 = scalar_select %p508, %s24, 1
          %s510 = smul.addr %s509, 8
          %s511 = scalar_lea.vmem %s0, %s510
        $region84: #{tpu_custom_call.1} parent=79 // pred_fallthru
          _
        // Predicated region
        $region85: #{tpu_custom_call.1} parent=79 // pred_check
          %p512 = pneg %p70
        $region86: #{tpu_custom_call.1} parent=79 // pred_check_branch
          %514 = sbr.rel (%p512) target = $region88
        $region87: #{tpu_custom_call.1} parent=79 // pred_region
          %p515 = scmp.lt.s32.totalorder %s24, 1
          %s516 = scalar_select %p515, %s24, 1
          %s517 = scalar_lea.vmem %s1, %s516
        $region88: #{tpu_custom_call.1} parent=79 // pred_fallthru
          _
      $region80: #{tpu_custom_call.1} parent=5 // pred_fallthru
        _
      %p518 = scmp.le.s32.totalorder 1, %s24
      %p519 = scmp.lt.s32.totalorder %s24, 3
      %p520 = pnand %p518, %p519
      %p521 = pneg %p520
      // Predicated region
      $region89: #{tpu_custom_call.1} parent=5 // pred_check
        _
      $region90: #{tpu_custom_call.1} parent=5 // pred_check_branch
        %523 = sbr.rel (%p520) target = $region92
      $region91: #{tpu_custom_call.1} parent=5 // pred_region
        %s524 = ssub.s32 %s24, 1
        %p525 = scmp.lt.s32.totalorder %s29, 1
        %s526 = scalar_select %p525, %s29, 1
        %s527 = smul.addr %s526, 8
        %s528 = scalar_lea.vmem %s0, %s527
        %p529 = pneg %p50
        %p530 = pneg %p47
        %p531 = scmp.lt.s32.totalorder %s29, 1
        %s532 = scalar_select %p531, %s29, 1
        %s533 = scalar_lea.vmem %s1, %s532
        %p534 = pneg %p76
        %p535 = pneg %p73
        %p536 = pneg %p97
        %p537 = pneg %p94
        %p538 = pneg %p118
        %p539 = pneg %p115
        %p540 = pneg %p139
        %p541 = pneg %p136
        %p542 = pneg %p160
        %p543 = pneg %p157
        %p544 = pneg %p181
        %p545 = pneg %p178
        %p546 = pneg %p202
        %p547 = pneg %p199
        %p548 = pneg %p223
        %p549 = pneg %p220
        %p550 = pneg %p244
        %p551 = pneg %p241
        %p552 = pneg %p265
        %p553 = pneg %p262
        %p554 = pneg %p286
        %p555 = pneg %p283
        %p556 = pneg %p307
        %p557 = pneg %p304
        %p558 = pneg %p328
        %p559 = pneg %p325
        %p560 = pneg %p349
        %p561 = pneg %p346
        %p562 = pneg %p370
        %p563 = pneg %p367
        %p564 = pneg %p391
        %p565 = pneg %p388
        %p566 = pneg %p412
        %p567 = pneg %p409
        %p568 = pneg %p438
        %p569 = pneg %p435
        %s570 = sand.u32 %s425, 1
        %s571 = sand.u32 %s425, 1
        %s572 = smul.addr %s571, 24
        %s573 = scalar_lea.vmem [#allocation2], %s572
        %p574 = scmp.lt.s32.totalorder %s29, 1
        %s575 = scalar_select %p574, %s29, 1
        %s576 = smul.addr %s575, 8
        %s577 = scalar_lea.vmem %s0, %s576
        %p578 = scmp.lt.s32.totalorder %s29, 1
        %s579 = scalar_select %p578, %s29, 1
        %s580 = scalar_lea.vmem %s1, %s579
        %v581 = vld [vmem:[%s577] sm:$0xff]
        %v582 = vld [vmem:[%s580] sm:$0x1]
        %v583 = vlaneseq
        %v584 = vand.u32 %v583, 127
        %vm585 = vcmp.ge.s32.totalorder %v584, 1
        %vm586 = vcmp.lt.s32.totalorder %v584, 127
        %vm587 = vcmp.ge.s32.totalorder %v584, 2
        %vm588 = vcmp.lt.s32.totalorder %v584, 126
        %vm589 = vcmp.ge.s32.totalorder %v584, 4
        %vm590 = vcmp.lt.s32.totalorder %v584, 124
        %v592 = vlaneseq
        %v593 = vshrl.u32 %v592, 7
        %v594 = vsub.s32 0, %v593
        %v595 = vrot.slane %v582, %v594
        %v597 = vld [vmem:[%s2] sm:$0xff]
        %v598 = vld [vmem:[%s2 + $0x8] sm:$0xff]
        %v599 = vld [vmem:[%s3] sm:$0xff]
        %v600 = vld [vmem:[%s3 + $0x8] sm:$0xff]
        %v601 = vld [vmem:[%s8] sm:$0x3f]
        %v602 = vld [vmem:[%s9] sm:$0x3f]
        %604 = vset.pattern.permute.xlu0 0
        %605 = vperm.xlu0 %604, %v599
        %v606 = vpop.permute.xlu0 %605
        %609 = vset.pattern.permute.xlu0 0
        %610 = vperm.xlu0 %609, %v600
        %v611 = vpop.permute.xlu0 %610
        %vm613 = vcmask 64512
        %v615 = vsel %vm613, %v597, 0
        %v618 = vsel %vm613, %v598, 0
        %620 = vmatprep.subr.mxu0 0.0
        %621 = vmatpush1.msra.mxu0 %v581
        %622 = vmatprep.subr.mxu0 0.0
        %623 = vmatpush1.msra.mxu0 0.0
        %624 = vmatprep.subr.mxu0 0.0
        %625 = vmatpush1.msra.mxu0 0.0
        %626 = vmatprep.subr.mxu0 0.0
        %627 = vmatpush1.msra.mxu0 0.0
        %628 = vmatprep.subr.mxu0 0.0
        %629 = vmatpush1.msra.mxu0 0.0
        %630 = vmatprep.subr.mxu0 0.0
        %631 = vmatpush1.msra.mxu0 0.0
        %632 = vmatprep.subr.mxu0 0.0
        %633 = vmatpush1.msra.mxu0 0.0
        %634 = vmatprep.subr.mxu0 0.0
        %635 = vmatpush1.msra.mxu0 0.0
        %636 = vmatprep.subr.mxu0 0.0
        %637 = vmatpush1.msra.mxu0 0.0
        %638 = vmatprep.subr.mxu0 0.0
        %639 = vmatpush1.msra.mxu0 0.0
        %640 = vmatprep.subr.mxu0 0.0
        %641 = vmatpush1.msra.mxu0 0.0
        %642 = vmatprep.subr.mxu0 0.0
        %643 = vmatpush1.msra.mxu0 0.0
        %644 = vmatprep.subr.mxu0 0.0
        %645 = vmatpush1.msra.mxu0 0.0
        %646 = vmatprep.subr.mxu0 0.0
        %647 = vmatpush1.msra.mxu0 0.0
        %648 = vmatprep.subr.mxu0 0.0
        %649 = vmatpush1.msra.mxu0 0.0
        %650 = vmatprep.subr.mxu0 0.0
        %651 = vmatpush1.msra.mxu0 0.0
        %652 = vmatprep.subr.mxu0 0.0
        %653 = vmatpush1.msra.mxu0 0.0
        %654 = vmatprep.subr.mxu0 0.0
        %655 = vmatpush1.msra.mxu0 0.0
        %656 = vmatprep.subr.mxu0 0.0
        %657 = vmatpush1.msra.mxu0 0.0
        %658 = vmatprep.subr.mxu0 0.0
        %659 = vmatpush1.msra.mxu0 0.0
        %660 = vmatprep.subr.mxu0 0.0
        %661 = vmatpush1.msra.mxu0 0.0
        %662 = vmatprep.subr.mxu0 0.0
        %663 = vmatpush1.msra.mxu0 0.0
        %664 = vmatprep.subr.mxu0 0.0
        %665 = vmatpush1.msra.mxu0 0.0
        %666 = vmatprep.subr.mxu0 0.0
        %667 = vmatpush1.msra.mxu0 0.0
        %668 = vmatprep.subr.mxu0 0.0
        %669 = vmatpush1.msra.mxu0 0.0
        %670 = vmatprep.subr.mxu0 0.0
        %671 = vmatpush1.msra.mxu0 0.0
        %672 = vmatprep.subr.mxu0 0.0
        %673 = vmatpush1.msra.mxu0 0.0
        %674 = vmatprep.subr.mxu0 0.0
        %675 = vmatpush1.msra.mxu0 0.0
        %676 = vmatprep.subr.mxu0 0.0
        %677 = vmatpush1.msra.mxu0 0.0
        %678 = vmatprep.subr.mxu0 0.0
        %679 = vmatpush1.msra.mxu0 0.0
        %680 = vmatprep.subr.mxu0 0.0
        %681 = vmatpush1.msra.mxu0 0.0
        %682 = vmatprep.subr.mxu0 0.0
        %683 = vmatpush1.msra.mxu0 0.0
        %684 = vmatprep.mubr.f32.mxu0 0.0
        %685 = vmatmul.mubr.f32.gmra.mrb[0].mxu0 %v615
        %v686 = vpop.f32.mrb[0].mxu0
        %v687 = vadd.f32 %v606, %v686
        %v688 = vpop.f32.mrb[0].mxu0
        %689 = vmatprep.mubr.f32.mxu0 0.0
        %690 = vmatmul.mubr.f32.gmra.mrb[0].mxu0 %v618
        %v691 = vpop.f32.mrb[0].mxu0
        %v692 = vadd.f32 %v611, %v691
        %v693 = vpop.f32.mrb[0].mxu0
        %694 = vdwg.mxu0
        %v695 = vld [vmem:[%s4] sm:$0xff]
        %v696 = vld [vmem:[%s4 + $0x8] sm:$0xff]
        %v697 = vld [vmem:[%s4 + $0x10] sm:$0xff]
        %v698 = vld [vmem:[%s4 + $0x18] sm:$0xff]
        %v699 = vld [vmem:[%s4 + $0x20] sm:$0xff]
        %v700 = vld [vmem:[%s4 + $0x28] sm:$0xff]
        %vm701 = vcmask 130048
        %v703 = vsel %vm701, %v695, 0
        %v706 = vsel %vm701, %v696, 0
        %v709 = vsel %vm701, %v697, 0
        %v712 = vsel %vm701, %v698, 0
        %v715 = vsel %vm701, %v699, 0
        %v718 = vsel %vm701, %v700, 0
        %720 = vmatprep.subr.mxu0 0.0
        %721 = vmatpush1.msra.mxu0 %v687
        %722 = vmatprep.subr.mxu0 0.0
        %723 = vmatpush1.msra.mxu0 %v692
        %724 = vmatprep.subr.mxu0 0.0
        %725 = vmatpush1.msra.mxu0 0.0
        %726 = vmatprep.subr.mxu0 0.0
        %727 = vmatpush1.msra.mxu0 0.0
        %728 = vmatprep.subr.mxu0 0.0
        %729 = vmatpush1.msra.mxu0 0.0
        %730 = vmatprep.subr.mxu0 0.0
        %731 = vmatpush1.msra.mxu0 0.0
        %732 = vmatprep.subr.mxu0 0.0
        %733 = vmatpush1.msra.mxu0 0.0
        %734 = vmatprep.subr.mxu0 0.0
        %735 = vmatpush1.msra.mxu0 0.0
        %736 = vmatprep.subr.mxu0 0.0
        %737 = vmatpush1.msra.mxu0 0.0
        %738 = vmatprep.subr.mxu0 0.0
        %739 = vmatpush1.msra.mxu0 0.0
        %740 = vmatprep.subr.mxu0 0.0
        %741 = vmatpush1.msra.mxu0 0.0
        %742 = vmatprep.subr.mxu0 0.0
        %743 = vmatpush1.msra.mxu0 0.0
        %744 = vmatprep.subr.mxu0 0.0
        %745 = vmatpush1.msra.mxu0 0.0
        %746 = vmatprep.subr.mxu0 0.0
        %747 = vmatpush1.msra.mxu0 0.0
        %748 = vmatprep.subr.mxu0 0.0
        %749 = vmatpush1.msra.mxu0 0.0
        %750 = vmatprep.subr.mxu0 0.0
        %751 = vmatpush1.msra.mxu0 0.0
        %752 = vmatprep.subr.mxu0 0.0
        %753 = vmatpush1.msra.mxu0 0.0
        %754 = vmatprep.subr.mxu0 0.0
        %755 = vmatpush1.msra.mxu0 0.0
        %756 = vmatprep.subr.mxu0 0.0
        %757 = vmatpush1.msra.mxu0 0.0
        %758 = vmatprep.subr.mxu0 0.0
        %759 = vmatpush1.msra.mxu0 0.0
        %760 = vmatprep.subr.mxu0 0.0
        %761 = vmatpush1.msra.mxu0 0.0
        %762 = vmatprep.subr.mxu0 0.0
        %763 = vmatpush1.msra.mxu0 0.0
        %764 = vmatprep.subr.mxu0 0.0
        %765 = vmatpush1.msra.mxu0 0.0
        %766 = vmatprep.subr.mxu0 0.0
        %767 = vmatpush1.msra.mxu0 0.0
        %768 = vmatprep.subr.mxu0 0.0
        %769 = vmatpush1.msra.mxu0 0.0
        %770 = vmatprep.subr.mxu0 0.0
        %771 = vmatpush1.msra.mxu0 0.0
        %772 = vmatprep.subr.mxu0 0.0
        %773 = vmatpush1.msra.mxu0 0.0
        %774 = vmatprep.subr.mxu0 0.0
        %775 = vmatpush1.msra.mxu0 0.0
        %776 = vmatprep.subr.mxu0 0.0
        %777 = vmatpush1.msra.mxu0 0.0
        %778 = vmatprep.subr.mxu0 0.0
        %779 = vmatpush1.msra.mxu0 0.0
        %780 = vmatprep.subr.mxu0 0.0
        %781 = vmatpush1.msra.mxu0 0.0
        %782 = vmatprep.subr.mxu0 0.0
        %783 = vmatpush1.msra.mxu0 0.0
        %784 = vmatprep.mubr.f32.mxu0 0.0
        %785 = vmatmul.mubr.f32.gmra.mrb[0].mxu0 %v703
        %v786 = vpop.f32.mrb[0].mxu0
        %v787 = vadd.f32 0.0, %v786
        %v788 = vpop.f32.mrb[0].mxu0
        %789 = vmatprep.mubr.f32.mxu0 0.0
        %790 = vmatmul.mubr.f32.gmra.mrb[0].mxu0 %v706
        %v791 = vpop.f32.mrb[0].mxu0
        %v792 = vadd.f32 0.0, %v791
        %v793 = vpop.f32.mrb[0].mxu0
        %794 = vmatprep.mubr.f32.mxu0 0.0
        %795 = vmatmul.mubr.f32.gmra.mrb[0].mxu0 %v709
        %v796 = vpop.f32.mrb[0].mxu0
        %v797 = vadd.f32 0.0, %v796
        %v798 = vpop.f32.mrb[0].mxu0
        %799 = vmatprep.mubr.f32.mxu0 0.0
        %800 = vmatmul.mubr.f32.gmra.mrb[0].mxu0 %v712
        %v801 = vpop.f32.mrb[0].mxu0
        %v802 = vadd.f32 0.0, %v801
        %v803 = vpop.f32.mrb[0].mxu0
        %804 = vmatprep.mubr.f32.mxu0 0.0
        %805 = vmatmul.mubr.f32.gmra.mrb[0].mxu0 %v715
        %v806 = vpop.f32.mrb[0].mxu0
        %v807 = vadd.f32 0.0, %v806
        %v808 = vpop.f32.mrb[0].mxu0
        %809 = vmatprep.mubr.f32.mxu0 0.0
        %810 = vmatmul.mubr.f32.gmra.mrb[0].mxu0 %v718
        %v811 = vpop.f32.mrb[0].mxu0
        %v812 = vadd.f32 0.0, %v811
        %v813 = vpop.f32.mrb[0].mxu0
        %814 = vdwg.mxu0
        %815 = vrot.lane.b32.xlu0 %v787, 1
        %v816 = vpop.permute.xlu0 %815
        %817 = vrot.lane.b32.xlu0 %v792, 1
        %v818 = vpop.permute.xlu0 %817
        %v819 = vsel %vm585, %v816, 0.0
        %v820 = vsel %vm585, %v818, 0.0
        %v821 = vadd.f32 %v819, %v797
        %v822 = vadd.f32 %v820, %v802
        %823 = vrot.lane.b32.xlu0 %v807, 127
        %v824 = vpop.permute.xlu0 %823
        %825 = vrot.lane.b32.xlu0 %v812, 127
        %v826 = vpop.permute.xlu0 %825
        %v827 = vsel %vm586, %v824, 0.0
        %v828 = vsel %vm586, %v826, 0.0
        %v829 = vadd.f32 %v821, %v827
        %v830 = vadd.f32 %v822, %v828
        %v831 = vld [vmem:[%s5] sm:$0xff]
        %v832 = vld [vmem:[%s5 + $0x8] sm:$0xff]
        %834 = vset.pattern.permute.xlu0 0
        %835 = vperm.xlu0 %834, %v831
        %v836 = vpop.permute.xlu0 %835
        %839 = vset.pattern.permute.xlu0 0
        %840 = vperm.xlu0 %839, %v832
        %v841 = vpop.permute.xlu0 %840
        %v843 = vadd.f32 %v829, %v836
        %v844 = vadd.f32 %v830, %v841
        %v845 = vmax.f32 %v843, 0.0
        %v846 = vmax.f32 %v844, 0.0
        %v847 = vld [vmem:[%s6] sm:$0xff]
        %v848 = vld [vmem:[%s6 + $0x8] sm:$0xff]
        %v849 = vld [vmem:[%s7] sm:$0xff]
        %v850 = vld [vmem:[%s7 + $0x8] sm:$0xff]
        %852 = vset.pattern.permute.xlu0 0
        %853 = vperm.xlu0 %852, %v849
        %v854 = vpop.permute.xlu0 %853
        %857 = vset.pattern.permute.xlu0 0
        %858 = vperm.xlu0 %857, %v850
        %v859 = vpop.permute.xlu0 %858
        %v862 = vsel %vm701, %v847, 0
        %v865 = vsel %vm701, %v848, 0
        %867 = vmatprep.subr.mxu0 0.0
        %868 = vmatpush1.msra.mxu0 %v845
        %869 = vmatprep.subr.mxu0 0.0
        %870 = vmatpush1.msra.mxu0 %v846
        %871 = vmatprep.subr.mxu0 0.0
        %872 = vmatpush1.msra.mxu0 0.0
        %873 = vmatprep.subr.mxu0 0.0
        %874 = vmatpush1.msra.mxu0 0.0
        %875 = vmatprep.subr.mxu0 0.0
        %876 = vmatpush1.msra.mxu0 0.0
        %877 = vmatprep.subr.mxu0 0.0
        %878 = vmatpush1.msra.mxu0 0.0
        %879 = vmatprep.subr.mxu0 0.0
        %880 = vmatpush1.msra.mxu0 0.0
        %881 = vmatprep.subr.mxu0 0.0
        %882 = vmatpush1.msra.mxu0 0.0
        %883 = vmatprep.subr.mxu0 0.0
        %884 = vmatpush1.msra.mxu0 0.0
        %885 = vmatprep.subr.mxu0 0.0
        %886 = vmatpush1.msra.mxu0 0.0
        %887 = vmatprep.subr.mxu0 0.0
        %888 = vmatpush1.msra.mxu0 0.0
        %889 = vmatprep.subr.mxu0 0.0
        %890 = vmatpush1.msra.mxu0 0.0
        %891 = vmatprep.subr.mxu0 0.0
        %892 = vmatpush1.msra.mxu0 0.0
        %893 = vmatprep.subr.mxu0 0.0
        %894 = vmatpush1.msra.mxu0 0.0
        %895 = vmatprep.subr.mxu0 0.0
        %896 = vmatpush1.msra.mxu0 0.0
        %897 = vmatprep.subr.mxu0 0.0
        %898 = vmatpush1.msra.mxu0 0.0
        %899 = vmatprep.subr.mxu0 0.0
        %900 = vmatpush1.msra.mxu0 0.0
        %901 = vmatprep.subr.mxu0 0.0
        %902 = vmatpush1.msra.mxu0 0.0
        %903 = vmatprep.subr.mxu0 0.0
        %904 = vmatpush1.msra.mxu0 0.0
        %905 = vmatprep.subr.mxu0 0.0
        %906 = vmatpush1.msra.mxu0 0.0
        %907 = vmatprep.subr.mxu0 0.0
        %908 = vmatpush1.msra.mxu0 0.0
        %909 = vmatprep.subr.mxu0 0.0
        %910 = vmatpush1.msra.mxu0 0.0
        %911 = vmatprep.subr.mxu0 0.0
        %912 = vmatpush1.msra.mxu0 0.0
        %913 = vmatprep.subr.mxu0 0.0
        %914 = vmatpush1.msra.mxu0 0.0
        %915 = vmatprep.subr.mxu0 0.0
        %916 = vmatpush1.msra.mxu0 0.0
        %917 = vmatprep.subr.mxu0 0.0
        %918 = vmatpush1.msra.mxu0 0.0
        %919 = vmatprep.subr.mxu0 0.0
        %920 = vmatpush1.msra.mxu0 0.0
        %921 = vmatprep.subr.mxu0 0.0
        %922 = vmatpush1.msra.mxu0 0.0
        %923 = vmatprep.subr.mxu0 0.0
        %924 = vmatpush1.msra.mxu0 0.0
        %925 = vmatprep.subr.mxu0 0.0
        %926 = vmatpush1.msra.mxu0 0.0
        %927 = vmatprep.subr.mxu0 0.0
        %928 = vmatpush1.msra.mxu0 0.0
        %929 = vmatprep.subr.mxu0 0.0
        %930 = vmatpush1.msra.mxu0 0.0
        %931 = vmatprep.mubr.f32.mxu0 0.0
        %932 = vmatmul.mubr.f32.gmra.mrb[0].mxu0 %v862
        %v933 = vpop.f32.mrb[0].mxu0
        %v934 = vadd.f32 %v854, %v933
        %v935 = vpop.f32.mrb[0].mxu0
        %936 = vmatprep.mubr.f32.mxu0 0.0
        %937 = vmatmul.mubr.f32.gmra.mrb[0].mxu0 %v865
        %v938 = vpop.f32.mrb[0].mxu0
        %v939 = vadd.f32 %v859, %v938
        %v940 = vpop.f32.mrb[0].mxu0
        %941 = vdwg.mxu0
        %v942 = vadd.f32 %v687, %v934
        %v943 = vadd.f32 %v692, %v939
        %s944 = scalar_lea.vmem %s4, 48
        %v945 = vld [vmem:[%s944] sm:$0xff]
        %v946 = vld [vmem:[%s944 + $0x8] sm:$0xff]
        %v947 = vld [vmem:[%s944 + $0x10] sm:$0xff]
        %v948 = vld [vmem:[%s944 + $0x18] sm:$0xff]
        %v949 = vld [vmem:[%s944 + $0x20] sm:$0xff]
        %v950 = vld [vmem:[%s944 + $0x28] sm:$0xff]
        %v952 = vsel %vm701, %v945, 0
        %v955 = vsel %vm701, %v946, 0
        %v958 = vsel %vm701, %v947, 0
        %v961 = vsel %vm701, %v948, 0
        %v964 = vsel %vm701, %v949, 0
        %v967 = vsel %vm701, %v950, 0
        %969 = vmatprep.subr.mxu0 0.0
        %970 = vmatpush1.msra.mxu0 %v942
        %971 = vmatprep.subr.mxu0 0.0
        %972 = vmatpush1.msra.mxu0 %v943
        %973 = vmatprep.subr.mxu0 0.0
        %974 = vmatpush1.msra.mxu0 0.0
        %975 = vmatprep.subr.mxu0 0.0
        %976 = vmatpush1.msra.mxu0 0.0
        %977 = vmatprep.subr.mxu0 0.0
        %978 = vmatpush1.msra.mxu0 0.0
        %979 = vmatprep.subr.mxu0 0.0
        %980 = vmatpush1.msra.mxu0 0.0
        %981 = vmatprep.subr.mxu0 0.0
        %982 = vmatpush1.msra.mxu0 0.0
        %983 = vmatprep.subr.mxu0 0.0
        %984 = vmatpush1.msra.mxu0 0.0
        %985 = vmatprep.subr.mxu0 0.0
        %986 = vmatpush1.msra.mxu0 0.0
        %987 = vmatprep.subr.mxu0 0.0
        %988 = vmatpush1.msra.mxu0 0.0
        %989 = vmatprep.subr.mxu0 0.0
        %990 = vmatpush1.msra.mxu0 0.0
        %991 = vmatprep.subr.mxu0 0.0
        %992 = vmatpush1.msra.mxu0 0.0
        %993 = vmatprep.subr.mxu0 0.0
        %994 = vmatpush1.msra.mxu0 0.0
        %995 = vmatprep.subr.mxu0 0.0
        %996 = vmatpush1.msra.mxu0 0.0
        %997 = vmatprep.subr.mxu0 0.0
        %998 = vmatpush1.msra.mxu0 0.0
        %999 = vmatprep.subr.mxu0 0.0
        %1000 = vmatpush1.msra.mxu0 0.0
        %1001 = vmatprep.subr.mxu0 0.0
        %1002 = vmatpush1.msra.mxu0 0.0
        %1003 = vmatprep.subr.mxu0 0.0
        %1004 = vmatpush1.msra.mxu0 0.0
        %1005 = vmatprep.subr.mxu0 0.0
        %1006 = vmatpush1.msra.mxu0 0.0
        %1007 = vmatprep.subr.mxu0 0.0
        %1008 = vmatpush1.msra.mxu0 0.0
        %1009 = vmatprep.subr.mxu0 0.0
        %1010 = vmatpush1.msra.mxu0 0.0
        %1011 = vmatprep.subr.mxu0 0.0
        %1012 = vmatpush1.msra.mxu0 0.0
        %1013 = vmatprep.subr.mxu0 0.0
        %1014 = vmatpush1.msra.mxu0 0.0
        %1015 = vmatprep.subr.mxu0 0.0
        %1016 = vmatpush1.msra.mxu0 0.0
        %1017 = vmatprep.subr.mxu0 0.0
        %1018 = vmatpush1.msra.mxu0 0.0
        %1019 = vmatprep.subr.mxu0 0.0
        %1020 = vmatpush1.msra.mxu0 0.0
        %1021 = vmatprep.subr.mxu0 0.0
        %1022 = vmatpush1.msra.mxu0 0.0
        %1023 = vmatprep.subr.mxu0 0.0
        %1024 = vmatpush1.msra.mxu0 0.0
        %1025 = vmatprep.subr.mxu0 0.0
        %1026 = vmatpush1.msra.mxu0 0.0
        %1027 = vmatprep.subr.mxu0 0.0
        %1028 = vmatpush1.msra.mxu0 0.0
        %1029 = vmatprep.subr.mxu0 0.0
        %1030 = vmatpush1.msra.mxu0 0.0
        %1031 = vmatprep.subr.mxu0 0.0
        %1032 = vmatpush1.msra.mxu0 0.0
        %1033 = vmatprep.mubr.f32.mxu0 0.0
        %1034 = vmatmul.mubr.f32.gmra.mrb[0].mxu0 %v952
        %v1035 = vpop.f32.mrb[0].mxu0
        %v1036 = vadd.f32 0.0, %v1035
        %v1037 = vpop.f32.mrb[0].mxu0
        %1038 = vmatprep.mubr.f32.mxu0 0.0
        %1039 = vmatmul.mubr.f32.gmra.mrb[0].mxu0 %v955
        %v1040 = vpop.f32.mrb[0].mxu0
        %v1041 = vadd.f32 0.0, %v1040
        %v1042 = vpop.f32.mrb[0].mxu0
        %1043 = vmatprep.mubr.f32.mxu0 0.0
        %1044 = vmatmul.mubr.f32.gmra.mrb[0].mxu0 %v958
        %v1045 = vpop.f32.mrb[0].mxu0
        %v1046 = vadd.f32 0.0, %v1045
        %v1047 = vpop.f32.mrb[0].mxu0
        %1048 = vmatprep.mubr.f32.mxu0 0.0
        %1049 = vmatmul.mubr.f32.gmra.mrb[0].mxu0 %v961
        %v1050 = vpop.f32.mrb[0].mxu0
        %v1051 = vadd.f32 0.0, %v1050
        %v1052 = vpop.f32.mrb[0].mxu0
        %1053 = vmatprep.mubr.f32.mxu0 0.0
        %1054 = vmatmul.mubr.f32.gmra.mrb[0].mxu0 %v964
        %v1055 = vpop.f32.mrb[0].mxu0
        %v1056 = vadd.f32 0.0, %v1055
        %v1057 = vpop.f32.mrb[0].mxu0
        %1058 = vmatprep.mubr.f32.mxu0 0.0
        %1059 = vmatmul.mubr.f32.gmra.mrb[0].mxu0 %v967
        %v1060 = vpop.f32.mrb[0].mxu0
        %v1061 = vadd.f32 0.0, %v1060
        %v1062 = vpop.f32.mrb[0].mxu0
        %1063 = vdwg.mxu0
        %1064 = vrot.lane.b32.xlu0 %v1036, 2
        %v1065 = vpop.permute.xlu0 %1064
        %1066 = vrot.lane.b32.xlu0 %v1041, 2
        %v1067 = vpop.permute.xlu0 %1066
        %v1068 = vsel %vm587, %v1065, 0.0
        %v1069 = vsel %vm587, %v1067, 0.0
        %v1070 = vadd.f32 %v1068, %v1046
        %v1071 = vadd.f32 %v1069, %v1051
        %1072 = vrot.lane.b32.xlu0 %v1056, 126
        %v1073 = vpop.permute.xlu0 %1072
        %1074 = vrot.lane.b32.xlu0 %v1061, 126
        %v1075 = vpop.permute.xlu0 %1074
        %v1076 = vsel %vm588, %v1073, 0.0
        %v1077 = vsel %vm588, %v1075, 0.0
        %v1078 = vadd.f32 %v1070, %v1076
        %v1079 = vadd.f32 %v1071, %v1077
        %s1080 = scalar_lea.vmem %s5, 16
        %v1081 = vld [vmem:[%s1080] sm:$0xff]
        %v1082 = vld [vmem:[%s1080 + $0x8] sm:$0xff]
        %1084 = vset.pattern.permute.xlu0 0
        %1085 = vperm.xlu0 %1084, %v1081
        %v1086 = vpop.permute.xlu0 %1085
        %1089 = vset.pattern.permute.xlu0 0
        %1090 = vperm.xlu0 %1089, %v1082
        %v1091 = vpop.permute.xlu0 %1090
        %v1093 = vadd.f32 %v1078, %v1086
        %v1094 = vadd.f32 %v1079, %v1091
        %v1095 = vmax.f32 %v1093, 0.0
        %v1096 = vmax.f32 %v1094, 0.0
        %s1097 = scalar_lea.vmem %s6, 16
        %v1098 = vld [vmem:[%s1097] sm:$0xff]
        %v1099 = vld [vmem:[%s1097 + $0x8] sm:$0xff]
        %s1100 = scalar_lea.vmem %s7, 16
        %v1101 = vld [vmem:[%s1100] sm:$0xff]
        %v1102 = vld [vmem:[%s1100 + $0x8] sm:$0xff]
        %1104 = vset.pattern.permute.xlu0 0
        %1105 = vperm.xlu0 %1104, %v1101
        %v1106 = vpop.permute.xlu0 %1105
        %1109 = vset.pattern.permute.xlu0 0
        %1110 = vperm.xlu0 %1109, %v1102
        %v1111 = vpop.permute.xlu0 %1110
        %v1114 = vsel %vm701, %v1098, 0
        %v1117 = vsel %vm701, %v1099, 0
        %1119 = vmatprep.subr.mxu0 0.0
        %1120 = vmatpush1.msra.mxu0 %v1095
        %1121 = vmatprep.subr.mxu0 0.0
        %1122 = vmatpush1.msra.mxu0 %v1096
        %1123 = vmatprep.subr.mxu0 0.0
        %1124 = vmatpush1.msra.mxu0 0.0
        %1125 = vmatprep.subr.mxu0 0.0
        %1126 = vmatpush1.msra.mxu0 0.0
        %1127 = vmatprep.subr.mxu0 0.0
        %1128 = vmatpush1.msra.mxu0 0.0
        %1129 = vmatprep.subr.mxu0 0.0
        %1130 = vmatpush1.msra.mxu0 0.0
        %1131 = vmatprep.subr.mxu0 0.0
        %1132 = vmatpush1.msra.mxu0 0.0
        %1133 = vmatprep.subr.mxu0 0.0
        %1134 = vmatpush1.msra.mxu0 0.0
        %1135 = vmatprep.subr.mxu0 0.0
        %1136 = vmatpush1.msra.mxu0 0.0
        %1137 = vmatprep.subr.mxu0 0.0
        %1138 = vmatpush1.msra.mxu0 0.0
        %1139 = vmatprep.subr.mxu0 0.0
        %1140 = vmatpush1.msra.mxu0 0.0
        %1141 = vmatprep.subr.mxu0 0.0
        %1142 = vmatpush1.msra.mxu0 0.0
        %1143 = vmatprep.subr.mxu0 0.0
        %1144 = vmatpush1.msra.mxu0 0.0
        %1145 = vmatprep.subr.mxu0 0.0
        %1146 = vmatpush1.msra.mxu0 0.0
        %1147 = vmatprep.subr.mxu0 0.0
        %1148 = vmatpush1.msra.mxu0 0.0
        %1149 = vmatprep.subr.mxu0 0.0
        %1150 = vmatpush1.msra.mxu0 0.0
        %1151 = vmatprep.subr.mxu0 0.0
        %1152 = vmatpush1.msra.mxu0 0.0
        %1153 = vmatprep.subr.mxu0 0.0
        %1154 = vmatpush1.msra.mxu0 0.0
        %1155 = vmatprep.subr.mxu0 0.0
        %1156 = vmatpush1.msra.mxu0 0.0
        %1157 = vmatprep.subr.mxu0 0.0
        %1158 = vmatpush1.msra.mxu0 0.0
        %1159 = vmatprep.subr.mxu0 0.0
        %1160 = vmatpush1.msra.mxu0 0.0
        %1161 = vmatprep.subr.mxu0 0.0
        %1162 = vmatpush1.msra.mxu0 0.0
        %1163 = vmatprep.subr.mxu0 0.0
        %1164 = vmatpush1.msra.mxu0 0.0
        %1165 = vmatprep.subr.mxu0 0.0
        %1166 = vmatpush1.msra.mxu0 0.0
        %1167 = vmatprep.subr.mxu0 0.0
        %1168 = vmatpush1.msra.mxu0 0.0
        %1169 = vmatprep.subr.mxu0 0.0
        %1170 = vmatpush1.msra.mxu0 0.0
        %1171 = vmatprep.subr.mxu0 0.0
        %1172 = vmatpush1.msra.mxu0 0.0
        %1173 = vmatprep.subr.mxu0 0.0
        %1174 = vmatpush1.msra.mxu0 0.0
        %1175 = vmatprep.subr.mxu0 0.0
        %1176 = vmatpush1.msra.mxu0 0.0
        %1177 = vmatprep.subr.mxu0 0.0
        %1178 = vmatpush1.msra.mxu0 0.0
        %1179 = vmatprep.subr.mxu0 0.0
        %1180 = vmatpush1.msra.mxu0 0.0
        %1181 = vmatprep.subr.mxu0 0.0
        %1182 = vmatpush1.msra.mxu0 0.0
        %1183 = vmatprep.mubr.f32.mxu0 0.0
        %1184 = vmatmul.mubr.f32.gmra.mrb[0].mxu0 %v1114
        %v1185 = vpop.f32.mrb[0].mxu0
        %v1186 = vadd.f32 %v1106, %v1185
        %v1187 = vpop.f32.mrb[0].mxu0
        %1188 = vmatprep.mubr.f32.mxu0 0.0
        %1189 = vmatmul.mubr.f32.gmra.mrb[0].mxu0 %v1117
        %v1190 = vpop.f32.mrb[0].mxu0
        %v1191 = vadd.f32 %v1111, %v1190
        %v1192 = vpop.f32.mrb[0].mxu0
        %1193 = vdwg.mxu0
        %v1194 = vadd.f32 %v942, %v1186
        %v1195 = vadd.f32 %v943, %v1191
        %s1196 = scalar_lea.vmem %s4, 96
        %v1197 = vld [vmem:[%s1196] sm:$0xff]
        %v1198 = vld [vmem:[%s1196 + $0x8] sm:$0xff]
        %v1199 = vld [vmem:[%s1196 + $0x10] sm:$0xff]
        %v1200 = vld [vmem:[%s1196 + $0x18] sm:$0xff]
        %v1201 = vld [vmem:[%s1196 + $0x20] sm:$0xff]
        %v1202 = vld [vmem:[%s1196 + $0x28] sm:$0xff]
        %v1204 = vsel %vm701, %v1197, 0
        %v1207 = vsel %vm701, %v1198, 0
        %v1210 = vsel %vm701, %v1199, 0
        %v1213 = vsel %vm701, %v1200, 0
        %v1216 = vsel %vm701, %v1201, 0
        %v1219 = vsel %vm701, %v1202, 0
        %1221 = vmatprep.subr.mxu0 0.0
        %1222 = vmatpush1.msra.mxu0 %v1194
        %1223 = vmatprep.subr.mxu0 0.0
        %1224 = vmatpush1.msra.mxu0 %v1195
        %1225 = vmatprep.subr.mxu0 0.0
        %1226 = vmatpush1.msra.mxu0 0.0
        %1227 = vmatprep.subr.mxu0 0.0
        %1228 = vmatpush1.msra.mxu0 0.0
        %1229 = vmatprep.subr.mxu0 0.0
        %1230 = vmatpush1.msra.mxu0 0.0
        %1231 = vmatprep.subr.mxu0 0.0
        %1232 = vmatpush1.msra.mxu0 0.0
        %1233 = vmatprep.subr.mxu0 0.0
        %1234 = vmatpush1.msra.mxu0 0.0
        %1235 = vmatprep.subr.mxu0 0.0
        %1236 = vmatpush1.msra.mxu0 0.0
        %1237 = vmatprep.subr.mxu0 0.0
        %1238 = vmatpush1.msra.mxu0 0.0
        %1239 = vmatprep.subr.mxu0 0.0
        %1240 = vmatpush1.msra.mxu0 0.0
        %1241 = vmatprep.subr.mxu0 0.0
        %1242 = vmatpush1.msra.mxu0 0.0
        %1243 = vmatprep.subr.mxu0 0.0
        %1244 = vmatpush1.msra.mxu0 0.0
        %1245 = vmatprep.subr.mxu0 0.0
        %1246 = vmatpush1.msra.mxu0 0.0
        %1247 = vmatprep.subr.mxu0 0.0
        %1248 = vmatpush1.msra.mxu0 0.0
        %1249 = vmatprep.subr.mxu0 0.0
        %1250 = vmatpush1.msra.mxu0 0.0
        %1251 = vmatprep.subr.mxu0 0.0
        %1252 = vmatpush1.msra.mxu0 0.0
        %1253 = vmatprep.subr.mxu0 0.0
        %1254 = vmatpush1.msra.mxu0 0.0
        %1255 = vmatprep.subr.mxu0 0.0
        %1256 = vmatpush1.msra.mxu0 0.0
        %1257 = vmatprep.subr.mxu0 0.0
        %1258 = vmatpush1.msra.mxu0 0.0
        %1259 = vmatprep.subr.mxu0 0.0
        %1260 = vmatpush1.msra.mxu0 0.0
        %1261 = vmatprep.subr.mxu0 0.0
        %1262 = vmatpush1.msra.mxu0 0.0
        %1263 = vmatprep.subr.mxu0 0.0
        %1264 = vmatpush1.msra.mxu0 0.0
        %1265 = vmatprep.subr.mxu0 0.0
        %1266 = vmatpush1.msra.mxu0 0.0
        %1267 = vmatprep.subr.mxu0 0.0
        %1268 = vmatpush1.msra.mxu0 0.0
        %1269 = vmatprep.subr.mxu0 0.0
        %1270 = vmatpush1.msra.mxu0 0.0
        %1271 = vmatprep.subr.mxu0 0.0
        %1272 = vmatpush1.msra.mxu0 0.0
        %1273 = vmatprep.subr.mxu0 0.0
        %1274 = vmatpush1.msra.mxu0 0.0
        %1275 = vmatprep.subr.mxu0 0.0
        %1276 = vmatpush1.msra.mxu0 0.0
        %1277 = vmatprep.subr.mxu0 0.0
        %1278 = vmatpush1.msra.mxu0 0.0
        %1279 = vmatprep.subr.mxu0 0.0
        %1280 = vmatpush1.msra.mxu0 0.0
        %1281 = vmatprep.subr.mxu0 0.0
        %1282 = vmatpush1.msra.mxu0 0.0
        %1283 = vmatprep.subr.mxu0 0.0
        %1284 = vmatpush1.msra.mxu0 0.0
        %1285 = vmatprep.mubr.f32.mxu0 0.0
        %1286 = vmatmul.mubr.f32.gmra.mrb[0].mxu0 %v1204
        %v1287 = vpop.f32.mrb[0].mxu0
        %v1288 = vadd.f32 0.0, %v1287
        %v1289 = vpop.f32.mrb[0].mxu0
        %1290 = vmatprep.mubr.f32.mxu0 0.0
        %1291 = vmatmul.mubr.f32.gmra.mrb[0].mxu0 %v1207
        %v1292 = vpop.f32.mrb[0].mxu0
        %v1293 = vadd.f32 0.0, %v1292
        %v1294 = vpop.f32.mrb[0].mxu0
        %1295 = vmatprep.mubr.f32.mxu0 0.0
        %1296 = vmatmul.mubr.f32.gmra.mrb[0].mxu0 %v1210
        %v1297 = vpop.f32.mrb[0].mxu0
        %v1298 = vadd.f32 0.0, %v1297
        %v1299 = vpop.f32.mrb[0].mxu0
        %1300 = vmatprep.mubr.f32.mxu0 0.0
        %1301 = vmatmul.mubr.f32.gmra.mrb[0].mxu0 %v1213
        %v1302 = vpop.f32.mrb[0].mxu0
        %v1303 = vadd.f32 0.0, %v1302
        %v1304 = vpop.f32.mrb[0].mxu0
        %1305 = vmatprep.mubr.f32.mxu0 0.0
        %1306 = vmatmul.mubr.f32.gmra.mrb[0].mxu0 %v1216
        %v1307 = vpop.f32.mrb[0].mxu0
        %v1308 = vadd.f32 0.0, %v1307
        %v1309 = vpop.f32.mrb[0].mxu0
        %1310 = vmatprep.mubr.f32.mxu0 0.0
        %1311 = vmatmul.mubr.f32.gmra.mrb[0].mxu0 %v1219
        %v1312 = vpop.f32.mrb[0].mxu0
        %v1313 = vadd.f32 0.0, %v1312
        %v1314 = vpop.f32.mrb[0].mxu0
        %1315 = vdwg.mxu0
        %1316 = vrot.lane.b32.xlu0 %v1288, 4
        %v1317 = vpop.permute.xlu0 %1316
        %1318 = vrot.lane.b32.xlu0 %v1293, 4
        %v1319 = vpop.permute.xlu0 %1318
        %v1320 = vsel %vm589, %v1317, 0.0
        %v1321 = vsel %vm589, %v1319, 0.0
        %v1322 = vadd.f32 %v1320, %v1298
        %v1323 = vadd.f32 %v1321, %v1303
        %1324 = vrot.lane.b32.xlu0 %v1308, 124
        %v1325 = vpop.permute.xlu0 %1324
        %1326 = vrot.lane.b32.xlu0 %v1313, 124
        %v1327 = vpop.permute.xlu0 %1326
        %v1328 = vsel %vm590, %v1325, 0.0
        %v1329 = vsel %vm590, %v1327, 0.0
        %v1330 = vadd.f32 %v1322, %v1328
        %v1331 = vadd.f32 %v1323, %v1329
        %s1332 = scalar_lea.vmem %s5, 32
        %v1333 = vld [vmem:[%s1332] sm:$0xff]
        %v1334 = vld [vmem:[%s1332 + $0x8] sm:$0xff]
        %1336 = vset.pattern.permute.xlu0 0
        %1337 = vperm.xlu0 %1336, %v1333
        %v1338 = vpop.permute.xlu0 %1337
        %1341 = vset.pattern.permute.xlu0 0
        %1342 = vperm.xlu0 %1341, %v1334
        %v1343 = vpop.permute.xlu0 %1342
        %v1345 = vadd.f32 %v1330, %v1338
        %v1346 = vadd.f32 %v1331, %v1343
        %v1347 = vmax.f32 %v1345, 0.0
        %v1348 = vmax.f32 %v1346, 0.0
        %s1349 = scalar_lea.vmem %s6, 32
        %v1350 = vld [vmem:[%s1349] sm:$0xff]
        %v1351 = vld [vmem:[%s1349 + $0x8] sm:$0xff]
        %s1352 = scalar_lea.vmem %s7, 32
        %v1353 = vld [vmem:[%s1352] sm:$0xff]
        %v1354 = vld [vmem:[%s1352 + $0x8] sm:$0xff]
        %1356 = vset.pattern.permute.xlu0 0
        %1357 = vperm.xlu0 %1356, %v1353
        %v1358 = vpop.permute.xlu0 %1357
        %1361 = vset.pattern.permute.xlu0 0
        %1362 = vperm.xlu0 %1361, %v1354
        %v1363 = vpop.permute.xlu0 %1362
        %v1366 = vsel %vm701, %v1350, 0
        %v1369 = vsel %vm701, %v1351, 0
        %1371 = vmatprep.subr.mxu0 0.0
        %1372 = vmatpush1.msra.mxu0 %v1347
        %1373 = vmatprep.subr.mxu0 0.0
        %1374 = vmatpush1.msra.mxu0 %v1348
        %1375 = vmatprep.subr.mxu0 0.0
        %1376 = vmatpush1.msra.mxu0 0.0
        %1377 = vmatprep.subr.mxu0 0.0
        %1378 = vmatpush1.msra.mxu0 0.0
        %1379 = vmatprep.subr.mxu0 0.0
        %1380 = vmatpush1.msra.mxu0 0.0
        %1381 = vmatprep.subr.mxu0 0.0
        %1382 = vmatpush1.msra.mxu0 0.0
        %1383 = vmatprep.subr.mxu0 0.0
        %1384 = vmatpush1.msra.mxu0 0.0
        %1385 = vmatprep.subr.mxu0 0.0
        %1386 = vmatpush1.msra.mxu0 0.0
        %1387 = vmatprep.subr.mxu0 0.0
        %1388 = vmatpush1.msra.mxu0 0.0
        %1389 = vmatprep.subr.mxu0 0.0
        %1390 = vmatpush1.msra.mxu0 0.0
        %1391 = vmatprep.subr.mxu0 0.0
        %1392 = vmatpush1.msra.mxu0 0.0
        %1393 = vmatprep.subr.mxu0 0.0
        %1394 = vmatpush1.msra.mxu0 0.0
        %1395 = vmatprep.subr.mxu0 0.0
        %1396 = vmatpush1.msra.mxu0 0.0
        %1397 = vmatprep.subr.mxu0 0.0
        %1398 = vmatpush1.msra.mxu0 0.0
        %1399 = vmatprep.subr.mxu0 0.0
        %1400 = vmatpush1.msra.mxu0 0.0
        %1401 = vmatprep.subr.mxu0 0.0
        %1402 = vmatpush1.msra.mxu0 0.0
        %1403 = vmatprep.subr.mxu0 0.0
        %1404 = vmatpush1.msra.mxu0 0.0
        %1405 = vmatprep.subr.mxu0 0.0
        %1406 = vmatpush1.msra.mxu0 0.0
        %1407 = vmatprep.subr.mxu0 0.0
        %1408 = vmatpush1.msra.mxu0 0.0
        %1409 = vmatprep.subr.mxu0 0.0
        %1410 = vmatpush1.msra.mxu0 0.0
        %1411 = vmatprep.subr.mxu0 0.0
        %1412 = vmatpush1.msra.mxu0 0.0
        %1413 = vmatprep.subr.mxu0 0.0
        %1414 = vmatpush1.msra.mxu0 0.0
        %1415 = vmatprep.subr.mxu0 0.0
        %1416 = vmatpush1.msra.mxu0 0.0
        %1417 = vmatprep.subr.mxu0 0.0
        %1418 = vmatpush1.msra.mxu0 0.0
        %1419 = vmatprep.subr.mxu0 0.0
        %1420 = vmatpush1.msra.mxu0 0.0
        %1421 = vmatprep.subr.mxu0 0.0
        %1422 = vmatpush1.msra.mxu0 0.0
        %1423 = vmatprep.subr.mxu0 0.0
        %1424 = vmatpush1.msra.mxu0 0.0
        %1425 = vmatprep.subr.mxu0 0.0
        %1426 = vmatpush1.msra.mxu0 0.0
        %1427 = vmatprep.subr.mxu0 0.0
        %1428 = vmatpush1.msra.mxu0 0.0
        %1429 = vmatprep.subr.mxu0 0.0
        %1430 = vmatpush1.msra.mxu0 0.0
        %1431 = vmatprep.subr.mxu0 0.0
        %1432 = vmatpush1.msra.mxu0 0.0
        %1433 = vmatprep.subr.mxu0 0.0
        %1434 = vmatpush1.msra.mxu0 0.0
        %1435 = vmatprep.mubr.f32.mxu0 0.0
        %1436 = vmatmul.mubr.f32.gmra.mrb[0].mxu0 %v1366
        %v1437 = vpop.f32.mrb[0].mxu0
        %v1438 = vadd.f32 %v1358, %v1437
        %v1439 = vpop.f32.mrb[0].mxu0
        %1440 = vmatprep.mubr.f32.mxu0 0.0
        %1441 = vmatmul.mubr.f32.gmra.mrb[0].mxu0 %v1369
        %v1442 = vpop.f32.mrb[0].mxu0
        %v1443 = vadd.f32 %v1363, %v1442
        %v1444 = vpop.f32.mrb[0].mxu0
        %1445 = vdwg.mxu0
        %v1446 = vadd.f32 %v1194, %v1438
        %v1447 = vadd.f32 %v1195, %v1443
        %1449 = vset.pattern.permute.xlu0 0
        %1450 = vperm.xlu0 %1449, %v602
        %v1451 = vpop.permute.xlu0 %1450
        %v1454 = vsel %vm701, %v601, 0
        %1456 = vmatprep.subr.mxu0 0.0
        %1457 = vmatpush1.msra.mxu0 %v1446
        %1458 = vmatprep.subr.mxu0 0.0
        %1459 = vmatpush1.msra.mxu0 %v1447
        %1460 = vmatprep.subr.mxu0 0.0
        %1461 = vmatpush1.msra.mxu0 0.0
        %1462 = vmatprep.subr.mxu0 0.0
        %1463 = vmatpush1.msra.mxu0 0.0
        %1464 = vmatprep.subr.mxu0 0.0
        %1465 = vmatpush1.msra.mxu0 0.0
        %1466 = vmatprep.subr.mxu0 0.0
        %1467 = vmatpush1.msra.mxu0 0.0
        %1468 = vmatprep.subr.mxu0 0.0
        %1469 = vmatpush1.msra.mxu0 0.0
        %1470 = vmatprep.subr.mxu0 0.0
        %1471 = vmatpush1.msra.mxu0 0.0
        %1472 = vmatprep.subr.mxu0 0.0
        %1473 = vmatpush1.msra.mxu0 0.0
        %1474 = vmatprep.subr.mxu0 0.0
        %1475 = vmatpush1.msra.mxu0 0.0
        %1476 = vmatprep.subr.mxu0 0.0
        %1477 = vmatpush1.msra.mxu0 0.0
        %1478 = vmatprep.subr.mxu0 0.0
        %1479 = vmatpush1.msra.mxu0 0.0
        %1480 = vmatprep.subr.mxu0 0.0
        %1481 = vmatpush1.msra.mxu0 0.0
        %1482 = vmatprep.subr.mxu0 0.0
        %1483 = vmatpush1.msra.mxu0 0.0
        %1484 = vmatprep.subr.mxu0 0.0
        %1485 = vmatpush1.msra.mxu0 0.0
        %1486 = vmatprep.subr.mxu0 0.0
        %1487 = vmatpush1.msra.mxu0 0.0
        %1488 = vmatprep.subr.mxu0 0.0
        %1489 = vmatpush1.msra.mxu0 0.0
        %1490 = vmatprep.subr.mxu0 0.0
        %1491 = vmatpush1.msra.mxu0 0.0
        %1492 = vmatprep.subr.mxu0 0.0
        %1493 = vmatpush1.msra.mxu0 0.0
        %1494 = vmatprep.subr.mxu0 0.0
        %1495 = vmatpush1.msra.mxu0 0.0
        %1496 = vmatprep.subr.mxu0 0.0
        %1497 = vmatpush1.msra.mxu0 0.0
        %1498 = vmatprep.subr.mxu0 0.0
        %1499 = vmatpush1.msra.mxu0 0.0
        %1500 = vmatprep.subr.mxu0 0.0
        %1501 = vmatpush1.msra.mxu0 0.0
        %1502 = vmatprep.subr.mxu0 0.0
        %1503 = vmatpush1.msra.mxu0 0.0
        %1504 = vmatprep.subr.mxu0 0.0
        %1505 = vmatpush1.msra.mxu0 0.0
        %1506 = vmatprep.subr.mxu0 0.0
        %1507 = vmatpush1.msra.mxu0 0.0
        %1508 = vmatprep.subr.mxu0 0.0
        %1509 = vmatpush1.msra.mxu0 0.0
        %1510 = vmatprep.subr.mxu0 0.0
        %1511 = vmatpush1.msra.mxu0 0.0
        %1512 = vmatprep.subr.mxu0 0.0
        %1513 = vmatpush1.msra.mxu0 0.0
        %1514 = vmatprep.subr.mxu0 0.0
        %1515 = vmatpush1.msra.mxu0 0.0
        %1516 = vmatprep.subr.mxu0 0.0
        %1517 = vmatpush1.msra.mxu0 0.0
        %1518 = vmatprep.subr.mxu0 0.0
        %1519 = vmatpush1.msra.mxu0 0.0
        %1520 = vmatprep.mubr.f32.mxu0 0.0
        %1521 = vmatmul.mubr.f32.gmra.mrb[0].mxu0 %v1454
        %v1522 = vpop.f32.mrb[0].mxu0
        %v1523 = vadd.f32 %v1451, %v1522
        %v1524 = vpop.f32.mrb[0].mxu0
        %1525 = vdwg.mxu0
        %v1526 = vmul.f32 %v1523, %v595
        %1527 = vst [vmem:[%s573] sm:$0x3f] %v1526
        %vm1528 = vcmask 1045504
        %v1529 = vsel %vm1528, %v1526, -inf
        %v1530 = vrot.slane %v1529, 4
        %v1531 = vmax.f32 %v1529, %v1530
        %v1532 = vrot.slane %v1531, 2
        %v1533 = vmax.f32 %v1531, %v1532
        %v1534 = vrot.slane %v1533, 1
        %v1535 = vmax.f32 %v1533, %v1534
        %v1536 = vsub.f32 %v1526, %v1535
        %v1537 = vmul.f32 %v1536, 1.442695
        %v1538 = vpow.pop %v1537
        %v1539 = vsel %vm1528, %v1538, 0.0
        %v1540 = vrot.slane %v1539, 4
        %v1541 = vadd.f32 %v1539, %v1540
        %v1542 = vrot.slane %v1541, 2
        %v1543 = vadd.f32 %v1541, %v1542
        %v1544 = vrot.slane %v1543, 1
        %v1545 = vadd.f32 %v1543, %v1544
        %v1546 = vrcp.pop %v1545
        %v1547 = vmul.f32 %v1538, %v1546
        %v1548 = vmul.f32 %v1547, %v595
        %v1549 = vld [vmem:[%s10] sm:$0xff]
        %v1550 = vld [vmem:[%s10 + $0x8] sm:$0xff]
        %v1551 = vld [vmem:[%s11] sm:$0xff]
        %v1552 = vld [vmem:[%s11 + $0x8] sm:$0xff]
        %v1553 = vld [vmem:[%s16] sm:$0x3f]
        %v1554 = vld [vmem:[%s17] sm:$0x3f]
        %1556 = vset.pattern.permute.xlu0 0
        %1557 = vperm.xlu0 %1556, %v1551
        %v1558 = vpop.permute.xlu0 %1557
        %1561 = vset.pattern.permute.xlu0 0
        %1562 = vperm.xlu0 %1561, %v1552
        %v1563 = vpop.permute.xlu0 %1562
        %vm1565 = vcmask 48128
        %v1567 = vsel %vm1565, %v1549, 0
        %v1570 = vsel %vm1565, %v1550, 0
        %v1573 = vsel %vm1528, %v1548, 0
        %1575 = vmatprep.subr.mxu0 0.0
        %1576 = vmatpush1.msra.mxu0 %v1573
        %1577 = vmatprep.subr.mxu0 0.0
        %1578 = vmatpush1.msra.mxu0 0.0
        %1579 = vmatprep.subr.mxu0 0.0
        %1580 = vmatpush1.msra.mxu0 0.0
        %1581 = vmatprep.subr.mxu0 0.0
        %1582 = vmatpush1.msra.mxu0 0.0
        %1583 = vmatprep.subr.mxu0 0.0
        %1584 = vmatpush1.msra.mxu0 0.0
        %1585 = vmatprep.subr.mxu0 0.0
        %1586 = vmatpush1.msra.mxu0 0.0
        %1587 = vmatprep.subr.mxu0 0.0
        %1588 = vmatpush1.msra.mxu0 0.0
        %1589 = vmatprep.subr.mxu0 0.0
        %1590 = vmatpush1.msra.mxu0 0.0
        %1591 = vmatprep.subr.mxu0 0.0
        %1592 = vmatpush1.msra.mxu0 0.0
        %1593 = vmatprep.subr.mxu0 0.0
        %1594 = vmatpush1.msra.mxu0 0.0
        %1595 = vmatprep.subr.mxu0 0.0
        %1596 = vmatpush1.msra.mxu0 0.0
        %1597 = vmatprep.subr.mxu0 0.0
        %1598 = vmatpush1.msra.mxu0 0.0
        %1599 = vmatprep.subr.mxu0 0.0
        %1600 = vmatpush1.msra.mxu0 0.0
        %1601 = vmatprep.subr.mxu0 0.0
        %1602 = vmatpush1.msra.mxu0 0.0
        %1603 = vmatprep.subr.mxu0 0.0
        %1604 = vmatpush1.msra.mxu0 0.0
        %1605 = vmatprep.subr.mxu0 0.0
        %1606 = vmatpush1.msra.mxu0 0.0
        %1607 = vmatprep.subr.mxu0 0.0
        %1608 = vmatpush1.msra.mxu0 0.0
        %1609 = vmatprep.subr.mxu0 0.0
        %1610 = vmatpush1.msra.mxu0 0.0
        %1611 = vmatprep.subr.mxu0 0.0
        %1612 = vmatpush1.msra.mxu0 0.0
        %1613 = vmatprep.subr.mxu0 0.0
        %1614 = vmatpush1.msra.mxu0 0.0
        %1615 = vmatprep.subr.mxu0 0.0
        %1616 = vmatpush1.msra.mxu0 0.0
        %1617 = vmatprep.subr.mxu0 0.0
        %1618 = vmatpush1.msra.mxu0 0.0
        %1619 = vmatprep.subr.mxu0 0.0
        %1620 = vmatpush1.msra.mxu0 0.0
        %1621 = vmatprep.subr.mxu0 0.0
        %1622 = vmatpush1.msra.mxu0 0.0
        %1623 = vmatprep.subr.mxu0 0.0
        %1624 = vmatpush1.msra.mxu0 0.0
        %1625 = vmatprep.subr.mxu0 0.0
        %1626 = vmatpush1.msra.mxu0 0.0
        %1627 = vmatprep.subr.mxu0 0.0
        %1628 = vmatpush1.msra.mxu0 0.0
        %1629 = vmatprep.subr.mxu0 0.0
        %1630 = vmatpush1.msra.mxu0 0.0
        %1631 = vmatprep.subr.mxu0 0.0
        %1632 = vmatpush1.msra.mxu0 0.0
        %1633 = vmatprep.subr.mxu0 0.0
        %1634 = vmatpush1.msra.mxu0 0.0
        %1635 = vmatprep.subr.mxu0 0.0
        %1636 = vmatpush1.msra.mxu0 0.0
        %1637 = vmatprep.subr.mxu0 0.0
        %1638 = vmatpush1.msra.mxu0 0.0
        %1639 = vmatprep.mubr.f32.mxu0 0.0
        %1640 = vmatmul.mubr.f32.gmra.mrb[0].mxu0 %v1567
        %v1641 = vpop.f32.mrb[0].mxu0
        %v1642 = vadd.f32 %v1558, %v1641
        %v1643 = vpop.f32.mrb[0].mxu0
        %1644 = vmatprep.mubr.f32.mxu0 0.0
        %1645 = vmatmul.mubr.f32.gmra.mrb[0].mxu0 %v1570
        %v1646 = vpop.f32.mrb[0].mxu0
        %v1647 = vadd.f32 %v1563, %v1646
        %v1648 = vpop.f32.mrb[0].mxu0
        %1649 = vdwg.mxu0
        %v1650 = vld [vmem:[%s12] sm:$0xff]
        %v1651 = vld [vmem:[%s12 + $0x8] sm:$0xff]
        %v1652 = vld [vmem:[%s12 + $0x10] sm:$0xff]
        %v1653 = vld [vmem:[%s12 + $0x18] sm:$0xff]
        %v1654 = vld [vmem:[%s12 + $0x20] sm:$0xff]
        %v1655 = vld [vmem:[%s12 + $0x28] sm:$0xff]
        %v1657 = vsel %vm701, %v1650, 0
        %v1660 = vsel %vm701, %v1651, 0
        %v1663 = vsel %vm701, %v1652, 0
        %v1666 = vsel %vm701, %v1653, 0
        %v1669 = vsel %vm701, %v1654, 0
        %v1672 = vsel %vm701, %v1655, 0
        %1674 = vmatprep.subr.mxu0 0.0
        %1675 = vmatpush1.msra.mxu0 %v1642
        %1676 = vmatprep.subr.mxu0 0.0
        %1677 = vmatpush1.msra.mxu0 %v1647
        %1678 = vmatprep.subr.mxu0 0.0
        %1679 = vmatpush1.msra.mxu0 0.0
        %1680 = vmatprep.subr.mxu0 0.0
        %1681 = vmatpush1.msra.mxu0 0.0
        %1682 = vmatprep.subr.mxu0 0.0
        %1683 = vmatpush1.msra.mxu0 0.0
        %1684 = vmatprep.subr.mxu0 0.0
        %1685 = vmatpush1.msra.mxu0 0.0
        %1686 = vmatprep.subr.mxu0 0.0
        %1687 = vmatpush1.msra.mxu0 0.0
        %1688 = vmatprep.subr.mxu0 0.0
        %1689 = vmatpush1.msra.mxu0 0.0
        %1690 = vmatprep.subr.mxu0 0.0
        %1691 = vmatpush1.msra.mxu0 0.0
        %1692 = vmatprep.subr.mxu0 0.0
        %1693 = vmatpush1.msra.mxu0 0.0
        %1694 = vmatprep.subr.mxu0 0.0
        %1695 = vmatpush1.msra.mxu0 0.0
        %1696 = vmatprep.subr.mxu0 0.0
        %1697 = vmatpush1.msra.mxu0 0.0
        %1698 = vmatprep.subr.mxu0 0.0
        %1699 = vmatpush1.msra.mxu0 0.0
        %1700 = vmatprep.subr.mxu0 0.0
        %1701 = vmatpush1.msra.mxu0 0.0
        %1702 = vmatprep.subr.mxu0 0.0
        %1703 = vmatpush1.msra.mxu0 0.0
        %1704 = vmatprep.subr.mxu0 0.0
        %1705 = vmatpush1.msra.mxu0 0.0
        %1706 = vmatprep.subr.mxu0 0.0
        %1707 = vmatpush1.msra.mxu0 0.0
        %1708 = vmatprep.subr.mxu0 0.0
        %1709 = vmatpush1.msra.mxu0 0.0
        %1710 = vmatprep.subr.mxu0 0.0
        %1711 = vmatpush1.msra.mxu0 0.0
        %1712 = vmatprep.subr.mxu0 0.0
        %1713 = vmatpush1.msra.mxu0 0.0
        %1714 = vmatprep.subr.mxu0 0.0
        %1715 = vmatpush1.msra.mxu0 0.0
        %1716 = vmatprep.subr.mxu0 0.0
        %1717 = vmatpush1.msra.mxu0 0.0
        %1718 = vmatprep.subr.mxu0 0.0
        %1719 = vmatpush1.msra.mxu0 0.0
        %1720 = vmatprep.subr.mxu0 0.0
        %1721 = vmatpush1.msra.mxu0 0.0
        %1722 = vmatprep.subr.mxu0 0.0
        %1723 = vmatpush1.msra.mxu0 0.0
        %1724 = vmatprep.subr.mxu0 0.0
        %1725 = vmatpush1.msra.mxu0 0.0
        %1726 = vmatprep.subr.mxu0 0.0
        %1727 = vmatpush1.msra.mxu0 0.0
        %1728 = vmatprep.subr.mxu0 0.0
        %1729 = vmatpush1.msra.mxu0 0.0
        %1730 = vmatprep.subr.mxu0 0.0
        %1731 = vmatpush1.msra.mxu0 0.0
        %1732 = vmatprep.subr.mxu0 0.0
        %1733 = vmatpush1.msra.mxu0 0.0
        %1734 = vmatprep.subr.mxu0 0.0
        %1735 = vmatpush1.msra.mxu0 0.0
        %1736 = vmatprep.subr.mxu0 0.0
        %1737 = vmatpush1.msra.mxu0 0.0
        %1738 = vmatprep.mubr.f32.mxu0 0.0
        %1739 = vmatmul.mubr.f32.gmra.mrb[0].mxu0 %v1657
        %v1740 = vpop.f32.mrb[0].mxu0
        %v1741 = vadd.f32 0.0, %v1740
        %v1742 = vpop.f32.mrb[0].mxu0
        %1743 = vmatprep.mubr.f32.mxu0 0.0
        %1744 = vmatmul.mubr.f32.gmra.mrb[0].mxu0 %v1660
        %v1745 = vpop.f32.mrb[0].mxu0
        %v1746 = vadd.f32 0.0, %v1745
        %v1747 = vpop.f32.mrb[0].mxu0
        %1748 = vmatprep.mubr.f32.mxu0 0.0
        %1749 = vmatmul.mubr.f32.gmra.mrb[0].mxu0 %v1663
        %v1750 = vpop.f32.mrb[0].mxu0
        %v1751 = vadd.f32 0.0, %v1750
        %v1752 = vpop.f32.mrb[0].mxu0
        %1753 = vmatprep.mubr.f32.mxu0 0.0
        %1754 = vmatmul.mubr.f32.gmra.mrb[0].mxu0 %v1666
        %v1755 = vpop.f32.mrb[0].mxu0
        %v1756 = vadd.f32 0.0, %v1755
        %v1757 = vpop.f32.mrb[0].mxu0
        %1758 = vmatprep.mubr.f32.mxu0 0.0
        %1759 = vmatmul.mubr.f32.gmra.mrb[0].mxu0 %v1669
        %v1760 = vpop.f32.mrb[0].mxu0
        %v1761 = vadd.f32 0.0, %v1760
        %v1762 = vpop.f32.mrb[0].mxu0
        %1763 = vmatprep.mubr.f32.mxu0 0.0
        %1764 = vmatmul.mubr.f32.gmra.mrb[0].mxu0 %v1672
        %v1765 = vpop.f32.mrb[0].mxu0
        %v1766 = vadd.f32 0.0, %v1765
        %v1767 = vpop.f32.mrb[0].mxu0
        %1768 = vdwg.mxu0
        %1769 = vrot.lane.b32.xlu0 %v1741, 1
        %v1770 = vpop.permute.xlu0 %1769
        %1771 = vrot.lane.b32.xlu0 %v1746, 1
        %v1772 = vpop.permute.xlu0 %1771
        %v1773 = vsel %vm585, %v1770, 0.0
        %v1774 = vsel %vm585, %v1772, 0.0
        %v1775 = vadd.f32 %v1773, %v1751
        %v1776 = vadd.f32 %v1774, %v1756
        %1777 = vrot.lane.b32.xlu0 %v1761, 127
        %v1778 = vpop.permute.xlu0 %1777
        %1779 = vrot.lane.b32.xlu0 %v1766, 127
        %v1780 = vpop.permute.xlu0 %1779
        %v1781 = vsel %vm586, %v1778, 0.0
        %v1782 = vsel %vm586, %v1780, 0.0
        %v1783 = vadd.f32 %v1775, %v1781
        %v1784 = vadd.f32 %v1776, %v1782
        %v1785 = vld [vmem:[%s13] sm:$0xff]
        %v1786 = vld [vmem:[%s13 + $0x8] sm:$0xff]
        %1788 = vset.pattern.permute.xlu0 0
        %1789 = vperm.xlu0 %1788, %v1785
        %v1790 = vpop.permute.xlu0 %1789
        %1793 = vset.pattern.permute.xlu0 0
        %1794 = vperm.xlu0 %1793, %v1786
        %v1795 = vpop.permute.xlu0 %1794
        %v1797 = vadd.f32 %v1783, %v1790
        %v1798 = vadd.f32 %v1784, %v1795
        %v1799 = vmax.f32 %v1797, 0.0
        %v1800 = vmax.f32 %v1798, 0.0
        %v1801 = vld [vmem:[%s14] sm:$0xff]
        %v1802 = vld [vmem:[%s14 + $0x8] sm:$0xff]
        %v1803 = vld [vmem:[%s15] sm:$0xff]
        %v1804 = vld [vmem:[%s15 + $0x8] sm:$0xff]
        %1806 = vset.pattern.permute.xlu0 0
        %1807 = vperm.xlu0 %1806, %v1803
        %v1808 = vpop.permute.xlu0 %1807
        %1811 = vset.pattern.permute.xlu0 0
        %1812 = vperm.xlu0 %1811, %v1804
        %v1813 = vpop.permute.xlu0 %1812
        %v1816 = vsel %vm701, %v1801, 0
        %v1819 = vsel %vm701, %v1802, 0
        %1821 = vmatprep.subr.mxu0 0.0
        %1822 = vmatpush1.msra.mxu0 %v1799
        %1823 = vmatprep.subr.mxu0 0.0
        %1824 = vmatpush1.msra.mxu0 %v1800
        %1825 = vmatprep.subr.mxu0 0.0
        %1826 = vmatpush1.msra.mxu0 0.0
        %1827 = vmatprep.subr.mxu0 0.0
        %1828 = vmatpush1.msra.mxu0 0.0
        %1829 = vmatprep.subr.mxu0 0.0
        %1830 = vmatpush1.msra.mxu0 0.0
        %1831 = vmatprep.subr.mxu0 0.0
        %1832 = vmatpush1.msra.mxu0 0.0
        %1833 = vmatprep.subr.mxu0 0.0
        %1834 = vmatpush1.msra.mxu0 0.0
        %1835 = vmatprep.subr.mxu0 0.0
        %1836 = vmatpush1.msra.mxu0 0.0
        %1837 = vmatprep.subr.mxu0 0.0
        %1838 = vmatpush1.msra.mxu0 0.0
        %1839 = vmatprep.subr.mxu0 0.0
        %1840 = vmatpush1.msra.mxu0 0.0
        %1841 = vmatprep.subr.mxu0 0.0
        %1842 = vmatpush1.msra.mxu0 0.0
        %1843 = vmatprep.subr.mxu0 0.0
        %1844 = vmatpush1.msra.mxu0 0.0
        %1845 = vmatprep.subr.mxu0 0.0
        %1846 = vmatpush1.msra.mxu0 0.0
        %1847 = vmatprep.subr.mxu0 0.0
        %1848 = vmatpush1.msra.mxu0 0.0
        %1849 = vmatprep.subr.mxu0 0.0
        %1850 = vmatpush1.msra.mxu0 0.0
        %1851 = vmatprep.subr.mxu0 0.0
        %1852 = vmatpush1.msra.mxu0 0.0
        %1853 = vmatprep.subr.mxu0 0.0
        %1854 = vmatpush1.msra.mxu0 0.0
        %1855 = vmatprep.subr.mxu0 0.0
        %1856 = vmatpush1.msra.mxu0 0.0
        %1857 = vmatprep.subr.mxu0 0.0
        %1858 = vmatpush1.msra.mxu0 0.0
        %1859 = vmatprep.subr.mxu0 0.0
        %1860 = vmatpush1.msra.mxu0 0.0
        %1861 = vmatprep.subr.mxu0 0.0
        %1862 = vmatpush1.msra.mxu0 0.0
        %1863 = vmatprep.subr.mxu0 0.0
        %1864 = vmatpush1.msra.mxu0 0.0
        %1865 = vmatprep.subr.mxu0 0.0
        %1866 = vmatpush1.msra.mxu0 0.0
        %1867 = vmatprep.subr.mxu0 0.0
        %1868 = vmatpush1.msra.mxu0 0.0
        %1869 = vmatprep.subr.mxu0 0.0
        %1870 = vmatpush1.msra.mxu0 0.0
        %1871 = vmatprep.subr.mxu0 0.0
        %1872 = vmatpush1.msra.mxu0 0.0
        %1873 = vmatprep.subr.mxu0 0.0
        %1874 = vmatpush1.msra.mxu0 0.0
        %1875 = vmatprep.subr.mxu0 0.0
        %1876 = vmatpush1.msra.mxu0 0.0
        %1877 = vmatprep.subr.mxu0 0.0
        %1878 = vmatpush1.msra.mxu0 0.0
        %1879 = vmatprep.subr.mxu0 0.0
        %1880 = vmatpush1.msra.mxu0 0.0
        %1881 = vmatprep.subr.mxu0 0.0
        %1882 = vmatpush1.msra.mxu0 0.0
        %1883 = vmatprep.subr.mxu0 0.0
        %1884 = vmatpush1.msra.mxu0 0.0
        %1885 = vmatprep.mubr.f32.mxu0 0.0
        %1886 = vmatmul.mubr.f32.gmra.mrb[0].mxu0 %v1816
        %v1887 = vpop.f32.mrb[0].mxu0
        %v1888 = vadd.f32 %v1808, %v1887
        %v1889 = vpop.f32.mrb[0].mxu0
        %1890 = vmatprep.mubr.f32.mxu0 0.0
        %1891 = vmatmul.mubr.f32.gmra.mrb[0].mxu0 %v1819
        %v1892 = vpop.f32.mrb[0].mxu0
        %v1893 = vadd.f32 %v1813, %v1892
        %v1894 = vpop.f32.mrb[0].mxu0
        %1895 = vdwg.mxu0
        %v1896 = vadd.f32 %v1642, %v1888
        %v1897 = vadd.f32 %v1647, %v1893
        %s1898 = scalar_lea.vmem %s12, 48
        %v1899 = vld [vmem:[%s1898] sm:$0xff]
        %v1900 = vld [vmem:[%s1898 + $0x8] sm:$0xff]
        %v1901 = vld [vmem:[%s1898 + $0x10] sm:$0xff]
        %v1902 = vld [vmem:[%s1898 + $0x18] sm:$0xff]
        %v1903 = vld [vmem:[%s1898 + $0x20] sm:$0xff]
        %v1904 = vld [vmem:[%s1898 + $0x28] sm:$0xff]
        %v1906 = vsel %vm701, %v1899, 0
        %v1909 = vsel %vm701, %v1900, 0
        %v1912 = vsel %vm701, %v1901, 0
        %v1915 = vsel %vm701, %v1902, 0
        %v1918 = vsel %vm701, %v1903, 0
        %v1921 = vsel %vm701, %v1904, 0
        %1923 = vmatprep.subr.mxu0 0.0
        %1924 = vmatpush1.msra.mxu0 %v1896
        %1925 = vmatprep.subr.mxu0 0.0
        %1926 = vmatpush1.msra.mxu0 %v1897
        %1927 = vmatprep.subr.mxu0 0.0
        %1928 = vmatpush1.msra.mxu0 0.0
        %1929 = vmatprep.subr.mxu0 0.0
        %1930 = vmatpush1.msra.mxu0 0.0
        %1931 = vmatprep.subr.mxu0 0.0
        %1932 = vmatpush1.msra.mxu0 0.0
        %1933 = vmatprep.subr.mxu0 0.0
        %1934 = vmatpush1.msra.mxu0 0.0
        %1935 = vmatprep.subr.mxu0 0.0
        %1936 = vmatpush1.msra.mxu0 0.0
        %1937 = vmatprep.subr.mxu0 0.0
        %1938 = vmatpush1.msra.mxu0 0.0
        %1939 = vmatprep.subr.mxu0 0.0
        %1940 = vmatpush1.msra.mxu0 0.0
        %1941 = vmatprep.subr.mxu0 0.0
        %1942 = vmatpush1.msra.mxu0 0.0
        %1943 = vmatprep.subr.mxu0 0.0
        %1944 = vmatpush1.msra.mxu0 0.0
        %1945 = vmatprep.subr.mxu0 0.0
        %1946 = vmatpush1.msra.mxu0 0.0
        %1947 = vmatprep.subr.mxu0 0.0
        %1948 = vmatpush1.msra.mxu0 0.0
        %1949 = vmatprep.subr.mxu0 0.0
        %1950 = vmatpush1.msra.mxu0 0.0
        %1951 = vmatprep.subr.mxu0 0.0
        %1952 = vmatpush1.msra.mxu0 0.0
        %1953 = vmatprep.subr.mxu0 0.0
        %1954 = vmatpush1.msra.mxu0 0.0
        %1955 = vmatprep.subr.mxu0 0.0
        %1956 = vmatpush1.msra.mxu0 0.0
        %1957 = vmatprep.subr.mxu0 0.0
        %1958 = vmatpush1.msra.mxu0 0.0
        %1959 = vmatprep.subr.mxu0 0.0
        %1960 = vmatpush1.msra.mxu0 0.0
        %1961 = vmatprep.subr.mxu0 0.0
        %1962 = vmatpush1.msra.mxu0 0.0
        %1963 = vmatprep.subr.mxu0 0.0
        %1964 = vmatpush1.msra.mxu0 0.0
        %1965 = vmatprep.subr.mxu0 0.0
        %1966 = vmatpush1.msra.mxu0 0.0
        %1967 = vmatprep.subr.mxu0 0.0
        %1968 = vmatpush1.msra.mxu0 0.0
        %1969 = vmatprep.subr.mxu0 0.0
        %1970 = vmatpush1.msra.mxu0 0.0
        %1971 = vmatprep.subr.mxu0 0.0
        %1972 = vmatpush1.msra.mxu0 0.0
        %1973 = vmatprep.subr.mxu0 0.0
        %1974 = vmatpush1.msra.mxu0 0.0
        %1975 = vmatprep.subr.mxu0 0.0
        %1976 = vmatpush1.msra.mxu0 0.0
        %1977 = vmatprep.subr.mxu0 0.0
        %1978 = vmatpush1.msra.mxu0 0.0
        %1979 = vmatprep.subr.mxu0 0.0
        %1980 = vmatpush1.msra.mxu0 0.0
        %1981 = vmatprep.subr.mxu0 0.0
        %1982 = vmatpush1.msra.mxu0 0.0
        %1983 = vmatprep.subr.mxu0 0.0
        %1984 = vmatpush1.msra.mxu0 0.0
        %1985 = vmatprep.subr.mxu0 0.0
        %1986 = vmatpush1.msra.mxu0 0.0
        %1987 = vmatprep.mubr.f32.mxu0 0.0
        %1988 = vmatmul.mubr.f32.gmra.mrb[0].mxu0 %v1906
        %v1989 = vpop.f32.mrb[0].mxu0
        %v1990 = vadd.f32 0.0, %v1989
        %v1991 = vpop.f32.mrb[0].mxu0
        %1992 = vmatprep.mubr.f32.mxu0 0.0
        %1993 = vmatmul.mubr.f32.gmra.mrb[0].mxu0 %v1909
        %v1994 = vpop.f32.mrb[0].mxu0
        %v1995 = vadd.f32 0.0, %v1994
        %v1996 = vpop.f32.mrb[0].mxu0
        %1997 = vmatprep.mubr.f32.mxu0 0.0
        %1998 = vmatmul.mubr.f32.gmra.mrb[0].mxu0 %v1912
        %v1999 = vpop.f32.mrb[0].mxu0
        %v2000 = vadd.f32 0.0, %v1999
        %v2001 = vpop.f32.mrb[0].mxu0
        %2002 = vmatprep.mubr.f32.mxu0 0.0
        %2003 = vmatmul.mubr.f32.gmra.mrb[0].mxu0 %v1915
        %v2004 = vpop.f32.mrb[0].mxu0
        %v2005 = vadd.f32 0.0, %v2004
        %v2006 = vpop.f32.mrb[0].mxu0
        %2007 = vmatprep.mubr.f32.mxu0 0.0
        %2008 = vmatmul.mubr.f32.gmra.mrb[0].mxu0 %v1918
        %v2009 = vpop.f32.mrb[0].mxu0
        %v2010 = vadd.f32 0.0, %v2009
        %v2011 = vpop.f32.mrb[0].mxu0
        %2012 = vmatprep.mubr.f32.mxu0 0.0
        %2013 = vmatmul.mubr.f32.gmra.mrb[0].mxu0 %v1921
        %v2014 = vpop.f32.mrb[0].mxu0
        %v2015 = vadd.f32 0.0, %v2014
        %v2016 = vpop.f32.mrb[0].mxu0
        %2017 = vdwg.mxu0
        %2018 = vrot.lane.b32.xlu0 %v1990, 2
        %v2019 = vpop.permute.xlu0 %2018
        %2020 = vrot.lane.b32.xlu0 %v1995, 2
        %v2021 = vpop.permute.xlu0 %2020
        %v2022 = vsel %vm587, %v2019, 0.0
        %v2023 = vsel %vm587, %v2021, 0.0
        %v2024 = vadd.f32 %v2022, %v2000
        %v2025 = vadd.f32 %v2023, %v2005
        %2026 = vrot.lane.b32.xlu0 %v2010, 126
        %v2027 = vpop.permute.xlu0 %2026
        %2028 = vrot.lane.b32.xlu0 %v2015, 126
        %v2029 = vpop.permute.xlu0 %2028
        %v2030 = vsel %vm588, %v2027, 0.0
        %v2031 = vsel %vm588, %v2029, 0.0
        %v2032 = vadd.f32 %v2024, %v2030
        %v2033 = vadd.f32 %v2025, %v2031
        %s2034 = scalar_lea.vmem %s13, 16
        %v2035 = vld [vmem:[%s2034] sm:$0xff]
        %v2036 = vld [vmem:[%s2034 + $0x8] sm:$0xff]
        %2038 = vset.pattern.permute.xlu0 0
        %2039 = vperm.xlu0 %2038, %v2035
        %v2040 = vpop.permute.xlu0 %2039
        %2043 = vset.pattern.permute.xlu0 0
        %2044 = vperm.xlu0 %2043, %v2036
        %v2045 = vpop.permute.xlu0 %2044
        %v2047 = vadd.f32 %v2032, %v2040
        %v2048 = vadd.f32 %v2033, %v2045
        %v2049 = vmax.f32 %v2047, 0.0
        %v2050 = vmax.f32 %v2048, 0.0
        %s2051 = scalar_lea.vmem %s14, 16
        %v2052 = vld [vmem:[%s2051] sm:$0xff]
        %v2053 = vld [vmem:[%s2051 + $0x8] sm:$0xff]
        %s2054 = scalar_lea.vmem %s15, 16
        %v2055 = vld [vmem:[%s2054] sm:$0xff]
        %v2056 = vld [vmem:[%s2054 + $0x8] sm:$0xff]
        %2058 = vset.pattern.permute.xlu0 0
        %2059 = vperm.xlu0 %2058, %v2055
        %v2060 = vpop.permute.xlu0 %2059
        %2063 = vset.pattern.permute.xlu0 0
        %2064 = vperm.xlu0 %2063, %v2056
        %v2065 = vpop.permute.xlu0 %2064
        %v2068 = vsel %vm701, %v2052, 0
        %v2071 = vsel %vm701, %v2053, 0
        %2073 = vmatprep.subr.mxu0 0.0
        %2074 = vmatpush1.msra.mxu0 %v2049
        %2075 = vmatprep.subr.mxu0 0.0
        %2076 = vmatpush1.msra.mxu0 %v2050
        %2077 = vmatprep.subr.mxu0 0.0
        %2078 = vmatpush1.msra.mxu0 0.0
        %2079 = vmatprep.subr.mxu0 0.0
        %2080 = vmatpush1.msra.mxu0 0.0
        %2081 = vmatprep.subr.mxu0 0.0
        %2082 = vmatpush1.msra.mxu0 0.0
        %2083 = vmatprep.subr.mxu0 0.0
        %2084 = vmatpush1.msra.mxu0 0.0
        %2085 = vmatprep.subr.mxu0 0.0
        %2086 = vmatpush1.msra.mxu0 0.0
        %2087 = vmatprep.subr.mxu0 0.0
        %2088 = vmatpush1.msra.mxu0 0.0
        %2089 = vmatprep.subr.mxu0 0.0
        %2090 = vmatpush1.msra.mxu0 0.0
        %2091 = vmatprep.subr.mxu0 0.0
        %2092 = vmatpush1.msra.mxu0 0.0
        %2093 = vmatprep.subr.mxu0 0.0
        %2094 = vmatpush1.msra.mxu0 0.0
        %2095 = vmatprep.subr.mxu0 0.0
        %2096 = vmatpush1.msra.mxu0 0.0
        %2097 = vmatprep.subr.mxu0 0.0
        %2098 = vmatpush1.msra.mxu0 0.0
        %2099 = vmatprep.subr.mxu0 0.0
        %2100 = vmatpush1.msra.mxu0 0.0
        %2101 = vmatprep.subr.mxu0 0.0
        %2102 = vmatpush1.msra.mxu0 0.0
        %2103 = vmatprep.subr.mxu0 0.0
        %2104 = vmatpush1.msra.mxu0 0.0
        %2105 = vmatprep.subr.mxu0 0.0
        %2106 = vmatpush1.msra.mxu0 0.0
        %2107 = vmatprep.subr.mxu0 0.0
        %2108 = vmatpush1.msra.mxu0 0.0
        %2109 = vmatprep.subr.mxu0 0.0
        %2110 = vmatpush1.msra.mxu0 0.0
        %2111 = vmatprep.subr.mxu0 0.0
        %2112 = vmatpush1.msra.mxu0 0.0
        %2113 = vmatprep.subr.mxu0 0.0
        %2114 = vmatpush1.msra.mxu0 0.0
        %2115 = vmatprep.subr.mxu0 0.0
        %2116 = vmatpush1.msra.mxu0 0.0
        %2117 = vmatprep.subr.mxu0 0.0
        %2118 = vmatpush1.msra.mxu0 0.0
        %2119 = vmatprep.subr.mxu0 0.0
        %2120 = vmatpush1.msra.mxu0 0.0
        %2121 = vmatprep.subr.mxu0 0.0
        %2122 = vmatpush1.msra.mxu0 0.0
        %2123 = vmatprep.subr.mxu0 0.0
        %2124 = vmatpush1.msra.mxu0 0.0
        %2125 = vmatprep.subr.mxu0 0.0
        %2126 = vmatpush1.msra.mxu0 0.0
        %2127 = vmatprep.subr.mxu0 0.0
        %2128 = vmatpush1.msra.mxu0 0.0
        %2129 = vmatprep.subr.mxu0 0.0
        %2130 = vmatpush1.msra.mxu0 0.0
        %2131 = vmatprep.subr.mxu0 0.0
        %2132 = vmatpush1.msra.mxu0 0.0
        %2133 = vmatprep.subr.mxu0 0.0
        %2134 = vmatpush1.msra.mxu0 0.0
        %2135 = vmatprep.subr.mxu0 0.0
        %2136 = vmatpush1.msra.mxu0 0.0
        %2137 = vmatprep.mubr.f32.mxu0 0.0
        %2138 = vmatmul.mubr.f32.gmra.mrb[0].mxu0 %v2068
        %v2139 = vpop.f32.mrb[0].mxu0
        %v2140 = vadd.f32 %v2060, %v2139
        %v2141 = vpop.f32.mrb[0].mxu0
        %2142 = vmatprep.mubr.f32.mxu0 0.0
        %2143 = vmatmul.mubr.f32.gmra.mrb[0].mxu0 %v2071
        %v2144 = vpop.f32.mrb[0].mxu0
        %v2145 = vadd.f32 %v2065, %v2144
        %v2146 = vpop.f32.mrb[0].mxu0
        %2147 = vdwg.mxu0
        %v2148 = vadd.f32 %v1896, %v2140
        %v2149 = vadd.f32 %v1897, %v2145
        %s2150 = scalar_lea.vmem %s12, 96
        %v2151 = vld [vmem:[%s2150] sm:$0xff]
        %v2152 = vld [vmem:[%s2150 + $0x8] sm:$0xff]
        %v2153 = vld [vmem:[%s2150 + $0x10] sm:$0xff]
        %v2154 = vld [vmem:[%s2150 + $0x18] sm:$0xff]
        %v2155 = vld [vmem:[%s2150 + $0x20] sm:$0xff]
        %v2156 = vld [vmem:[%s2150 + $0x28] sm:$0xff]
        %v2158 = vsel %vm701, %v2151, 0
        %v2161 = vsel %vm701, %v2152, 0
        %v2164 = vsel %vm701, %v2153, 0
        %v2167 = vsel %vm701, %v2154, 0
        %v2170 = vsel %vm701, %v2155, 0
        %v2173 = vsel %vm701, %v2156, 0
        %2175 = vmatprep.subr.mxu0 0.0
        %2176 = vmatpush1.msra.mxu0 %v2148
        %2177 = vmatprep.subr.mxu0 0.0
        %2178 = vmatpush1.msra.mxu0 %v2149
        %2179 = vmatprep.subr.mxu0 0.0
        %2180 = vmatpush1.msra.mxu0 0.0
        %2181 = vmatprep.subr.mxu0 0.0
        %2182 = vmatpush1.msra.mxu0 0.0
        %2183 = vmatprep.subr.mxu0 0.0
        %2184 = vmatpush1.msra.mxu0 0.0
        %2185 = vmatprep.subr.mxu0 0.0
        %2186 = vmatpush1.msra.mxu0 0.0
        %2187 = vmatprep.subr.mxu0 0.0
        %2188 = vmatpush1.msra.mxu0 0.0
        %2189 = vmatprep.subr.mxu0 0.0
        %2190 = vmatpush1.msra.mxu0 0.0
        %2191 = vmatprep.subr.mxu0 0.0
        %2192 = vmatpush1.msra.mxu0 0.0
        %2193 = vmatprep.subr.mxu0 0.0
        %2194 = vmatpush1.msra.mxu0 0.0
        %2195 = vmatprep.subr.mxu0 0.0
        %2196 = vmatpush1.msra.mxu0 0.0
        %2197 = vmatprep.subr.mxu0 0.0
        %2198 = vmatpush1.msra.mxu0 0.0
        %2199 = vmatprep.subr.mxu0 0.0
        %2200 = vmatpush1.msra.mxu0 0.0
        %2201 = vmatprep.subr.mxu0 0.0
        %2202 = vmatpush1.msra.mxu0 0.0
        %2203 = vmatprep.subr.mxu0 0.0
        %2204 = vmatpush1.msra.mxu0 0.0
        %2205 = vmatprep.subr.mxu0 0.0
        %2206 = vmatpush1.msra.mxu0 0.0
        %2207 = vmatprep.subr.mxu0 0.0
        %2208 = vmatpush1.msra.mxu0 0.0
        %2209 = vmatprep.subr.mxu0 0.0
        %2210 = vmatpush1.msra.mxu0 0.0
        %2211 = vmatprep.subr.mxu0 0.0
        %2212 = vmatpush1.msra.mxu0 0.0
        %2213 = vmatprep.subr.mxu0 0.0
        %2214 = vmatpush1.msra.mxu0 0.0
        %2215 = vmatprep.subr.mxu0 0.0
        %2216 = vmatpush1.msra.mxu0 0.0
        %2217 = vmatprep.subr.mxu0 0.0
        %2218 = vmatpush1.msra.mxu0 0.0
        %2219 = vmatprep.subr.mxu0 0.0
        %2220 = vmatpush1.msra.mxu0 0.0
        %2221 = vmatprep.subr.mxu0 0.0
        %2222 = vmatpush1.msra.mxu0 0.0
        %2223 = vmatprep.subr.mxu0 0.0
        %2224 = vmatpush1.msra.mxu0 0.0
        %2225 = vmatprep.subr.mxu0 0.0
        %2226 = vmatpush1.msra.mxu0 0.0
        %2227 = vmatprep.subr.mxu0 0.0
        %2228 = vmatpush1.msra.mxu0 0.0
        %2229 = vmatprep.subr.mxu0 0.0
        %2230 = vmatpush1.msra.mxu0 0.0
        %2231 = vmatprep.subr.mxu0 0.0
        %2232 = vmatpush1.msra.mxu0 0.0
        %2233 = vmatprep.subr.mxu0 0.0
        %2234 = vmatpush1.msra.mxu0 0.0
        %2235 = vmatprep.subr.mxu0 0.0
        %2236 = vmatpush1.msra.mxu0 0.0
        %2237 = vmatprep.subr.mxu0 0.0
        %2238 = vmatpush1.msra.mxu0 0.0
        %2239 = vmatprep.mubr.f32.mxu0 0.0
        %2240 = vmatmul.mubr.f32.gmra.mrb[0].mxu0 %v2158
        %v2241 = vpop.f32.mrb[0].mxu0
        %v2242 = vadd.f32 0.0, %v2241
        %v2243 = vpop.f32.mrb[0].mxu0
        %2244 = vmatprep.mubr.f32.mxu0 0.0
        %2245 = vmatmul.mubr.f32.gmra.mrb[0].mxu0 %v2161
        %v2246 = vpop.f32.mrb[0].mxu0
        %v2247 = vadd.f32 0.0, %v2246
        %v2248 = vpop.f32.mrb[0].mxu0
        %2249 = vmatprep.mubr.f32.mxu0 0.0
        %2250 = vmatmul.mubr.f32.gmra.mrb[0].mxu0 %v2164
        %v2251 = vpop.f32.mrb[0].mxu0
        %v2252 = vadd.f32 0.0, %v2251
        %v2253 = vpop.f32.mrb[0].mxu0
        %2254 = vmatprep.mubr.f32.mxu0 0.0
        %2255 = vmatmul.mubr.f32.gmra.mrb[0].mxu0 %v2167
        %v2256 = vpop.f32.mrb[0].mxu0
        %v2257 = vadd.f32 0.0, %v2256
        %v2258 = vpop.f32.mrb[0].mxu0
        %2259 = vmatprep.mubr.f32.mxu0 0.0
        %2260 = vmatmul.mubr.f32.gmra.mrb[0].mxu0 %v2170
        %v2261 = vpop.f32.mrb[0].mxu0
        %v2262 = vadd.f32 0.0, %v2261
        %v2263 = vpop.f32.mrb[0].mxu0
        %2264 = vmatprep.mubr.f32.mxu0 0.0
        %2265 = vmatmul.mubr.f32.gmra.mrb[0].mxu0 %v2173
        %v2266 = vpop.f32.mrb[0].mxu0
        %v2267 = vadd.f32 0.0, %v2266
        %v2268 = vpop.f32.mrb[0].mxu0
        %2269 = vdwg.mxu0
        %2270 = vrot.lane.b32.xlu0 %v2242, 4
        %v2271 = vpop.permute.xlu0 %2270
        %2272 = vrot.lane.b32.xlu0 %v2247, 4
        %v2273 = vpop.permute.xlu0 %2272
        %v2274 = vsel %vm589, %v2271, 0.0
        %v2275 = vsel %vm589, %v2273, 0.0
        %v2276 = vadd.f32 %v2274, %v2252
        %v2277 = vadd.f32 %v2275, %v2257
        %2278 = vrot.lane.b32.xlu0 %v2262, 124
        %v2279 = vpop.permute.xlu0 %2278
        %2280 = vrot.lane.b32.xlu0 %v2267, 124
        %v2281 = vpop.permute.xlu0 %2280
        %v2282 = vsel %vm590, %v2279, 0.0
        %v2283 = vsel %vm590, %v2281, 0.0
        %v2284 = vadd.f32 %v2276, %v2282
        %v2285 = vadd.f32 %v2277, %v2283
        %s2286 = scalar_lea.vmem %s13, 32
        %v2287 = vld [vmem:[%s2286] sm:$0xff]
        %v2288 = vld [vmem:[%s2286 + $0x8] sm:$0xff]
        %2290 = vset.pattern.permute.xlu0 0
        %2291 = vperm.xlu0 %2290, %v2287
        %v2292 = vpop.permute.xlu0 %2291
        %2295 = vset.pattern.permute.xlu0 0
        %2296 = vperm.xlu0 %2295, %v2288
        %v2297 = vpop.permute.xlu0 %2296
        %v2299 = vadd.f32 %v2284, %v2292
        %v2300 = vadd.f32 %v2285, %v2297
        %v2301 = vmax.f32 %v2299, 0.0
        %v2302 = vmax.f32 %v2300, 0.0
        %s2303 = scalar_lea.vmem %s14, 32
        %v2304 = vld [vmem:[%s2303] sm:$0xff]
        %v2305 = vld [vmem:[%s2303 + $0x8] sm:$0xff]
        %s2306 = scalar_lea.vmem %s15, 32
        %v2307 = vld [vmem:[%s2306] sm:$0xff]
        %v2308 = vld [vmem:[%s2306 + $0x8] sm:$0xff]
        %2310 = vset.pattern.permute.xlu0 0
        %2311 = vperm.xlu0 %2310, %v2307
        %v2312 = vpop.permute.xlu0 %2311
        %2315 = vset.pattern.permute.xlu0 0
        %2316 = vperm.xlu0 %2315, %v2308
        %v2317 = vpop.permute.xlu0 %2316
        %v2320 = vsel %vm701, %v2304, 0
        %v2323 = vsel %vm701, %v2305, 0
        %2325 = vmatprep.subr.mxu0 0.0
        %2326 = vmatpush1.msra.mxu0 %v2301
        %2327 = vmatprep.subr.mxu0 0.0
        %2328 = vmatpush1.msra.mxu0 %v2302
        %2329 = vmatprep.subr.mxu0 0.0
        %2330 = vmatpush1.msra.mxu0 0.0
        %2331 = vmatprep.subr.mxu0 0.0
        %2332 = vmatpush1.msra.mxu0 0.0
        %2333 = vmatprep.subr.mxu0 0.0
        %2334 = vmatpush1.msra.mxu0 0.0
        %2335 = vmatprep.subr.mxu0 0.0
        %2336 = vmatpush1.msra.mxu0 0.0
        %2337 = vmatprep.subr.mxu0 0.0
        %2338 = vmatpush1.msra.mxu0 0.0
        %2339 = vmatprep.subr.mxu0 0.0
        %2340 = vmatpush1.msra.mxu0 0.0
        %2341 = vmatprep.subr.mxu0 0.0
        %2342 = vmatpush1.msra.mxu0 0.0
        %2343 = vmatprep.subr.mxu0 0.0
        %2344 = vmatpush1.msra.mxu0 0.0
        %2345 = vmatprep.subr.mxu0 0.0
        %2346 = vmatpush1.msra.mxu0 0.0
        %2347 = vmatprep.subr.mxu0 0.0
        %2348 = vmatpush1.msra.mxu0 0.0
        %2349 = vmatprep.subr.mxu0 0.0
        %2350 = vmatpush1.msra.mxu0 0.0
        %2351 = vmatprep.subr.mxu0 0.0
        %2352 = vmatpush1.msra.mxu0 0.0
        %2353 = vmatprep.subr.mxu0 0.0
        %2354 = vmatpush1.msra.mxu0 0.0
        %2355 = vmatprep.subr.mxu0 0.0
        %2356 = vmatpush1.msra.mxu0 0.0
        %2357 = vmatprep.subr.mxu0 0.0
        %2358 = vmatpush1.msra.mxu0 0.0
        %2359 = vmatprep.subr.mxu0 0.0
        %2360 = vmatpush1.msra.mxu0 0.0
        %2361 = vmatprep.subr.mxu0 0.0
        %2362 = vmatpush1.msra.mxu0 0.0
        %2363 = vmatprep.subr.mxu0 0.0
        %2364 = vmatpush1.msra.mxu0 0.0
        %2365 = vmatprep.subr.mxu0 0.0
        %2366 = vmatpush1.msra.mxu0 0.0
        %2367 = vmatprep.subr.mxu0 0.0
        %2368 = vmatpush1.msra.mxu0 0.0
        %2369 = vmatprep.subr.mxu0 0.0
        %2370 = vmatpush1.msra.mxu0 0.0
        %2371 = vmatprep.subr.mxu0 0.0
        %2372 = vmatpush1.msra.mxu0 0.0
        %2373 = vmatprep.subr.mxu0 0.0
        %2374 = vmatpush1.msra.mxu0 0.0
        %2375 = vmatprep.subr.mxu0 0.0
        %2376 = vmatpush1.msra.mxu0 0.0
        %2377 = vmatprep.subr.mxu0 0.0
        %2378 = vmatpush1.msra.mxu0 0.0
        %2379 = vmatprep.subr.mxu0 0.0
        %2380 = vmatpush1.msra.mxu0 0.0
        %2381 = vmatprep.subr.mxu0 0.0
        %2382 = vmatpush1.msra.mxu0 0.0
        %2383 = vmatprep.subr.mxu0 0.0
        %2384 = vmatpush1.msra.mxu0 0.0
        %2385 = vmatprep.subr.mxu0 0.0
        %2386 = vmatpush1.msra.mxu0 0.0
        %2387 = vmatprep.subr.mxu0 0.0
        %2388 = vmatpush1.msra.mxu0 0.0
        %2389 = vmatprep.mubr.f32.mxu0 0.0
        %2390 = vmatmul.mubr.f32.gmra.mrb[0].mxu0 %v2320
        %v2391 = vpop.f32.mrb[0].mxu0
        %v2392 = vadd.f32 %v2312, %v2391
        %v2393 = vpop.f32.mrb[0].mxu0
        %2394 = vmatprep.mubr.f32.mxu0 0.0
        %2395 = vmatmul.mubr.f32.gmra.mrb[0].mxu0 %v2323
        %v2396 = vpop.f32.mrb[0].mxu0
        %v2397 = vadd.f32 %v2317, %v2396
        %v2398 = vpop.f32.mrb[0].mxu0
        %2399 = vdwg.mxu0
        %v2400 = vadd.f32 %v2148, %v2392
        %v2401 = vadd.f32 %v2149, %v2397
        %2403 = vset.pattern.permute.xlu0 0
        %2404 = vperm.xlu0 %2403, %v1554
        %v2405 = vpop.permute.xlu0 %2404
        %v2408 = vsel %vm701, %v1553, 0
        %2410 = vmatprep.subr.mxu0 0.0
        %2411 = vmatpush1.msra.mxu0 %v2400
        %2412 = vmatprep.subr.mxu0 0.0
        %2413 = vmatpush1.msra.mxu0 %v2401
        %2414 = vmatprep.subr.mxu0 0.0
        %2415 = vmatpush1.msra.mxu0 0.0
        %2416 = vmatprep.subr.mxu0 0.0
        %2417 = vmatpush1.msra.mxu0 0.0
        %2418 = vmatprep.subr.mxu0 0.0
        %2419 = vmatpush1.msra.mxu0 0.0
        %2420 = vmatprep.subr.mxu0 0.0
        %2421 = vmatpush1.msra.mxu0 0.0
        %2422 = vmatprep.subr.mxu0 0.0
        %2423 = vmatpush1.msra.mxu0 0.0
        %2424 = vmatprep.subr.mxu0 0.0
        %2425 = vmatpush1.msra.mxu0 0.0
        %2426 = vmatprep.subr.mxu0 0.0
        %2427 = vmatpush1.msra.mxu0 0.0
        %2428 = vmatprep.subr.mxu0 0.0
        %2429 = vmatpush1.msra.mxu0 0.0
        %2430 = vmatprep.subr.mxu0 0.0
        %2431 = vmatpush1.msra.mxu0 0.0
        %2432 = vmatprep.subr.mxu0 0.0
        %2433 = vmatpush1.msra.mxu0 0.0
        %2434 = vmatprep.subr.mxu0 0.0
        %2435 = vmatpush1.msra.mxu0 0.0
        %2436 = vmatprep.subr.mxu0 0.0
        %2437 = vmatpush1.msra.mxu0 0.0
        %2438 = vmatprep.subr.mxu0 0.0
        %2439 = vmatpush1.msra.mxu0 0.0
        %2440 = vmatprep.subr.mxu0 0.0
        %2441 = vmatpush1.msra.mxu0 0.0
        %2442 = vmatprep.subr.mxu0 0.0
        %2443 = vmatpush1.msra.mxu0 0.0
        %2444 = vmatprep.subr.mxu0 0.0
        %2445 = vmatpush1.msra.mxu0 0.0
        %2446 = vmatprep.subr.mxu0 0.0
        %2447 = vmatpush1.msra.mxu0 0.0
        %2448 = vmatprep.subr.mxu0 0.0
        %2449 = vmatpush1.msra.mxu0 0.0
        %2450 = vmatprep.subr.mxu0 0.0
        %2451 = vmatpush1.msra.mxu0 0.0
        %2452 = vmatprep.subr.mxu0 0.0
        %2453 = vmatpush1.msra.mxu0 0.0
        %2454 = vmatprep.subr.mxu0 0.0
        %2455 = vmatpush1.msra.mxu0 0.0
        %2456 = vmatprep.subr.mxu0 0.0
        %2457 = vmatpush1.msra.mxu0 0.0
        %2458 = vmatprep.subr.mxu0 0.0
        %2459 = vmatpush1.msra.mxu0 0.0
        %2460 = vmatprep.subr.mxu0 0.0
        %2461 = vmatpush1.msra.mxu0 0.0
        %2462 = vmatprep.subr.mxu0 0.0
        %2463 = vmatpush1.msra.mxu0 0.0
        %2464 = vmatprep.subr.mxu0 0.0
        %2465 = vmatpush1.msra.mxu0 0.0
        %2466 = vmatprep.subr.mxu0 0.0
        %2467 = vmatpush1.msra.mxu0 0.0
        %2468 = vmatprep.subr.mxu0 0.0
        %2469 = vmatpush1.msra.mxu0 0.0
        %2470 = vmatprep.subr.mxu0 0.0
        %2471 = vmatpush1.msra.mxu0 0.0
        %2472 = vmatprep.subr.mxu0 0.0
        %2473 = vmatpush1.msra.mxu0 0.0
        %2474 = vmatprep.mubr.f32.mxu0 0.0
        %2475 = vmatmul.mubr.f32.gmra.mrb[0].mxu0 %v2408
        %v2476 = vpop.f32.mrb[0].mxu0
        %v2477 = vadd.f32 %v2405, %v2476
        %v2478 = vpop.f32.mrb[0].mxu0
        %2479 = vdwg.mxu0
        %v2480 = vmul.f32 %v2477, %v595
        %s2481 = scalar_lea.vmem %s573, 8 [#allocation2]
        %2482 = vst [vmem:[%s2481] sm:$0x3f] %v2480
        %v2483 = vsel %vm1528, %v2480, -inf
        %v2484 = vrot.slane %v2483, 4
        %v2485 = vmax.f32 %v2483, %v2484
        %v2486 = vrot.slane %v2485, 2
        %v2487 = vmax.f32 %v2485, %v2486
        %v2488 = vrot.slane %v2487, 1
        %v2489 = vmax.f32 %v2487, %v2488
        %v2490 = vsub.f32 %v2480, %v2489
        %v2491 = vmul.f32 %v2490, 1.442695
        %v2492 = vpow.pop %v2491
        %v2493 = vsel %vm1528, %v2492, 0.0
        %v2494 = vrot.slane %v2493, 4
        %v2495 = vadd.f32 %v2493, %v2494
        %v2496 = vrot.slane %v2495, 2
        %v2497 = vadd.f32 %v2495, %v2496
        %v2498 = vrot.slane %v2497, 1
        %v2499 = vadd.f32 %v2497, %v2498
        %v2500 = vrcp.pop %v2499
        %v2501 = vmul.f32 %v2492, %v2500
        %v2502 = vmul.f32 %v2501, %v595
        %s2503 = scalar_lea.vmem %s10, 16
        %v2504 = vld [vmem:[%s2503] sm:$0xff]
        %v2505 = vld [vmem:[%s2503 + $0x8] sm:$0xff]
        %s2506 = scalar_lea.vmem %s11, 16
        %v2507 = vld [vmem:[%s2506] sm:$0xff]
        %v2508 = vld [vmem:[%s2506 + $0x8] sm:$0xff]
        %s2509 = scalar_lea.vmem %s16, 8
        %v2510 = vld [vmem:[%s2509] sm:$0x3f]
        %s2511 = scalar_lea.vmem %s17, 8
        %v2512 = vld [vmem:[%s2511] sm:$0x3f]
        %2514 = vset.pattern.permute.xlu0 0
        %2515 = vperm.xlu0 %2514, %v2507
        %v2516 = vpop.permute.xlu0 %2515
        %2519 = vset.pattern.permute.xlu0 0
        %2520 = vperm.xlu0 %2519, %v2508
        %v2521 = vpop.permute.xlu0 %2520
        %v2524 = vsel %vm1565, %v2504, 0
        %v2527 = vsel %vm1565, %v2505, 0
        %v2530 = vsel %vm1528, %v2502, 0
        %2532 = vmatprep.subr.mxu0 0.0
        %2533 = vmatpush1.msra.mxu0 %v2530
        %2534 = vmatprep.subr.mxu0 0.0
        %2535 = vmatpush1.msra.mxu0 0.0
        %2536 = vmatprep.subr.mxu0 0.0
        %2537 = vmatpush1.msra.mxu0 0.0
        %2538 = vmatprep.subr.mxu0 0.0
        %2539 = vmatpush1.msra.mxu0 0.0
        %2540 = vmatprep.subr.mxu0 0.0
        %2541 = vmatpush1.msra.mxu0 0.0
        %2542 = vmatprep.subr.mxu0 0.0
        %2543 = vmatpush1.msra.mxu0 0.0
        %2544 = vmatprep.subr.mxu0 0.0
        %2545 = vmatpush1.msra.mxu0 0.0
        %2546 = vmatprep.subr.mxu0 0.0
        %2547 = vmatpush1.msra.mxu0 0.0
        %2548 = vmatprep.subr.mxu0 0.0
        %2549 = vmatpush1.msra.mxu0 0.0
        %2550 = vmatprep.subr.mxu0 0.0
        %2551 = vmatpush1.msra.mxu0 0.0
        %2552 = vmatprep.subr.mxu0 0.0
        %2553 = vmatpush1.msra.mxu0 0.0
        %2554 = vmatprep.subr.mxu0 0.0
        %2555 = vmatpush1.msra.mxu0 0.0
        %2556 = vmatprep.subr.mxu0 0.0
        %2557 = vmatpush1.msra.mxu0 0.0
        %2558 = vmatprep.subr.mxu0 0.0
        %2559 = vmatpush1.msra.mxu0 0.0
        %2560 = vmatprep.subr.mxu0 0.0
        %2561 = vmatpush1.msra.mxu0 0.0
        %2562 = vmatprep.subr.mxu0 0.0
        %2563 = vmatpush1.msra.mxu0 0.0
        %2564 = vmatprep.subr.mxu0 0.0
        %2565 = vmatpush1.msra.mxu0 0.0
        %2566 = vmatprep.subr.mxu0 0.0
        %2567 = vmatpush1.msra.mxu0 0.0
        %2568 = vmatprep.subr.mxu0 0.0
        %2569 = vmatpush1.msra.mxu0 0.0
        %2570 = vmatprep.subr.mxu0 0.0
        %2571 = vmatpush1.msra.mxu0 0.0
        %2572 = vmatprep.subr.mxu0 0.0
        %2573 = vmatpush1.msra.mxu0 0.0
        %2574 = vmatprep.subr.mxu0 0.0
        %2575 = vmatpush1.msra.mxu0 0.0
        %2576 = vmatprep.subr.mxu0 0.0
        %2577 = vmatpush1.msra.mxu0 0.0
        %2578 = vmatprep.subr.mxu0 0.0
        %2579 = vmatpush1.msra.mxu0 0.0
        %2580 = vmatprep.subr.mxu0 0.0
        %2581 = vmatpush1.msra.mxu0 0.0
        %2582 = vmatprep.subr.mxu0 0.0
        %2583 = vmatpush1.msra.mxu0 0.0
        %2584 = vmatprep.subr.mxu0 0.0
        %2585 = vmatpush1.msra.mxu0 0.0
        %2586 = vmatprep.subr.mxu0 0.0
        %2587 = vmatpush1.msra.mxu0 0.0
        %2588 = vmatprep.subr.mxu0 0.0
        %2589 = vmatpush1.msra.mxu0 0.0
        %2590 = vmatprep.subr.mxu0 0.0
        %2591 = vmatpush1.msra.mxu0 0.0
        %2592 = vmatprep.subr.mxu0 0.0
        %2593 = vmatpush1.msra.mxu0 0.0
        %2594 = vmatprep.subr.mxu0 0.0
        %2595 = vmatpush1.msra.mxu0 0.0
        %2596 = vmatprep.mubr.f32.mxu0 0.0
        %2597 = vmatmul.mubr.f32.gmra.mrb[0].mxu0 %v2524
        %v2598 = vpop.f32.mrb[0].mxu0
        %v2599 = vadd.f32 %v2516, %v2598
        %v2600 = vpop.f32.mrb[0].mxu0
        %2601 = vmatprep.mubr.f32.mxu0 0.0
        %2602 = vmatmul.mubr.f32.gmra.mrb[0].mxu0 %v2527
        %v2603 = vpop.f32.mrb[0].mxu0
        %v2604 = vadd.f32 %v2521, %v2603
        %v2605 = vpop.f32.mrb[0].mxu0
        %2606 = vdwg.mxu0
        %s2607 = scalar_lea.vmem %s12, 144
        %v2608 = vld [vmem:[%s2607] sm:$0xff]
        %v2609 = vld [vmem:[%s2607 + $0x8] sm:$0xff]
        %v2610 = vld [vmem:[%s2607 + $0x10] sm:$0xff]
        %v2611 = vld [vmem:[%s2607 + $0x18] sm:$0xff]
        %v2612 = vld [vmem:[%s2607 + $0x20] sm:$0xff]
        %v2613 = vld [vmem:[%s2607 + $0x28] sm:$0xff]
        %v2615 = vsel %vm701, %v2608, 0
        %v2618 = vsel %vm701, %v2609, 0
        %v2621 = vsel %vm701, %v2610, 0
        %v2624 = vsel %vm701, %v2611, 0
        %v2627 = vsel %vm701, %v2612, 0
        %v2630 = vsel %vm701, %v2613, 0
        %2632 = vmatprep.subr.mxu0 0.0
        %2633 = vmatpush1.msra.mxu0 %v2599
        %2634 = vmatprep.subr.mxu0 0.0
        %2635 = vmatpush1.msra.mxu0 %v2604
        %2636 = vmatprep.subr.mxu0 0.0
        %2637 = vmatpush1.msra.mxu0 0.0
        %2638 = vmatprep.subr.mxu0 0.0
        %2639 = vmatpush1.msra.mxu0 0.0
        %2640 = vmatprep.subr.mxu0 0.0
        %2641 = vmatpush1.msra.mxu0 0.0
        %2642 = vmatprep.subr.mxu0 0.0
        %2643 = vmatpush1.msra.mxu0 0.0
        %2644 = vmatprep.subr.mxu0 0.0
        %2645 = vmatpush1.msra.mxu0 0.0
        %2646 = vmatprep.subr.mxu0 0.0
        %2647 = vmatpush1.msra.mxu0 0.0
        %2648 = vmatprep.subr.mxu0 0.0
        %2649 = vmatpush1.msra.mxu0 0.0
        %2650 = vmatprep.subr.mxu0 0.0
        %2651 = vmatpush1.msra.mxu0 0.0
        %2652 = vmatprep.subr.mxu0 0.0
        %2653 = vmatpush1.msra.mxu0 0.0
        %2654 = vmatprep.subr.mxu0 0.0
        %2655 = vmatpush1.msra.mxu0 0.0
        %2656 = vmatprep.subr.mxu0 0.0
        %2657 = vmatpush1.msra.mxu0 0.0
        %2658 = vmatprep.subr.mxu0 0.0
        %2659 = vmatpush1.msra.mxu0 0.0
        %2660 = vmatprep.subr.mxu0 0.0
        %2661 = vmatpush1.msra.mxu0 0.0
        %2662 = vmatprep.subr.mxu0 0.0
        %2663 = vmatpush1.msra.mxu0 0.0
        %2664 = vmatprep.subr.mxu0 0.0
        %2665 = vmatpush1.msra.mxu0 0.0
        %2666 = vmatprep.subr.mxu0 0.0
        %2667 = vmatpush1.msra.mxu0 0.0
        %2668 = vmatprep.subr.mxu0 0.0
        %2669 = vmatpush1.msra.mxu0 0.0
        %2670 = vmatprep.subr.mxu0 0.0
        %2671 = vmatpush1.msra.mxu0 0.0
        %2672 = vmatprep.subr.mxu0 0.0
        %2673 = vmatpush1.msra.mxu0 0.0
        %2674 = vmatprep.subr.mxu0 0.0
        %2675 = vmatpush1.msra.mxu0 0.0
        %2676 = vmatprep.subr.mxu0 0.0
        %2677 = vmatpush1.msra.mxu0 0.0
        %2678 = vmatprep.subr.mxu0 0.0
        %2679 = vmatpush1.msra.mxu0 0.0
        %2680 = vmatprep.subr.mxu0 0.0
        %2681 = vmatpush1.msra.mxu0 0.0
        %2682 = vmatprep.subr.mxu0 0.0
        %2683 = vmatpush1.msra.mxu0 0.0
        %2684 = vmatprep.subr.mxu0 0.0
        %2685 = vmatpush1.msra.mxu0 0.0
        %2686 = vmatprep.subr.mxu0 0.0
        %2687 = vmatpush1.msra.mxu0 0.0
        %2688 = vmatprep.subr.mxu0 0.0
        %2689 = vmatpush1.msra.mxu0 0.0
        %2690 = vmatprep.subr.mxu0 0.0
        %2691 = vmatpush1.msra.mxu0 0.0
        %2692 = vmatprep.subr.mxu0 0.0
        %2693 = vmatpush1.msra.mxu0 0.0
        %2694 = vmatprep.subr.mxu0 0.0
        %2695 = vmatpush1.msra.mxu0 0.0
        %2696 = vmatprep.mubr.f32.mxu0 0.0
        %2697 = vmatmul.mubr.f32.gmra.mrb[0].mxu0 %v2615
        %v2698 = vpop.f32.mrb[0].mxu0
        %v2699 = vadd.f32 0.0, %v2698
        %v2700 = vpop.f32.mrb[0].mxu0
        %2701 = vmatprep.mubr.f32.mxu0 0.0
        %2702 = vmatmul.mubr.f32.gmra.mrb[0].mxu0 %v2618
        %v2703 = vpop.f32.mrb[0].mxu0
        %v2704 = vadd.f32 0.0, %v2703
        %v2705 = vpop.f32.mrb[0].mxu0
        %2706 = vmatprep.mubr.f32.mxu0 0.0
        %2707 = vmatmul.mubr.f32.gmra.mrb[0].mxu0 %v2621
        %v2708 = vpop.f32.mrb[0].mxu0
        %v2709 = vadd.f32 0.0, %v2708
        %v2710 = vpop.f32.mrb[0].mxu0
        %2711 = vmatprep.mubr.f32.mxu0 0.0
        %2712 = vmatmul.mubr.f32.gmra.mrb[0].mxu0 %v2624
        %v2713 = vpop.f32.mrb[0].mxu0
        %v2714 = vadd.f32 0.0, %v2713
        %v2715 = vpop.f32.mrb[0].mxu0
        %2716 = vmatprep.mubr.f32.mxu0 0.0
        %2717 = vmatmul.mubr.f32.gmra.mrb[0].mxu0 %v2627
        %v2718 = vpop.f32.mrb[0].mxu0
        %v2719 = vadd.f32 0.0, %v2718
        %v2720 = vpop.f32.mrb[0].mxu0
        %2721 = vmatprep.mubr.f32.mxu0 0.0
        %2722 = vmatmul.mubr.f32.gmra.mrb[0].mxu0 %v2630
        %v2723 = vpop.f32.mrb[0].mxu0
        %v2724 = vadd.f32 0.0, %v2723
        %v2725 = vpop.f32.mrb[0].mxu0
        %2726 = vdwg.mxu0
        %2727 = vrot.lane.b32.xlu0 %v2699, 1
        %v2728 = vpop.permute.xlu0 %2727
        %2729 = vrot.lane.b32.xlu0 %v2704, 1
        %v2730 = vpop.permute.xlu0 %2729
        %v2731 = vsel %vm585, %v2728, 0.0
        %v2732 = vsel %vm585, %v2730, 0.0
        %v2733 = vadd.f32 %v2731, %v2709
        %v2734 = vadd.f32 %v2732, %v2714
        %2735 = vrot.lane.b32.xlu0 %v2719, 127
        %v2736 = vpop.permute.xlu0 %2735
        %2737 = vrot.lane.b32.xlu0 %v2724, 127
        %v2738 = vpop.permute.xlu0 %2737
        %v2739 = vsel %vm586, %v2736, 0.0
        %v2740 = vsel %vm586, %v2738, 0.0
        %v2741 = vadd.f32 %v2733, %v2739
        %v2742 = vadd.f32 %v2734, %v2740
        %s2743 = scalar_lea.vmem %s13, 48
        %v2744 = vld [vmem:[%s2743] sm:$0xff]
        %v2745 = vld [vmem:[%s2743 + $0x8] sm:$0xff]
        %2747 = vset.pattern.permute.xlu0 0
        %2748 = vperm.xlu0 %2747, %v2744
        %v2749 = vpop.permute.xlu0 %2748
        %2752 = vset.pattern.permute.xlu0 0
        %2753 = vperm.xlu0 %2752, %v2745
        %v2754 = vpop.permute.xlu0 %2753
        %v2756 = vadd.f32 %v2741, %v2749
        %v2757 = vadd.f32 %v2742, %v2754
        %v2758 = vmax.f32 %v2756, 0.0
        %v2759 = vmax.f32 %v2757, 0.0
        %s2760 = scalar_lea.vmem %s14, 48
        %v2761 = vld [vmem:[%s2760] sm:$0xff]
        %v2762 = vld [vmem:[%s2760 + $0x8] sm:$0xff]
        %s2763 = scalar_lea.vmem %s15, 48
        %v2764 = vld [vmem:[%s2763] sm:$0xff]
        %v2765 = vld [vmem:[%s2763 + $0x8] sm:$0xff]
        %2767 = vset.pattern.permute.xlu0 0
        %2768 = vperm.xlu0 %2767, %v2764
        %v2769 = vpop.permute.xlu0 %2768
        %2772 = vset.pattern.permute.xlu0 0
        %2773 = vperm.xlu0 %2772, %v2765
        %v2774 = vpop.permute.xlu0 %2773
        %v2777 = vsel %vm701, %v2761, 0
        %v2780 = vsel %vm701, %v2762, 0
        %2782 = vmatprep.subr.mxu0 0.0
        %2783 = vmatpush1.msra.mxu0 %v2758
        %2784 = vmatprep.subr.mxu0 0.0
        %2785 = vmatpush1.msra.mxu0 %v2759
        %2786 = vmatprep.subr.mxu0 0.0
        %2787 = vmatpush1.msra.mxu0 0.0
        %2788 = vmatprep.subr.mxu0 0.0
        %2789 = vmatpush1.msra.mxu0 0.0
        %2790 = vmatprep.subr.mxu0 0.0
        %2791 = vmatpush1.msra.mxu0 0.0
        %2792 = vmatprep.subr.mxu0 0.0
        %2793 = vmatpush1.msra.mxu0 0.0
        %2794 = vmatprep.subr.mxu0 0.0
        %2795 = vmatpush1.msra.mxu0 0.0
        %2796 = vmatprep.subr.mxu0 0.0
        %2797 = vmatpush1.msra.mxu0 0.0
        %2798 = vmatprep.subr.mxu0 0.0
        %2799 = vmatpush1.msra.mxu0 0.0
        %2800 = vmatprep.subr.mxu0 0.0
        %2801 = vmatpush1.msra.mxu0 0.0
        %2802 = vmatprep.subr.mxu0 0.0
        %2803 = vmatpush1.msra.mxu0 0.0
        %2804 = vmatprep.subr.mxu0 0.0
        %2805 = vmatpush1.msra.mxu0 0.0
        %2806 = vmatprep.subr.mxu0 0.0
        %2807 = vmatpush1.msra.mxu0 0.0
        %2808 = vmatprep.subr.mxu0 0.0
        %2809 = vmatpush1.msra.mxu0 0.0
        %2810 = vmatprep.subr.mxu0 0.0
        %2811 = vmatpush1.msra.mxu0 0.0
        %2812 = vmatprep.subr.mxu0 0.0
        %2813 = vmatpush1.msra.mxu0 0.0
        %2814 = vmatprep.subr.mxu0 0.0
        %2815 = vmatpush1.msra.mxu0 0.0
        %2816 = vmatprep.subr.mxu0 0.0
        %2817 = vmatpush1.msra.mxu0 0.0
        %2818 = vmatprep.subr.mxu0 0.0
        %2819 = vmatpush1.msra.mxu0 0.0
        %2820 = vmatprep.subr.mxu0 0.0
        %2821 = vmatpush1.msra.mxu0 0.0
        %2822 = vmatprep.subr.mxu0 0.0
        %2823 = vmatpush1.msra.mxu0 0.0
        %2824 = vmatprep.subr.mxu0 0.0
        %2825 = vmatpush1.msra.mxu0 0.0
        %2826 = vmatprep.subr.mxu0 0.0
        %2827 = vmatpush1.msra.mxu0 0.0
        %2828 = vmatprep.subr.mxu0 0.0
        %2829 = vmatpush1.msra.mxu0 0.0
        %2830 = vmatprep.subr.mxu0 0.0
        %2831 = vmatpush1.msra.mxu0 0.0
        %2832 = vmatprep.subr.mxu0 0.0
        %2833 = vmatpush1.msra.mxu0 0.0
        %2834 = vmatprep.subr.mxu0 0.0
        %2835 = vmatpush1.msra.mxu0 0.0
        %2836 = vmatprep.subr.mxu0 0.0
        %2837 = vmatpush1.msra.mxu0 0.0
        %2838 = vmatprep.subr.mxu0 0.0
        %2839 = vmatpush1.msra.mxu0 0.0
        %2840 = vmatprep.subr.mxu0 0.0
        %2841 = vmatpush1.msra.mxu0 0.0
        %2842 = vmatprep.subr.mxu0 0.0
        %2843 = vmatpush1.msra.mxu0 0.0
        %2844 = vmatprep.subr.mxu0 0.0
        %2845 = vmatpush1.msra.mxu0 0.0
        %2846 = vmatprep.mubr.f32.mxu0 0.0
        %2847 = vmatmul.mubr.f32.gmra.mrb[0].mxu0 %v2777
        %v2848 = vpop.f32.mrb[0].mxu0
        %v2849 = vadd.f32 %v2769, %v2848
        %v2850 = vpop.f32.mrb[0].mxu0
        %2851 = vmatprep.mubr.f32.mxu0 0.0
        %2852 = vmatmul.mubr.f32.gmra.mrb[0].mxu0 %v2780
        %v2853 = vpop.f32.mrb[0].mxu0
        %v2854 = vadd.f32 %v2774, %v2853
        %v2855 = vpop.f32.mrb[0].mxu0
        %2856 = vdwg.mxu0
        %v2857 = vadd.f32 %v2599, %v2849
        %v2858 = vadd.f32 %v2604, %v2854
        %s2859 = scalar_lea.vmem %s12, 192
        %v2860 = vld [vmem:[%s2859] sm:$0xff]
        %v2861 = vld [vmem:[%s2859 + $0x8] sm:$0xff]
        %v2862 = vld [vmem:[%s2859 + $0x10] sm:$0xff]
        %v2863 = vld [vmem:[%s2859 + $0x18] sm:$0xff]
        %v2864 = vld [vmem:[%s2859 + $0x20] sm:$0xff]
        %v2865 = vld [vmem:[%s2859 + $0x28] sm:$0xff]
        %v2867 = vsel %vm701, %v2860, 0
        %v2870 = vsel %vm701, %v2861, 0
        %v2873 = vsel %vm701, %v2862, 0
        %v2876 = vsel %vm701, %v2863, 0
        %v2879 = vsel %vm701, %v2864, 0
        %v2882 = vsel %vm701, %v2865, 0
        %2884 = vmatprep.subr.mxu0 0.0
        %2885 = vmatpush1.msra.mxu0 %v2857
        %2886 = vmatprep.subr.mxu0 0.0
        %2887 = vmatpush1.msra.mxu0 %v2858
        %2888 = vmatprep.subr.mxu0 0.0
        %2889 = vmatpush1.msra.mxu0 0.0
        %2890 = vmatprep.subr.mxu0 0.0
        %2891 = vmatpush1.msra.mxu0 0.0
        %2892 = vmatprep.subr.mxu0 0.0
        %2893 = vmatpush1.msra.mxu0 0.0
        %2894 = vmatprep.subr.mxu0 0.0
        %2895 = vmatpush1.msra.mxu0 0.0
        %2896 = vmatprep.subr.mxu0 0.0
        %2897 = vmatpush1.msra.mxu0 0.0
        %2898 = vmatprep.subr.mxu0 0.0
        %2899 = vmatpush1.msra.mxu0 0.0
        %2900 = vmatprep.subr.mxu0 0.0
        %2901 = vmatpush1.msra.mxu0 0.0
        %2902 = vmatprep.subr.mxu0 0.0
        %2903 = vmatpush1.msra.mxu0 0.0
        %2904 = vmatprep.subr.mxu0 0.0
        %2905 = vmatpush1.msra.mxu0 0.0
        %2906 = vmatprep.subr.mxu0 0.0
        %2907 = vmatpush1.msra.mxu0 0.0
        %2908 = vmatprep.subr.mxu0 0.0
        %2909 = vmatpush1.msra.mxu0 0.0
        %2910 = vmatprep.subr.mxu0 0.0
        %2911 = vmatpush1.msra.mxu0 0.0
        %2912 = vmatprep.subr.mxu0 0.0
        %2913 = vmatpush1.msra.mxu0 0.0
        %2914 = vmatprep.subr.mxu0 0.0
        %2915 = vmatpush1.msra.mxu0 0.0
        %2916 = vmatprep.subr.mxu0 0.0
        %2917 = vmatpush1.msra.mxu0 0.0
        %2918 = vmatprep.subr.mxu0 0.0
        %2919 = vmatpush1.msra.mxu0 0.0
        %2920 = vmatprep.subr.mxu0 0.0
        %2921 = vmatpush1.msra.mxu0 0.0
        %2922 = vmatprep.subr.mxu0 0.0
        %2923 = vmatpush1.msra.mxu0 0.0
        %2924 = vmatprep.subr.mxu0 0.0
        %2925 = vmatpush1.msra.mxu0 0.0
        %2926 = vmatprep.subr.mxu0 0.0
        %2927 = vmatpush1.msra.mxu0 0.0
        %2928 = vmatprep.subr.mxu0 0.0
        %2929 = vmatpush1.msra.mxu0 0.0
        %2930 = vmatprep.subr.mxu0 0.0
        %2931 = vmatpush1.msra.mxu0 0.0
        %2932 = vmatprep.subr.mxu0 0.0
        %2933 = vmatpush1.msra.mxu0 0.0
        %2934 = vmatprep.subr.mxu0 0.0
        %2935 = vmatpush1.msra.mxu0 0.0
        %2936 = vmatprep.subr.mxu0 0.0
        %2937 = vmatpush1.msra.mxu0 0.0
        %2938 = vmatprep.subr.mxu0 0.0
        %2939 = vmatpush1.msra.mxu0 0.0
        %2940 = vmatprep.subr.mxu0 0.0
        %2941 = vmatpush1.msra.mxu0 0.0
        %2942 = vmatprep.subr.mxu0 0.0
        %2943 = vmatpush1.msra.mxu0 0.0
        %2944 = vmatprep.subr.mxu0 0.0
        %2945 = vmatpush1.msra.mxu0 0.0
        %2946 = vmatprep.subr.mxu0 0.0
        %2947 = vmatpush1.msra.mxu0 0.0
        %2948 = vmatprep.mubr.f32.mxu0 0.0
        %2949 = vmatmul.mubr.f32.gmra.mrb[0].mxu0 %v2867
        %v2950 = vpop.f32.mrb[0].mxu0
        %v2951 = vadd.f32 0.0, %v2950
        %v2952 = vpop.f32.mrb[0].mxu0
        %2953 = vmatprep.mubr.f32.mxu0 0.0
        %2954 = vmatmul.mubr.f32.gmra.mrb[0].mxu0 %v2870
        %v2955 = vpop.f32.mrb[0].mxu0
        %v2956 = vadd.f32 0.0, %v2955
        %v2957 = vpop.f32.mrb[0].mxu0
        %2958 = vmatprep.mubr.f32.mxu0 0.0
        %2959 = vmatmul.mubr.f32.gmra.mrb[0].mxu0 %v2873
        %v2960 = vpop.f32.mrb[0].mxu0
        %v2961 = vadd.f32 0.0, %v2960
        %v2962 = vpop.f32.mrb[0].mxu0
        %2963 = vmatprep.mubr.f32.mxu0 0.0
        %2964 = vmatmul.mubr.f32.gmra.mrb[0].mxu0 %v2876
        %v2965 = vpop.f32.mrb[0].mxu0
        %v2966 = vadd.f32 0.0, %v2965
        %v2967 = vpop.f32.mrb[0].mxu0
        %2968 = vmatprep.mubr.f32.mxu0 0.0
        %2969 = vmatmul.mubr.f32.gmra.mrb[0].mxu0 %v2879
        %v2970 = vpop.f32.mrb[0].mxu0
        %v2971 = vadd.f32 0.0, %v2970
        %v2972 = vpop.f32.mrb[0].mxu0
        %2973 = vmatprep.mubr.f32.mxu0 0.0
        %2974 = vmatmul.mubr.f32.gmra.mrb[0].mxu0 %v2882
        %v2975 = vpop.f32.mrb[0].mxu0
        %v2976 = vadd.f32 0.0, %v2975
        %v2977 = vpop.f32.mrb[0].mxu0
        %2978 = vdwg.mxu0
        %2979 = vrot.lane.b32.xlu0 %v2951, 2
        %v2980 = vpop.permute.xlu0 %2979
        %2981 = vrot.lane.b32.xlu0 %v2956, 2
        %v2982 = vpop.permute.xlu0 %2981
        %v2983 = vsel %vm587, %v2980, 0.0
        %v2984 = vsel %vm587, %v2982, 0.0
        %v2985 = vadd.f32 %v2983, %v2961
        %v2986 = vadd.f32 %v2984, %v2966
        %2987 = vrot.lane.b32.xlu0 %v2971, 126
        %v2988 = vpop.permute.xlu0 %2987
        %2989 = vrot.lane.b32.xlu0 %v2976, 126
        %v2990 = vpop.permute.xlu0 %2989
        %v2991 = vsel %vm588, %v2988, 0.0
        %v2992 = vsel %vm588, %v2990, 0.0
        %v2993 = vadd.f32 %v2985, %v2991
        %v2994 = vadd.f32 %v2986, %v2992
        %s2995 = scalar_lea.vmem %s13, 64
        %v2996 = vld [vmem:[%s2995] sm:$0xff]
        %v2997 = vld [vmem:[%s2995 + $0x8] sm:$0xff]
        %2999 = vset.pattern.permute.xlu0 0
        %3000 = vperm.xlu0 %2999, %v2996
        %v3001 = vpop.permute.xlu0 %3000
        %3004 = vset.pattern.permute.xlu0 0
        %3005 = vperm.xlu0 %3004, %v2997
        %v3006 = vpop.permute.xlu0 %3005
        %v3008 = vadd.f32 %v2993, %v3001
        %v3009 = vadd.f32 %v2994, %v3006
        %v3010 = vmax.f32 %v3008, 0.0
        %v3011 = vmax.f32 %v3009, 0.0
        %s3012 = scalar_lea.vmem %s14, 64
        %v3013 = vld [vmem:[%s3012] sm:$0xff]
        %v3014 = vld [vmem:[%s3012 + $0x8] sm:$0xff]
        %s3015 = scalar_lea.vmem %s15, 64
        %v3016 = vld [vmem:[%s3015] sm:$0xff]
        %v3017 = vld [vmem:[%s3015 + $0x8] sm:$0xff]
        %3019 = vset.pattern.permute.xlu0 0
        %3020 = vperm.xlu0 %3019, %v3016
        %v3021 = vpop.permute.xlu0 %3020
        %3024 = vset.pattern.permute.xlu0 0
        %3025 = vperm.xlu0 %3024, %v3017
        %v3026 = vpop.permute.xlu0 %3025
        %v3029 = vsel %vm701, %v3013, 0
        %v3032 = vsel %vm701, %v3014, 0
        %3034 = vmatprep.subr.mxu0 0.0
        %3035 = vmatpush1.msra.mxu0 %v3010
        %3036 = vmatprep.subr.mxu0 0.0
        %3037 = vmatpush1.msra.mxu0 %v3011
        %3038 = vmatprep.subr.mxu0 0.0
        %3039 = vmatpush1.msra.mxu0 0.0
        %3040 = vmatprep.subr.mxu0 0.0
        %3041 = vmatpush1.msra.mxu0 0.0
        %3042 = vmatprep.subr.mxu0 0.0
        %3043 = vmatpush1.msra.mxu0 0.0
        %3044 = vmatprep.subr.mxu0 0.0
        %3045 = vmatpush1.msra.mxu0 0.0
        %3046 = vmatprep.subr.mxu0 0.0
        %3047 = vmatpush1.msra.mxu0 0.0
        %3048 = vmatprep.subr.mxu0 0.0
        %3049 = vmatpush1.msra.mxu0 0.0
        %3050 = vmatprep.subr.mxu0 0.0
        %3051 = vmatpush1.msra.mxu0 0.0
        %3052 = vmatprep.subr.mxu0 0.0
        %3053 = vmatpush1.msra.mxu0 0.0
        %3054 = vmatprep.subr.mxu0 0.0
        %3055 = vmatpush1.msra.mxu0 0.0
        %3056 = vmatprep.subr.mxu0 0.0
        %3057 = vmatpush1.msra.mxu0 0.0
        %3058 = vmatprep.subr.mxu0 0.0
        %3059 = vmatpush1.msra.mxu0 0.0
        %3060 = vmatprep.subr.mxu0 0.0
        %3061 = vmatpush1.msra.mxu0 0.0
        %3062 = vmatprep.subr.mxu0 0.0
        %3063 = vmatpush1.msra.mxu0 0.0
        %3064 = vmatprep.subr.mxu0 0.0
        %3065 = vmatpush1.msra.mxu0 0.0
        %3066 = vmatprep.subr.mxu0 0.0
        %3067 = vmatpush1.msra.mxu0 0.0
        %3068 = vmatprep.subr.mxu0 0.0
        %3069 = vmatpush1.msra.mxu0 0.0
        %3070 = vmatprep.subr.mxu0 0.0
        %3071 = vmatpush1.msra.mxu0 0.0
        %3072 = vmatprep.subr.mxu0 0.0
        %3073 = vmatpush1.msra.mxu0 0.0
        %3074 = vmatprep.subr.mxu0 0.0
        %3075 = vmatpush1.msra.mxu0 0.0
        %3076 = vmatprep.subr.mxu0 0.0
        %3077 = vmatpush1.msra.mxu0 0.0
        %3078 = vmatprep.subr.mxu0 0.0
        %3079 = vmatpush1.msra.mxu0 0.0
        %3080 = vmatprep.subr.mxu0 0.0
        %3081 = vmatpush1.msra.mxu0 0.0
        %3082 = vmatprep.subr.mxu0 0.0
        %3083 = vmatpush1.msra.mxu0 0.0
        %3084 = vmatprep.subr.mxu0 0.0
        %3085 = vmatpush1.msra.mxu0 0.0
        %3086 = vmatprep.subr.mxu0 0.0
        %3087 = vmatpush1.msra.mxu0 0.0
        %3088 = vmatprep.subr.mxu0 0.0
        %3089 = vmatpush1.msra.mxu0 0.0
        %3090 = vmatprep.subr.mxu0 0.0
        %3091 = vmatpush1.msra.mxu0 0.0
        %3092 = vmatprep.subr.mxu0 0.0
        %3093 = vmatpush1.msra.mxu0 0.0
        %3094 = vmatprep.subr.mxu0 0.0
        %3095 = vmatpush1.msra.mxu0 0.0
        %3096 = vmatprep.subr.mxu0 0.0
        %3097 = vmatpush1.msra.mxu0 0.0
        %3098 = vmatprep.mubr.f32.mxu0 0.0
        %3099 = vmatmul.mubr.f32.gmra.mrb[0].mxu0 %v3029
        %v3100 = vpop.f32.mrb[0].mxu0
        %v3101 = vadd.f32 %v3021, %v3100
        %v3102 = vpop.f32.mrb[0].mxu0
        %3103 = vmatprep.mubr.f32.mxu0 0.0
        %3104 = vmatmul.mubr.f32.gmra.mrb[0].mxu0 %v3032
        %v3105 = vpop.f32.mrb[0].mxu0
        %v3106 = vadd.f32 %v3026, %v3105
        %v3107 = vpop.f32.mrb[0].mxu0
        %3108 = vdwg.mxu0
        %v3109 = vadd.f32 %v2857, %v3101
        %v3110 = vadd.f32 %v2858, %v3106
        %s3111 = scalar_lea.vmem %s12, 240
        %v3112 = vld [vmem:[%s3111] sm:$0xff]
        %v3113 = vld [vmem:[%s3111 + $0x8] sm:$0xff]
        %v3114 = vld [vmem:[%s3111 + $0x10] sm:$0xff]
        %v3115 = vld [vmem:[%s3111 + $0x18] sm:$0xff]
        %v3116 = vld [vmem:[%s3111 + $0x20] sm:$0xff]
        %v3117 = vld [vmem:[%s3111 + $0x28] sm:$0xff]
        %v3119 = vsel %vm701, %v3112, 0
        %v3122 = vsel %vm701, %v3113, 0
        %v3125 = vsel %vm701, %v3114, 0
        %v3128 = vsel %vm701, %v3115, 0
        %v3131 = vsel %vm701, %v3116, 0
        %v3134 = vsel %vm701, %v3117, 0
        %3136 = vmatprep.subr.mxu0 0.0
        %3137 = vmatpush1.msra.mxu0 %v3109
        %3138 = vmatprep.subr.mxu0 0.0
        %3139 = vmatpush1.msra.mxu0 %v3110
        %3140 = vmatprep.subr.mxu0 0.0
        %3141 = vmatpush1.msra.mxu0 0.0
        %3142 = vmatprep.subr.mxu0 0.0
        %3143 = vmatpush1.msra.mxu0 0.0
        %3144 = vmatprep.subr.mxu0 0.0
        %3145 = vmatpush1.msra.mxu0 0.0
        %3146 = vmatprep.subr.mxu0 0.0
        %3147 = vmatpush1.msra.mxu0 0.0
        %3148 = vmatprep.subr.mxu0 0.0
        %3149 = vmatpush1.msra.mxu0 0.0
        %3150 = vmatprep.subr.mxu0 0.0
        %3151 = vmatpush1.msra.mxu0 0.0
        %3152 = vmatprep.subr.mxu0 0.0
        %3153 = vmatpush1.msra.mxu0 0.0
        %3154 = vmatprep.subr.mxu0 0.0
        %3155 = vmatpush1.msra.mxu0 0.0
        %3156 = vmatprep.subr.mxu0 0.0
        %3157 = vmatpush1.msra.mxu0 0.0
        %3158 = vmatprep.subr.mxu0 0.0
        %3159 = vmatpush1.msra.mxu0 0.0
        %3160 = vmatprep.subr.mxu0 0.0
        %3161 = vmatpush1.msra.mxu0 0.0
        %3162 = vmatprep.subr.mxu0 0.0
        %3163 = vmatpush1.msra.mxu0 0.0
        %3164 = vmatprep.subr.mxu0 0.0
        %3165 = vmatpush1.msra.mxu0 0.0
        %3166 = vmatprep.subr.mxu0 0.0
        %3167 = vmatpush1.msra.mxu0 0.0
        %3168 = vmatprep.subr.mxu0 0.0
        %3169 = vmatpush1.msra.mxu0 0.0
        %3170 = vmatprep.subr.mxu0 0.0
        %3171 = vmatpush1.msra.mxu0 0.0
        %3172 = vmatprep.subr.mxu0 0.0
        %3173 = vmatpush1.msra.mxu0 0.0
        %3174 = vmatprep.subr.mxu0 0.0
        %3175 = vmatpush1.msra.mxu0 0.0
        %3176 = vmatprep.subr.mxu0 0.0
        %3177 = vmatpush1.msra.mxu0 0.0
        %3178 = vmatprep.subr.mxu0 0.0
        %3179 = vmatpush1.msra.mxu0 0.0
        %3180 = vmatprep.subr.mxu0 0.0
        %3181 = vmatpush1.msra.mxu0 0.0
        %3182 = vmatprep.subr.mxu0 0.0
        %3183 = vmatpush1.msra.mxu0 0.0
        %3184 = vmatprep.subr.mxu0 0.0
        %3185 = vmatpush1.msra.mxu0 0.0
        %3186 = vmatprep.subr.mxu0 0.0
        %3187 = vmatpush1.msra.mxu0 0.0
        %3188 = vmatprep.subr.mxu0 0.0
        %3189 = vmatpush1.msra.mxu0 0.0
        %3190 = vmatprep.subr.mxu0 0.0
        %3191 = vmatpush1.msra.mxu0 0.0
        %3192 = vmatprep.subr.mxu0 0.0
        %3193 = vmatpush1.msra.mxu0 0.0
        %3194 = vmatprep.subr.mxu0 0.0
        %3195 = vmatpush1.msra.mxu0 0.0
        %3196 = vmatprep.subr.mxu0 0.0
        %3197 = vmatpush1.msra.mxu0 0.0
        %3198 = vmatprep.subr.mxu0 0.0
        %3199 = vmatpush1.msra.mxu0 0.0
        %3200 = vmatprep.mubr.f32.mxu0 0.0
        %3201 = vmatmul.mubr.f32.gmra.mrb[0].mxu0 %v3119
        %v3202 = vpop.f32.mrb[0].mxu0
        %v3203 = vadd.f32 0.0, %v3202
        %v3204 = vpop.f32.mrb[0].mxu0
        %3205 = vmatprep.mubr.f32.mxu0 0.0
        %3206 = vmatmul.mubr.f32.gmra.mrb[0].mxu0 %v3122
        %v3207 = vpop.f32.mrb[0].mxu0
        %v3208 = vadd.f32 0.0, %v3207
        %v3209 = vpop.f32.mrb[0].mxu0
        %3210 = vmatprep.mubr.f32.mxu0 0.0
        %3211 = vmatmul.mubr.f32.gmra.mrb[0].mxu0 %v3125
        %v3212 = vpop.f32.mrb[0].mxu0
        %v3213 = vadd.f32 0.0, %v3212
        %v3214 = vpop.f32.mrb[0].mxu0
        %3215 = vmatprep.mubr.f32.mxu0 0.0
        %3216 = vmatmul.mubr.f32.gmra.mrb[0].mxu0 %v3128
        %v3217 = vpop.f32.mrb[0].mxu0
        %v3218 = vadd.f32 0.0, %v3217
        %v3219 = vpop.f32.mrb[0].mxu0
        %3220 = vmatprep.mubr.f32.mxu0 0.0
        %3221 = vmatmul.mubr.f32.gmra.mrb[0].mxu0 %v3131
        %v3222 = vpop.f32.mrb[0].mxu0
        %v3223 = vadd.f32 0.0, %v3222
        %v3224 = vpop.f32.mrb[0].mxu0
        %3225 = vmatprep.mubr.f32.mxu0 0.0
        %3226 = vmatmul.mubr.f32.gmra.mrb[0].mxu0 %v3134
        %v3227 = vpop.f32.mrb[0].mxu0
        %v3228 = vadd.f32 0.0, %v3227
        %v3229 = vpop.f32.mrb[0].mxu0
        %3230 = vdwg.mxu0
        %3231 = vrot.lane.b32.xlu0 %v3203, 4
        %v3232 = vpop.permute.xlu0 %3231
        %3233 = vrot.lane.b32.xlu0 %v3208, 4
        %v3234 = vpop.permute.xlu0 %3233
        %v3235 = vsel %vm589, %v3232, 0.0
        %v3236 = vsel %vm589, %v3234, 0.0
        %v3237 = vadd.f32 %v3235, %v3213
        %v3238 = vadd.f32 %v3236, %v3218
        %3239 = vrot.lane.b32.xlu0 %v3223, 124
        %v3240 = vpop.permute.xlu0 %3239
        %3241 = vrot.lane.b32.xlu0 %v3228, 124
        %v3242 = vpop.permute.xlu0 %3241
        %v3243 = vsel %vm590, %v3240, 0.0
        %v3244 = vsel %vm590, %v3242, 0.0
        %v3245 = vadd.f32 %v3237, %v3243
        %v3246 = vadd.f32 %v3238, %v3244
        %s3247 = scalar_lea.vmem %s13, 80
        %v3248 = vld [vmem:[%s3247] sm:$0xff]
        %v3249 = vld [vmem:[%s3247 + $0x8] sm:$0xff]
        %3251 = vset.pattern.permute.xlu0 0
        %3252 = vperm.xlu0 %3251, %v3248
        %v3253 = vpop.permute.xlu0 %3252
        %3256 = vset.pattern.permute.xlu0 0
        %3257 = vperm.xlu0 %3256, %v3249
        %v3258 = vpop.permute.xlu0 %3257
        %v3260 = vadd.f32 %v3245, %v3253
        %v3261 = vadd.f32 %v3246, %v3258
        %v3262 = vmax.f32 %v3260, 0.0
        %v3263 = vmax.f32 %v3261, 0.0
        %s3264 = scalar_lea.vmem %s14, 80
        %v3265 = vld [vmem:[%s3264] sm:$0xff]
        %v3266 = vld [vmem:[%s3264 + $0x8] sm:$0xff]
        %s3267 = scalar_lea.vmem %s15, 80
        %v3268 = vld [vmem:[%s3267] sm:$0xff]
        %v3269 = vld [vmem:[%s3267 + $0x8] sm:$0xff]
        %3271 = vset.pattern.permute.xlu0 0
        %3272 = vperm.xlu0 %3271, %v3268
        %v3273 = vpop.permute.xlu0 %3272
        %3276 = vset.pattern.permute.xlu0 0
        %3277 = vperm.xlu0 %3276, %v3269
        %v3278 = vpop.permute.xlu0 %3277
        %v3281 = vsel %vm701, %v3265, 0
        %v3284 = vsel %vm701, %v3266, 0
        %3286 = vmatprep.subr.mxu0 0.0
        %3287 = vmatpush1.msra.mxu0 %v3262
        %3288 = vmatprep.subr.mxu0 0.0
        %3289 = vmatpush1.msra.mxu0 %v3263
        %3290 = vmatprep.subr.mxu0 0.0
        %3291 = vmatpush1.msra.mxu0 0.0
        %3292 = vmatprep.subr.mxu0 0.0
        %3293 = vmatpush1.msra.mxu0 0.0
        %3294 = vmatprep.subr.mxu0 0.0
        %3295 = vmatpush1.msra.mxu0 0.0
        %3296 = vmatprep.subr.mxu0 0.0
        %3297 = vmatpush1.msra.mxu0 0.0
        %3298 = vmatprep.subr.mxu0 0.0
        %3299 = vmatpush1.msra.mxu0 0.0
        %3300 = vmatprep.subr.mxu0 0.0
        %3301 = vmatpush1.msra.mxu0 0.0
        %3302 = vmatprep.subr.mxu0 0.0
        %3303 = vmatpush1.msra.mxu0 0.0
        %3304 = vmatprep.subr.mxu0 0.0
        %3305 = vmatpush1.msra.mxu0 0.0
        %3306 = vmatprep.subr.mxu0 0.0
        %3307 = vmatpush1.msra.mxu0 0.0
        %3308 = vmatprep.subr.mxu0 0.0
        %3309 = vmatpush1.msra.mxu0 0.0
        %3310 = vmatprep.subr.mxu0 0.0
        %3311 = vmatpush1.msra.mxu0 0.0
        %3312 = vmatprep.subr.mxu0 0.0
        %3313 = vmatpush1.msra.mxu0 0.0
        %3314 = vmatprep.subr.mxu0 0.0
        %3315 = vmatpush1.msra.mxu0 0.0
        %3316 = vmatprep.subr.mxu0 0.0
        %3317 = vmatpush1.msra.mxu0 0.0
        %3318 = vmatprep.subr.mxu0 0.0
        %3319 = vmatpush1.msra.mxu0 0.0
        %3320 = vmatprep.subr.mxu0 0.0
        %3321 = vmatpush1.msra.mxu0 0.0
        %3322 = vmatprep.subr.mxu0 0.0
        %3323 = vmatpush1.msra.mxu0 0.0
        %3324 = vmatprep.subr.mxu0 0.0
        %3325 = vmatpush1.msra.mxu0 0.0
        %3326 = vmatprep.subr.mxu0 0.0
        %3327 = vmatpush1.msra.mxu0 0.0
        %3328 = vmatprep.subr.mxu0 0.0
        %3329 = vmatpush1.msra.mxu0 0.0
        %3330 = vmatprep.subr.mxu0 0.0
        %3331 = vmatpush1.msra.mxu0 0.0
        %3332 = vmatprep.subr.mxu0 0.0
        %3333 = vmatpush1.msra.mxu0 0.0
        %3334 = vmatprep.subr.mxu0 0.0
        %3335 = vmatpush1.msra.mxu0 0.0
        %3336 = vmatprep.subr.mxu0 0.0
        %3337 = vmatpush1.msra.mxu0 0.0
        %3338 = vmatprep.subr.mxu0 0.0
        %3339 = vmatpush1.msra.mxu0 0.0
        %3340 = vmatprep.subr.mxu0 0.0
        %3341 = vmatpush1.msra.mxu0 0.0
        %3342 = vmatprep.subr.mxu0 0.0
        %3343 = vmatpush1.msra.mxu0 0.0
        %3344 = vmatprep.subr.mxu0 0.0
        %3345 = vmatpush1.msra.mxu0 0.0
        %3346 = vmatprep.subr.mxu0 0.0
        %3347 = vmatpush1.msra.mxu0 0.0
        %3348 = vmatprep.subr.mxu0 0.0
        %3349 = vmatpush1.msra.mxu0 0.0
        %3350 = vmatprep.mubr.f32.mxu0 0.0
        %3351 = vmatmul.mubr.f32.gmra.mrb[0].mxu0 %v3281
        %v3352 = vpop.f32.mrb[0].mxu0
        %v3353 = vadd.f32 %v3273, %v3352
        %v3354 = vpop.f32.mrb[0].mxu0
        %3355 = vmatprep.mubr.f32.mxu0 0.0
        %3356 = vmatmul.mubr.f32.gmra.mrb[0].mxu0 %v3284
        %v3357 = vpop.f32.mrb[0].mxu0
        %v3358 = vadd.f32 %v3278, %v3357
        %v3359 = vpop.f32.mrb[0].mxu0
        %3360 = vdwg.mxu0
        %v3361 = vadd.f32 %v3109, %v3353
        %v3362 = vadd.f32 %v3110, %v3358
        %3364 = vset.pattern.permute.xlu0 0
        %3365 = vperm.xlu0 %3364, %v2512
        %v3366 = vpop.permute.xlu0 %3365
        %v3369 = vsel %vm701, %v2510, 0
        %3371 = vmatprep.subr.mxu0 0.0
        %3372 = vmatpush1.msra.mxu0 %v3361
        %3373 = vmatprep.subr.mxu0 0.0
        %3374 = vmatpush1.msra.mxu0 %v3362
        %3375 = vmatprep.subr.mxu0 0.0
        %3376 = vmatpush1.msra.mxu0 0.0
        %3377 = vmatprep.subr.mxu0 0.0
        %3378 = vmatpush1.msra.mxu0 0.0
        %3379 = vmatprep.subr.mxu0 0.0
        %3380 = vmatpush1.msra.mxu0 0.0
        %3381 = vmatprep.subr.mxu0 0.0
        %3382 = vmatpush1.msra.mxu0 0.0
        %3383 = vmatprep.subr.mxu0 0.0
        %3384 = vmatpush1.msra.mxu0 0.0
        %3385 = vmatprep.subr.mxu0 0.0
        %3386 = vmatpush1.msra.mxu0 0.0
        %3387 = vmatprep.subr.mxu0 0.0
        %3388 = vmatpush1.msra.mxu0 0.0
        %3389 = vmatprep.subr.mxu0 0.0
        %3390 = vmatpush1.msra.mxu0 0.0
        %3391 = vmatprep.subr.mxu0 0.0
        %3392 = vmatpush1.msra.mxu0 0.0
        %3393 = vmatprep.subr.mxu0 0.0
        %3394 = vmatpush1.msra.mxu0 0.0
        %3395 = vmatprep.subr.mxu0 0.0
        %3396 = vmatpush1.msra.mxu0 0.0
        %3397 = vmatprep.subr.mxu0 0.0
        %3398 = vmatpush1.msra.mxu0 0.0
        %3399 = vmatprep.subr.mxu0 0.0
        %3400 = vmatpush1.msra.mxu0 0.0
        %3401 = vmatprep.subr.mxu0 0.0
        %3402 = vmatpush1.msra.mxu0 0.0
        %3403 = vmatprep.subr.mxu0 0.0
        %3404 = vmatpush1.msra.mxu0 0.0
        %3405 = vmatprep.subr.mxu0 0.0
        %3406 = vmatpush1.msra.mxu0 0.0
        %3407 = vmatprep.subr.mxu0 0.0
        %3408 = vmatpush1.msra.mxu0 0.0
        %3409 = vmatprep.subr.mxu0 0.0
        %3410 = vmatpush1.msra.mxu0 0.0
        %3411 = vmatprep.subr.mxu0 0.0
        %3412 = vmatpush1.msra.mxu0 0.0
        %3413 = vmatprep.subr.mxu0 0.0
        %3414 = vmatpush1.msra.mxu0 0.0
        %3415 = vmatprep.subr.mxu0 0.0
        %3416 = vmatpush1.msra.mxu0 0.0
        %3417 = vmatprep.subr.mxu0 0.0
        %3418 = vmatpush1.msra.mxu0 0.0
        %3419 = vmatprep.subr.mxu0 0.0
        %3420 = vmatpush1.msra.mxu0 0.0
        %3421 = vmatprep.subr.mxu0 0.0
        %3422 = vmatpush1.msra.mxu0 0.0
        %3423 = vmatprep.subr.mxu0 0.0
        %3424 = vmatpush1.msra.mxu0 0.0
        %3425 = vmatprep.subr.mxu0 0.0
        %3426 = vmatpush1.msra.mxu0 0.0
        %3427 = vmatprep.subr.mxu0 0.0
        %3428 = vmatpush1.msra.mxu0 0.0
        %3429 = vmatprep.subr.mxu0 0.0
        %3430 = vmatpush1.msra.mxu0 0.0
        %3431 = vmatprep.subr.mxu0 0.0
        %3432 = vmatpush1.msra.mxu0 0.0
        %3433 = vmatprep.subr.mxu0 0.0
        %3434 = vmatpush1.msra.mxu0 0.0
        %3435 = vmatprep.mubr.f32.mxu0 0.0
        %3436 = vmatmul.mubr.f32.gmra.mrb[0].mxu0 %v3369
        %v3437 = vpop.f32.mrb[0].mxu0
        %v3438 = vadd.f32 %v3366, %v3437
        %v3439 = vpop.f32.mrb[0].mxu0
        %3440 = vdwg.mxu0
        %v3441 = vmul.f32 %v3438, %v595
        %s3442 = scalar_lea.vmem %s573, 16 [#allocation2]
        %3443 = vst [vmem:[%s3442] sm:$0x3f] %v3441
        %s3444 = sand.u32 %s425, 1
        %s3445 = sand.u32 %s425, 1
        %s3446 = smul.addr %s3445, 24
        %s3447 = scalar_lea.vmem [#allocation2], %s3446
        // Predicated region
        $region93: #{tpu_custom_call.1} parent=91 // pred_check
          %p3448 = pneg %p435
        $region94: #{tpu_custom_call.1} parent=91 // pred_check_branch
          %3450 = sbr.rel (%p3448) target = $region96
        $region95: #{tpu_custom_call.1} parent=91 // pred_region
          %s3451 = smul.addr %s29, 8
          %s3452 = scalar_lea.vmem %s18, %s3451
          // Predicated region
          $region97: #{tpu_custom_call.1} parent=95 // pred_check
            _
          $region98: #{tpu_custom_call.1} parent=95 // pred_check_branch
            %3454 = sbr.rel (0) target = $region100
          $region99: #{tpu_custom_call.1} parent=95 // pred_region
            // Predicated region
            $region101: #{tpu_custom_call.1} parent=99 // pred_check
              _
            $region102: #{tpu_custom_call.1} parent=99 // pred_check_branch
              %3456 = sbr.rel (0) target = $region104
            $region103: #{tpu_custom_call.1} parent=99 // pred_region
              // Predicated region
              $region116: #{tpu_custom_call.1} parent=103 // pred_check
                _
              $region117: #{tpu_custom_call.1} parent=103 // pred_check_branch
                %3475 = sbr.rel (0) target = $region119
              $region118: #{tpu_custom_call.1} parent=103 // pred_region
                loop: start=0, step=1, limit=1
                $region120: #{tpu_custom_call.1} parent=118 // loop_pre_header
                  _
                $region121: #{tpu_custom_call.1} parent=118 // loop_header
                  %s3477 = sphi 0, %s3481
                  %p3478 = scmp.ge.s32.totalorder %s3477, 1
                  %s3482 = sphi %s3447, %s3447
                  %s3483 = sphi %s3452, %s3452
                $region122: #{tpu_custom_call.1} parent=118 // loop_header_branch
                  %3480 = sbr.rel (%p3478) target = $region126
                $region123: #{tpu_custom_call.1} parent=118 // loop_body
                  %v3484 = vld [vmem:[%s3482] sm:$0xff]
                  %3485 = vst [vmem:[%s3483] sm:$0xff] %v3484
                  %v3486 = vld [vmem:[%s3482 + $0x8] sm:$0xff]
                  %3487 = vst [vmem:[%s3483 + $0x10] sm:$0xff] %v3486
                  %v3488 = vld [vmem:[%s3482 + $0x10] sm:$0xff]
                  %3489 = vst [vmem:[%s3483 + $0x20] sm:$0xff] %v3488
                $region124: #{tpu_custom_call.1} parent=118 // loop_footer
                  %s3481 = sadd.s32 1, %s3477
                $region125: #{tpu_custom_call.1} parent=118 // loop_footer_branch
                  %3476 = sbr.rel target = $region121
                $region126: #{tpu_custom_call.1} parent=118 // loop_exit
                  _
              $region119: #{tpu_custom_call.1} parent=103 // pred_fallthru
                _
              // Predicated region
              $region127: #{tpu_custom_call.1} parent=103 // pred_check
                _
              $region128: #{tpu_custom_call.1} parent=103 // pred_check_branch
                %3491 = sbr.rel target = $region130
              $region129: #{tpu_custom_call.1} parent=103 // pred_region
                _
              $region130: #{tpu_custom_call.1} parent=103 // pred_fallthru
                _
            $region104: #{tpu_custom_call.1} parent=99 // pred_fallthru
              _
            // Predicated region
            $region105: #{tpu_custom_call.1} parent=99 // pred_check
              _
            $region106: #{tpu_custom_call.1} parent=99 // pred_check_branch
              %3458 = sbr.rel target = $region108
            $region107: #{tpu_custom_call.1} parent=99 // pred_region
              loop: start=0, step=1, limit=1
              $region109: #{tpu_custom_call.1} parent=107 // loop_pre_header
                _
              $region110: #{tpu_custom_call.1} parent=107 // loop_header
                %s3461 = sphi 0, %s3465
                %p3462 = scmp.ge.s32.totalorder %s3461, 1
                %s3466 = sphi %s3447, %s3447
                %s3467 = sphi %s3452, %s3452
              $region111: #{tpu_custom_call.1} parent=107 // loop_header_branch
                %3464 = sbr.rel (%p3462) target = $region115
              $region112: #{tpu_custom_call.1} parent=107 // loop_body
                %v3468 = vld [vmem:[%s3466] sm:$0xff]
                %3469 = vst [vmem:[%s3467] sm:$0xff] %v3468
                %v3470 = vld [vmem:[%s3466 + $0x8] sm:$0xff]
                %3471 = vst [vmem:[%s3467 + $0x10] sm:$0xff] %v3470
                %v3472 = vld [vmem:[%s3466 + $0x10] sm:$0xff]
                %3473 = vst [vmem:[%s3467 + $0x20] sm:$0xff] %v3472
              $region113: #{tpu_custom_call.1} parent=107 // loop_footer
                %s3465 = sadd.s32 1, %s3461
              $region114: #{tpu_custom_call.1} parent=107 // loop_footer_branch
                %3460 = sbr.rel target = $region110
              $region115: #{tpu_custom_call.1} parent=107 // loop_exit
                _
            $region108: #{tpu_custom_call.1} parent=99 // pred_fallthru
              _
          $region100: #{tpu_custom_call.1} parent=95 // pred_fallthru
            _
          %3492 = vnop
        $region96: #{tpu_custom_call.1} parent=91 // pred_fallthru
          _
      $region92: #{tpu_custom_call.1} parent=5 // pred_fallthru
        _
      %p3493 = scmp.le.s32.totalorder 2, %s24
      // Predicated region
      $region131: #{tpu_custom_call.1} parent=5 // pred_check
        %p3494 = pneg %p3493
      $region132: #{tpu_custom_call.1} parent=5 // pred_check_branch
        %3496 = sbr.rel (%p3494) target = $region134
      $region133: #{tpu_custom_call.1} parent=5 // pred_region
        %s3497 = ssub.s32 %s24, 2
        // Predicated region
        $region135: #{tpu_custom_call.1} parent=133 // pred_check
          %p3498 = pneg %p441
        $region136: #{tpu_custom_call.1} parent=133 // pred_check_branch
          %3500 = sbr.rel (%p3498) target = $region138
        $region137: #{tpu_custom_call.1} parent=133 // pred_region
          %s3501 = sand.u32 %s426, 1
          %s3502 = sand.u32 %s426, 1
          %s3503 = smul.addr %s3502, 24
          %s3504 = scalar_lea.vmem [#allocation2], %s3503
        $region138: #{tpu_custom_call.1} parent=133 // pred_fallthru
          _
      $region134: #{tpu_custom_call.1} parent=5 // pred_fallthru
        _
    $region6: #{tpu_custom_call.1} parent=1 // loop_footer
      %s28 = sadd.s32 1, %s24
    $region7: #{tpu_custom_call.1} parent=1 // loop_footer_branch
      %23 = sbr.rel target = $region3
    $region8: #{tpu_custom_call.1} parent=1 // loop_exit
      _

</llo_original>
